<compile_context>
chip_gen: v7x
topology: tpu7x:2x2x1
jax: 0.10.0
libtpu: 0.0.40
codegen_flags: <defaults>
</compile_context>

<pallas_src>
import functools

import jax
import jax.numpy as jnp
from jax import lax
from jax.experimental import pallas as pl
from jax.experimental.pallas import tpu as pltpu  # noqa: F401  (TPU backend)

NOISE_DIM = 50
D = 16
EMB_DIM = 16
VOCAB = 10
IMG_SIZE = 25
KS = 4                      # conv-transpose kernel size
BN_EPS = 1e-5
ACT_DTYPE = jnp.bfloat16    # MXU-native operand dtype; accumulation stays f32


def _round_up(x, m):
    return (x + m - 1) // m * m


def _pad_to(x, rows, cols):
    return jnp.zeros((rows, cols), x.dtype).at[:x.shape[0], :x.shape[1]].set(x)


# ---------------------------------------------------------------------------
# Pallas kernels (one fused kernel per generator layer)
# ---------------------------------------------------------------------------

def _convt_bn_relu_kernel(w_ref, x_ref, g_ref, b_ref, o_ref, *, m_real, eps):
    """ConvTranspose2d (as transposed matmul) fused with train-mode BN + ReLU.

    w_ref: [Cout, Kp] bf16   flipped-kernel weight matrix (K zero-padded)
    x_ref: [Kp, Mp]   bf16   im2col patches^T (zero-padded), M = B*OH*OW
    g_ref, b_ref: [Cout, 1] f32  BN gamma / beta
    o_ref: [Cout, Mp] bf16   (columns >= m_real hold junk, sliced off outside)

    The conv bias is omitted: BN subtracts the per-channel mean, so a
    per-channel constant shift cancels exactly.  Zero-padded K rows / M columns
    contribute exact zeros to the accumulator, so the statistics (sums divided
    by the *real* M) are exact for any batch size.
    """
    acc = jnp.dot(w_ref[...], x_ref[...], preferred_element_type=jnp.float32)
    inv_m = 1.0 / m_real
    mean = jnp.sum(acc, axis=1, keepdims=True) * inv_m           # [Cout, 1]
    ex2 = jnp.sum(acc * acc, axis=1, keepdims=True) * inv_m      # [Cout, 1]
    var = jnp.maximum(ex2 - mean * mean, 0.0)                    # biased variance
    scale = lax.rsqrt(var + eps) * g_ref[...]
    y = (acc - mean) * scale + b_ref[...]
    o_ref[...] = jnp.maximum(y, 0.0).astype(o_ref.dtype)


def _convt_tanh_kernel(w_ref, x_ref, b_ref, o_ref):
    """Final ConvTranspose2d (Cout=1) + bias + tanh, lane-dense over spatial.

    w_ref: [8, Kp] bf16  (row 0 = real weight vector, rows 1..7 zero)
    x_ref: [Kp, Mp] bf16 patches^T
    b_ref: [1, 1]   f32  conv bias
    o_ref: [1, Mp]  f32  tanh output, spatial on the lane axis
    """
    acc = jnp.dot(w_ref[...], x_ref[...], preferred_element_type=jnp.float32)
    o_ref[...] = jnp.tanh(acc[0:1, :] + b_ref[...])


def convt_bn_relu(w_t, patches_t, gamma, beta, m_real, eps=BN_EPS):
    cout, kp = w_t.shape
    kp2, mp = patches_t.shape
    assert kp == kp2
    return pl.pallas_call(
        functools.partial(_convt_bn_relu_kernel, m_real=m_real, eps=eps),
        out_shape=jax.ShapeDtypeStruct((cout, mp), ACT_DTYPE),
        grid=(1,),
        in_specs=[
            pl.BlockSpec((cout, kp), lambda i: (0, 0)),
            pl.BlockSpec((kp, mp), lambda i: (0, 0)),
            pl.BlockSpec((cout, 1), lambda i: (0, 0)),
            pl.BlockSpec((cout, 1), lambda i: (0, 0)),
        ],
        out_specs=pl.BlockSpec((cout, mp), lambda i: (0, 0)),
    )(w_t, patches_t, gamma, beta)


def convt_tanh(w_t, patches_t, bias):
    rows, kp = w_t.shape
    kp2, mp = patches_t.shape
    assert kp == kp2
    return pl.pallas_call(
        _convt_tanh_kernel,
        out_shape=jax.ShapeDtypeStruct((1, mp), jnp.float32),
        grid=(1,),
        in_specs=[
            pl.BlockSpec((rows, kp), lambda i: (0, 0)),
            pl.BlockSpec((kp, mp), lambda i: (0, 0)),
            pl.BlockSpec((1, 1), lambda i: (0, 0)),
        ],
        out_specs=pl.BlockSpec((1, mp), lambda i: (0, 0)),
    )(w_t, patches_t, bias)


# ---------------------------------------------------------------------------
# Plain-JAX glue: transposed im2col for ConvTranspose2d (zero-dilate + pad +
# 16 static tap slices).  Channels-first [C, B, H, W] layout so no per-layer
# transposes are needed and the patch matrix comes out already transposed.
# ---------------------------------------------------------------------------

def conv_transpose_patches_t(x_cbhw, k, s):
    """x: [C, B, H, W] -> patches^T [k*k*C, B*OH*OW], OH, OW.

    Row (feature) order is (kh, kw, c) with kh slowest — matches
    `conv_transpose_weight_t`.
    """
    c, b, h, w = x_cbhw.shape
    hu, wu = (h - 1) * s + 1, (w - 1) * s + 1
    if s > 1:
        xu = jnp.zeros((c, b, hu, wu), x_cbhw.dtype).at[:, :, ::s, ::s].set(x_cbhw)
    else:
        xu = x_cbhw
    xp = jnp.pad(xu, ((0, 0), (0, 0), (k - 1, k - 1), (k - 1, k - 1)))
    oh, ow = hu + k - 1, wu + k - 1
    taps = [xp[:, :, kh:kh + oh, kw:kw + ow] for kh in range(k) for kw in range(k)]
    p = jnp.stack(taps, axis=0).reshape(k * k * c, b * oh * ow)
    return p, oh, ow


def conv_transpose_weight_t(w_torch_layout):
    """PyTorch ConvTranspose2d weight [Cin, Cout, k, k] -> [Cout, k*k*Cin]
    for the equivalent flipped-kernel correlation (feature order kh, kw, cin)."""
    cin, cout, k, _ = w_torch_layout.shape
    return jnp.flip(w_torch_layout, axis=(2, 3)).transpose(1, 2, 3, 0).reshape(cout, k * k * cin)


# ---------------------------------------------------------------------------
# Parameters (deterministic, synthetic) — padded/cast ONCE here, never per step
# ---------------------------------------------------------------------------

def init_params(key):
    ks = jax.random.split(key, 8)
    params = {"emb": jax.random.normal(ks[0], (VOCAB, EMB_DIM), jnp.float32) * 0.02}
    specs = [
        (NOISE_DIM + EMB_DIM, 4 * D),  # 66 -> 64
        (4 * D, 2 * D),                # 64 -> 32
        (2 * D, 1 * D),                # 32 -> 16
        (1 * D, 1),                    # 16 -> 1
    ]
    for i, (cin, cout) in enumerate(specs, start=1):
        w = jax.random.normal(ks[i], (cin, cout, KS, KS), jnp.float32) * 0.02
        wt = conv_transpose_weight_t(w)                    # [Cout, K], K = 16*Cin
        kdim = KS * KS * cin
        kp = _round_up(kdim, 128)
        rows = 8 if i == 4 else cout                       # pad last layer's Cout=1 to a sublane tile
        params[f"wt{i}"] = _pad_to(wt, rows, kp).astype(ACT_DTYPE)
        if i < 4:
            params[f"g{i}"] = jnp.ones((cout, 1), jnp.float32)     # BN gamma
            params[f"be{i}"] = jnp.zeros((cout, 1), jnp.float32)   # BN beta
        else:
            params["b4"] = jnp.zeros((1, 1), jnp.float32)          # conv bias of the tanh layer
    return params


# ---------------------------------------------------------------------------
# Generator forward
# ---------------------------------------------------------------------------

def generator_forward(params, z, label):
    """z: [B, 50, 1, 1] f32, label: [B] int32 -> [B, 1, 25, 25] f32."""
    b = z.shape[0]
    emb = jnp.take(params["emb"], label, axis=0)                   # [B, 16]
    x = jnp.concatenate([z.reshape(b, NOISE_DIM), emb], axis=1)    # [B, 66]
    # Channels-first [C, B, H, W]: channels on sublanes, spatial on lanes.
    x = x.T.reshape(NOISE_DIM + EMB_DIM, b, 1, 1).astype(ACT_DTYPE)

    strides = (2, 2, 2, 1)
    for i in (1, 2, 3):
        p, oh, ow = conv_transpose_patches_t(x, KS, strides[i - 1])
        kdim, m = p.shape
        pp = _pad_to(p, _round_up(kdim, 128), _round_up(m, 128))   # exact zero padding
        y = convt_bn_relu(params[f"wt{i}"], pp,
                          params[f"g{i}"], params[f"be{i}"], m_real=m)
        x = y[:, :m].reshape(y.shape[0], b, oh, ow)                # [Cout, B, OH, OW]

    p, oh, ow = conv_transpose_patches_t(x, KS, strides[3])
    kdim, m = p.shape
    pp = _pad_to(p, _round_up(kdim, 128), _round_up(m, 128))
    y = convt_tanh(params["wt4"], pp, params["b4"])                # [1, Mp] f32
    return y[:, :m].reshape(b, 1, oh, ow)                          # NCHW (Cout == 1)


if __name__ == "__main__":
    key = jax.random.PRNGKey(0)
    kp, kz, kl = jax.random.split(key, 3)
    params = init_params(kp)

    B = 2
    z = jax.random.normal(kz, (B, NOISE_DIM, 1, 1), jnp.float32)
    label = jax.random.randint(kl, (B,), 0, VOCAB, jnp.int32)

    out = jax.jit(generator_forward)(params, z, label)
    out = jax.block_until_ready(out)

    assert out.shape == (B, 1, IMG_SIZE, IMG_SIZE), out.shape
    assert bool(jnp.all(jnp.isfinite(out)))
    assert bool(jnp.all(jnp.abs(out) <= 1.0 + 1e-6))  # tanh range
    print("KERNEL_OK")
</pallas_src>

<mosaic_0001>
module attributes {stable_mosaic.version = 11 : i64} {
  func.func @_convt_bn_relu_kernel(%arg0: i32, %arg1: memref<64x1152xbf16, #tpu.memory_space<vmem>>, %arg2: memref<1152x128xbf16, #tpu.memory_space<vmem>>, %arg3: memref<64x1xf32, #tpu.memory_space<vmem>>, %arg4: memref<64x1xf32, #tpu.memory_space<vmem>>, %arg5: memref<64x128xbf16, #tpu.memory_space<vmem>>) attributes {dimension_semantics = [#tpu.dimension_semantics<arbitrary>], iteration_bounds = array<i64: 1>, scalar_prefetch = 0 : i64, scratch_operands = 0 : i64, tpu.core_type = #tpu.core_type<tc>, window_params = [{pipeline_mode = #tpu.pipeline_mode<synchronous>, transform_indices = @transform_0, window_bounds = array<i64: 64, 1152>}, {pipeline_mode = #tpu.pipeline_mode<synchronous>, transform_indices = @transform_1, window_bounds = array<i64: 1152, 128>}, {pipeline_mode = #tpu.pipeline_mode<synchronous>, transform_indices = @transform_2, window_bounds = array<i64: 64, 1>}, {pipeline_mode = #tpu.pipeline_mode<synchronous>, transform_indices = @transform_3, window_bounds = array<i64: 64, 1>}, {pipeline_mode = #tpu.pipeline_mode<synchronous>, transform_indices = @transform_4, window_bounds = array<i64: 64, 128>}]} {
    %c0 = arith.constant 0 : index
    %c0_0 = arith.constant 0 : index
    %0 = vector.load %arg1[%c0, %c0_0] : memref<64x1152xbf16, #tpu.memory_space<vmem>>, vector<64x1152xbf16>
    %c0_1 = arith.constant 0 : index
    %c0_2 = arith.constant 0 : index
    %1 = vector.load %arg2[%c0_1, %c0_2] : memref<1152x128xbf16, #tpu.memory_space<vmem>>, vector<1152x128xbf16>
    %cst = arith.constant dense<0.000000e+00> : vector<64x128xf32>
    %2 = tpu.matmul %0, %1, %cst {dimension_numbers = #tpu.dot_dimension_numbers<[1], [0], [0], [1], [0, 0, 1, 1], [], []>} : vector<64x1152xbf16>, vector<1152x128xbf16>, vector<64x128xf32> -> vector<64x128xf32>
    %cst_3 = arith.constant dense<0.000000e+00> : vector<64xf32>
    %3 = vector.multi_reduction <add>, %2, %cst_3 [1] : vector<64x128xf32> to vector<64xf32>
    %4 = vector.shape_cast %3 : vector<64xf32> to vector<64x1xf32>
    %cst_4 = arith.constant 3.125000e-02 : f32
    %5 = vector.broadcast %cst_4 : f32 to vector<64x1xf32>
    %6 = arith.mulf %4, %5 : vector<64x1xf32>
    %7 = arith.mulf %2, %2 : vector<64x128xf32>
    %cst_5 = arith.constant dense<0.000000e+00> : vector<64xf32>
    %8 = vector.multi_reduction <add>, %7, %cst_5 [1] : vector<64x128xf32> to vector<64xf32>
    %9 = vector.shape_cast %8 : vector<64xf32> to vector<64x1xf32>
    %cst_6 = arith.constant 3.125000e-02 : f32
    %10 = vector.broadcast %cst_6 : f32 to vector<64x1xf32>
    %11 = arith.mulf %9, %10 : vector<64x1xf32>
    %12 = arith.mulf %6, %6 : vector<64x1xf32>
    %13 = arith.subf %11, %12 : vector<64x1xf32>
    %cst_7 = arith.constant 0.000000e+00 : f32
    %14 = vector.broadcast %cst_7 : f32 to vector<64x1xf32>
    %15 = arith.maximumf %13, %14 : vector<64x1xf32>
    %cst_8 = arith.constant 9.99999974E-6 : f32
    %16 = vector.broadcast %cst_8 : f32 to vector<64x1xf32>
    %17 = arith.addf %15, %16 : vector<64x1xf32>
    %18 = math.rsqrt %17 : vector<64x1xf32>
    %c0_9 = arith.constant 0 : index
    %c0_10 = arith.constant 0 : index
    %19 = vector.load %arg3[%c0_9, %c0_10] : memref<64x1xf32, #tpu.memory_space<vmem>>, vector<64x1xf32>
    %20 = arith.mulf %18, %19 : vector<64x1xf32>
    %21 = vector.broadcast %6 : vector<64x1xf32> to vector<64x128xf32>
    %22 = arith.subf %2, %21 : vector<64x128xf32>
    %23 = vector.broadcast %20 : vector<64x1xf32> to vector<64x128xf32>
    %24 = arith.mulf %22, %23 : vector<64x128xf32>
    %c0_11 = arith.constant 0 : index
    %c0_12 = arith.constant 0 : index
    %25 = vector.load %arg4[%c0_11, %c0_12] : memref<64x1xf32, #tpu.memory_space<vmem>>, vector<64x1xf32>
    %26 = vector.broadcast %25 : vector<64x1xf32> to vector<64x128xf32>
    %27 = arith.addf %24, %26 : vector<64x128xf32>
    %cst_13 = arith.constant 0.000000e+00 : f32
    %28 = vector.broadcast %cst_13 : f32 to vector<64x128xf32>
    %29 = arith.maximumf %27, %28 : vector<64x128xf32>
    %30 = arith.truncf %29 : vector<64x128xf32> to vector<64x128xbf16>
    %c0_14 = arith.constant 0 : index
    %c0_15 = arith.constant 0 : index
    %31 = vector.load %arg5[%c0_14, %c0_15] : memref<64x128xbf16, #tpu.memory_space<vmem>>, vector<64x128xbf16>
    tpu.vector_store %arg5[%c0_14, %c0_15], %30 {strides = array<i32>} : memref<64x128xbf16, #tpu.memory_space<vmem>>, vector<64x128xbf16>,
    return
  }
  func.func @transform_0(%arg0: i32) -> (i32, i32) {
    %c0_i32 = arith.constant 0 : i32
    %c0_i32_0 = arith.constant 0 : i32
    %c0_i32_1 = arith.constant 0 : i32
    return %c0_i32, %c0_i32_0 : i32, i32
  }
  func.func @transform_1(%arg0: i32) -> (i32, i32) {
    %c0_i32 = arith.constant 0 : i32
    %c0_i32_0 = arith.constant 0 : i32
    %c0_i32_1 = arith.constant 0 : i32
    return %c0_i32, %c0_i32_0 : i32, i32
  }
  func.func @transform_2(%arg0: i32) -> (i32, i32) {
    %c0_i32 = arith.constant 0 : i32
    %c0_i32_0 = arith.constant 0 : i32
    %c0_i32_1 = arith.constant 0 : i32
    return %c0_i32, %c0_i32_0 : i32, i32
  }
  func.func @transform_3(%arg0: i32) -> (i32, i32) {
    %c0_i32 = arith.constant 0 : i32
    %c0_i32_0 = arith.constant 0 : i32
    %c0_i32_1 = arith.constant 0 : i32
    return %c0_i32, %c0_i32_0 : i32, i32
  }
  func.func @transform_4(%arg0: i32) -> (i32, i32) {
    %c0_i32 = arith.constant 0 : i32
    %c0_i32_0 = arith.constant 0 : i32
    %c0_i32_1 = arith.constant 0 : i32
    return %c0_i32, %c0_i32_0 : i32, i32
  }
}

module attributes {stable_mosaic.version = 11 : i64} {
  func.func @_convt_bn_relu_kernel(%arg0: i32, %arg1: memref<32x1024xbf16, #tpu.memory_space<vmem>>, %arg2: memref<1024x256xbf16, #tpu.memory_space<vmem>>, %arg3: memref<32x1xf32, #tpu.memory_space<vmem>>, %arg4: memref<32x1xf32, #tpu.memory_space<vmem>>, %arg5: memref<32x256xbf16, #tpu.memory_space<vmem>>) attributes {dimension_semantics = [#tpu.dimension_semantics<arbitrary>], iteration_bounds = array<i64: 1>, scalar_prefetch = 0 : i64, scratch_operands = 0 : i64, tpu.core_type = #tpu.core_type<tc>, window_params = [{pipeline_mode = #tpu.pipeline_mode<synchronous>, transform_indices = @transform_0, window_bounds = array<i64: 32, 1024>}, {pipeline_mode = #tpu.pipeline_mode<synchronous>, transform_indices = @transform_1, window_bounds = array<i64: 1024, 256>}, {pipeline_mode = #tpu.pipeline_mode<synchronous>, transform_indices = @transform_2, window_bounds = array<i64: 32, 1>}, {pipeline_mode = #tpu.pipeline_mode<synchronous>, transform_indices = @transform_3, window_bounds = array<i64: 32, 1>}, {pipeline_mode = #tpu.pipeline_mode<synchronous>, transform_indices = @transform_4, window_bounds = array<i64: 32, 256>}]} {
    %c0 = arith.constant 0 : index
    %c0_0 = arith.constant 0 : index
    %0 = vector.load %arg1[%c0, %c0_0] : memref<32x1024xbf16, #tpu.memory_space<vmem>>, vector<32x1024xbf16>
    %c0_1 = arith.constant 0 : index
    %c0_2 = arith.constant 0 : index
    %1 = vector.load %arg2[%c0_1, %c0_2] : memref<1024x256xbf16, #tpu.memory_space<vmem>>, vector<1024x256xbf16>
    %cst = arith.constant dense<0.000000e+00> : vector<32x256xf32>
    %2 = tpu.matmul %0, %1, %cst {dimension_numbers = #tpu.dot_dimension_numbers<[1], [0], [0], [1], [0, 0, 1, 1], [], []>} : vector<32x1024xbf16>, vector<1024x256xbf16>, vector<32x256xf32> -> vector<32x256xf32>
    %cst_3 = arith.constant dense<0.000000e+00> : vector<32xf32>
    %3 = vector.multi_reduction <add>, %2, %cst_3 [1] : vector<32x256xf32> to vector<32xf32>
    %4 = vector.shape_cast %3 : vector<32xf32> to vector<32x1xf32>
    %cst_4 = arith.constant 5.000000e-03 : f32
    %5 = vector.broadcast %cst_4 : f32 to vector<32x1xf32>
    %6 = arith.mulf %4, %5 : vector<32x1xf32>
    %7 = arith.mulf %2, %2 : vector<32x256xf32>
    %cst_5 = arith.constant dense<0.000000e+00> : vector<32xf32>
    %8 = vector.multi_reduction <add>, %7, %cst_5 [1] : vector<32x256xf32> to vector<32xf32>
    %9 = vector.shape_cast %8 : vector<32xf32> to vector<32x1xf32>
    %cst_6 = arith.constant 5.000000e-03 : f32
    %10 = vector.broadcast %cst_6 : f32 to vector<32x1xf32>
    %11 = arith.mulf %9, %10 : vector<32x1xf32>
    %12 = arith.mulf %6, %6 : vector<32x1xf32>
    %13 = arith.subf %11, %12 : vector<32x1xf32>
    %cst_7 = arith.constant 0.000000e+00 : f32
    %14 = vector.broadcast %cst_7 : f32 to vector<32x1xf32>
    %15 = arith.maximumf %13, %14 : vector<32x1xf32>
    %cst_8 = arith.constant 9.99999974E-6 : f32
    %16 = vector.broadcast %cst_8 : f32 to vector<32x1xf32>
    %17 = arith.addf %15, %16 : vector<32x1xf32>
    %18 = math.rsqrt %17 : vector<32x1xf32>
    %c0_9 = arith.constant 0 : index
    %c0_10 = arith.constant 0 : index
    %19 = vector.load %arg3[%c0_9, %c0_10] : memref<32x1xf32, #tpu.memory_space<vmem>>, vector<32x1xf32>
    %20 = arith.mulf %18, %19 : vector<32x1xf32>
    %21 = vector.broadcast %6 : vector<32x1xf32> to vector<32x256xf32>
    %22 = arith.subf %2, %21 : vector<32x256xf32>
    %23 = vector.broadcast %20 : vector<32x1xf32> to vector<32x256xf32>
    %24 = arith.mulf %22, %23 : vector<32x256xf32>
    %c0_11 = arith.constant 0 : index
    %c0_12 = arith.constant 0 : index
    %25 = vector.load %arg4[%c0_11, %c0_12] : memref<32x1xf32, #tpu.memory_space<vmem>>, vector<32x1xf32>
    %26 = vector.broadcast %25 : vector<32x1xf32> to vector<32x256xf32>
    %27 = arith.addf %24, %26 : vector<32x256xf32>
    %cst_13 = arith.constant 0.000000e+00 : f32
    %28 = vector.broadcast %cst_13 : f32 to vector<32x256xf32>
    %29 = arith.maximumf %27, %28 : vector<32x256xf32>
    %30 = arith.truncf %29 : vector<32x256xf32> to vector<32x256xbf16>
    %c0_14 = arith.constant 0 : index
    %c0_15 = arith.constant 0 : index
    %31 = vector.load %arg5[%c0_14, %c0_15] : memref<32x256xbf16, #tpu.memory_space<vmem>>, vector<32x256xbf16>
    tpu.vector_store %arg5[%c0_14, %c0_15], %30 {strides = array<i32>} : memref<32x256xbf16, #tpu.memory_space<vmem>>, vector<32x256xbf16>,
    return
  }
  func.func @transform_0(%arg0: i32) -> (i32, i32) {
    %c0_i32 = arith.constant 0 : i32
    %c0_i32_0 = arith.constant 0 : i32
    %c0_i32_1 = arith.constant 0 : i32
    return %c0_i32, %c0_i32_0 : i32, i32
  }
  func.func @transform_1(%arg0: i32) -> (i32, i32) {
    %c0_i32 = arith.constant 0 : i32
    %c0_i32_0 = arith.constant 0 : i32
    %c0_i32_1 = arith.constant 0 : i32
    return %c0_i32, %c0_i32_0 : i32, i32
  }
  func.func @transform_2(%arg0: i32) -> (i32, i32) {
    %c0_i32 = arith.constant 0 : i32
    %c0_i32_0 = arith.constant 0 : i32
    %c0_i32_1 = arith.constant 0 : i32
    return %c0_i32, %c0_i32_0 : i32, i32
  }
  func.func @transform_3(%arg0: i32) -> (i32, i32) {
    %c0_i32 = arith.constant 0 : i32
    %c0_i32_0 = arith.constant 0 : i32
    %c0_i32_1 = arith.constant 0 : i32
    return %c0_i32, %c0_i32_0 : i32, i32
  }
  func.func @transform_4(%arg0: i32) -> (i32, i32) {
    %c0_i32 = arith.constant 0 : i32
    %c0_i32_0 = arith.constant 0 : i32
    %c0_i32_1 = arith.constant 0 : i32
    return %c0_i32, %c0_i32_0 : i32, i32
  }
}

module attributes {stable_mosaic.version = 11 : i64} {
  func.func @_convt_bn_relu_kernel(%arg0: i32, %arg1: memref<16x512xbf16, #tpu.memory_space<vmem>>, %arg2: memref<512x1024xbf16, #tpu.memory_space<vmem>>, %arg3: memref<16x1xf32, #tpu.memory_space<vmem>>, %arg4: memref<16x1xf32, #tpu.memory_space<vmem>>, %arg5: memref<16x1024xbf16, #tpu.memory_space<vmem>>) attributes {dimension_semantics = [#tpu.dimension_semantics<arbitrary>], iteration_bounds = array<i64: 1>, scalar_prefetch = 0 : i64, scratch_operands = 0 : i64, tpu.core_type = #tpu.core_type<tc>, window_params = [{pipeline_mode = #tpu.pipeline_mode<synchronous>, transform_indices = @transform_0, window_bounds = array<i64: 16, 512>}, {pipeline_mode = #tpu.pipeline_mode<synchronous>, transform_indices = @transform_1, window_bounds = array<i64: 512, 1024>}, {pipeline_mode = #tpu.pipeline_mode<synchronous>, transform_indices = @transform_2, window_bounds = array<i64: 16, 1>}, {pipeline_mode = #tpu.pipeline_mode<synchronous>, transform_indices = @transform_3, window_bounds = array<i64: 16, 1>}, {pipeline_mode = #tpu.pipeline_mode<synchronous>, transform_indices = @transform_4, window_bounds = array<i64: 16, 1024>}]} {
    %c0 = arith.constant 0 : index
    %c0_0 = arith.constant 0 : index
    %0 = vector.load %arg1[%c0, %c0_0] : memref<16x512xbf16, #tpu.memory_space<vmem>>, vector<16x512xbf16>
    %c0_1 = arith.constant 0 : index
    %c0_2 = arith.constant 0 : index
    %1 = vector.load %arg2[%c0_1, %c0_2] : memref<512x1024xbf16, #tpu.memory_space<vmem>>, vector<512x1024xbf16>
    %cst = arith.constant dense<0.000000e+00> : vector<16x1024xf32>
    %2 = tpu.matmul %0, %1, %cst {dimension_numbers = #tpu.dot_dimension_numbers<[1], [0], [0], [1], [0, 0, 1, 1], [], []>} : vector<16x512xbf16>, vector<512x1024xbf16>, vector<16x1024xf32> -> vector<16x1024xf32>
    %cst_3 = arith.constant dense<0.000000e+00> : vector<16xf32>
    %3 = vector.multi_reduction <add>, %2, %cst_3 [1] : vector<16x1024xf32> to vector<16xf32>
    %4 = vector.shape_cast %3 : vector<16xf32> to vector<16x1xf32>
    %cst_4 = arith.constant 0.00103305781 : f32
    %5 = vector.broadcast %cst_4 : f32 to vector<16x1xf32>
    %6 = arith.mulf %4, %5 : vector<16x1xf32>
    %7 = arith.mulf %2, %2 : vector<16x1024xf32>
    %cst_5 = arith.constant dense<0.000000e+00> : vector<16xf32>
    %8 = vector.multi_reduction <add>, %7, %cst_5 [1] : vector<16x1024xf32> to vector<16xf32>
    %9 = vector.shape_cast %8 : vector<16xf32> to vector<16x1xf32>
    %cst_6 = arith.constant 0.00103305781 : f32
    %10 = vector.broadcast %cst_6 : f32 to vector<16x1xf32>
    %11 = arith.mulf %9, %10 : vector<16x1xf32>
    %12 = arith.mulf %6, %6 : vector<16x1xf32>
    %13 = arith.subf %11, %12 : vector<16x1xf32>
    %cst_7 = arith.constant 0.000000e+00 : f32
    %14 = vector.broadcast %cst_7 : f32 to vector<16x1xf32>
    %15 = arith.maximumf %13, %14 : vector<16x1xf32>
    %cst_8 = arith.constant 9.99999974E-6 : f32
    %16 = vector.broadcast %cst_8 : f32 to vector<16x1xf32>
    %17 = arith.addf %15, %16 : vector<16x1xf32>
    %18 = math.rsqrt %17 : vector<16x1xf32>
    %c0_9 = arith.constant 0 : index
    %c0_10 = arith.constant 0 : index
    %19 = vector.load %arg3[%c0_9, %c0_10] : memref<16x1xf32, #tpu.memory_space<vmem>>, vector<16x1xf32>
    %20 = arith.mulf %18, %19 : vector<16x1xf32>
    %21 = vector.broadcast %6 : vector<16x1xf32> to vector<16x1024xf32>
    %22 = arith.subf %2, %21 : vector<16x1024xf32>
    %23 = vector.broadcast %20 : vector<16x1xf32> to vector<16x1024xf32>
    %24 = arith.mulf %22, %23 : vector<16x1024xf32>
    %c0_11 = arith.constant 0 : index
    %c0_12 = arith.constant 0 : index
    %25 = vector.load %arg4[%c0_11, %c0_12] : memref<16x1xf32, #tpu.memory_space<vmem>>, vector<16x1xf32>
    %26 = vector.broadcast %25 : vector<16x1xf32> to vector<16x1024xf32>
    %27 = arith.addf %24, %26 : vector<16x1024xf32>
    %cst_13 = arith.constant 0.000000e+00 : f32
    %28 = vector.broadcast %cst_13 : f32 to vector<16x1024xf32>
    %29 = arith.maximumf %27, %28 : vector<16x1024xf32>
    %30 = arith.truncf %29 : vector<16x1024xf32> to vector<16x1024xbf16>
    %c0_14 = arith.constant 0 : index
    %c0_15 = arith.constant 0 : index
    %31 = vector.load %arg5[%c0_14, %c0_15] : memref<16x1024xbf16, #tpu.memory_space<vmem>>, vector<16x1024xbf16>
    tpu.vector_store %arg5[%c0_14, %c0_15], %30 {strides = array<i32>} : memref<16x1024xbf16, #tpu.memory_space<vmem>>, vector<16x1024xbf16>,
    return
  }
  func.func @transform_0(%arg0: i32) -> (i32, i32) {
    %c0_i32 = arith.constant 0 : i32
    %c0_i32_0 = arith.constant 0 : i32
    %c0_i32_1 = arith.constant 0 : i32
    return %c0_i32, %c0_i32_0 : i32, i32
  }
  func.func @transform_1(%arg0: i32) -> (i32, i32) {
    %c0_i32 = arith.constant 0 : i32
    %c0_i32_0 = arith.constant 0 : i32
    %c0_i32_1 = arith.constant 0 : i32
    return %c0_i32, %c0_i32_0 : i32, i32
  }
  func.func @transform_2(%arg0: i32) -> (i32, i32) {
    %c0_i32 = arith.constant 0 : i32
    %c0_i32_0 = arith.constant 0 : i32
    %c0_i32_1 = arith.constant 0 : i32
    return %c0_i32, %c0_i32_0 : i32, i32
  }
  func.func @transform_3(%arg0: i32) -> (i32, i32) {
    %c0_i32 = arith.constant 0 : i32
    %c0_i32_0 = arith.constant 0 : i32
    %c0_i32_1 = arith.constant 0 : i32
    return %c0_i32, %c0_i32_0 : i32, i32
  }
  func.func @transform_4(%arg0: i32) -> (i32, i32) {
    %c0_i32 = arith.constant 0 : i32
    %c0_i32_0 = arith.constant 0 : i32
    %c0_i32_1 = arith.constant 0 : i32
    return %c0_i32, %c0_i32_0 : i32, i32
  }
}

module attributes {stable_mosaic.version = 11 : i64} {
  func.func @_convt_tanh_kernel(%arg0: i32, %arg1: memref<8x256xbf16, #tpu.memory_space<vmem>>, %arg2: memref<256x1280xbf16, #tpu.memory_space<vmem>>, %arg3: memref<1x1xf32, #tpu.memory_space<vmem>>, %arg4: memref<1x1280xf32, #tpu.memory_space<vmem>>) attributes {dimension_semantics = [#tpu.dimension_semantics<arbitrary>], iteration_bounds = array<i64: 1>, scalar_prefetch = 0 : i64, scratch_operands = 0 : i64, tpu.core_type = #tpu.core_type<tc>, window_params = [{pipeline_mode = #tpu.pipeline_mode<synchronous>, transform_indices = @transform_0, window_bounds = array<i64: 8, 256>}, {pipeline_mode = #tpu.pipeline_mode<synchronous>, transform_indices = @transform_1, window_bounds = array<i64: 256, 1280>}, {pipeline_mode = #tpu.pipeline_mode<synchronous>, transform_indices = @transform_2, window_bounds = array<i64: 1, 1>}, {pipeline_mode = #tpu.pipeline_mode<synchronous>, transform_indices = @transform_3, window_bounds = array<i64: 1, 1280>}]} {
    %c0 = arith.constant 0 : index
    %c0_0 = arith.constant 0 : index
    %0 = vector.load %arg1[%c0, %c0_0] : memref<8x256xbf16, #tpu.memory_space<vmem>>, vector<8x256xbf16>
    %c0_1 = arith.constant 0 : index
    %c0_2 = arith.constant 0 : index
    %1 = vector.load %arg2[%c0_1, %c0_2] : memref<256x1280xbf16, #tpu.memory_space<vmem>>, vector<256x1280xbf16>
    %cst = arith.constant dense<0.000000e+00> : vector<8x1280xf32>
    %2 = tpu.matmul %0, %1, %cst {dimension_numbers = #tpu.dot_dimension_numbers<[1], [0], [0], [1], [0, 0, 1, 1], [], []>} : vector<8x256xbf16>, vector<256x1280xbf16>, vector<8x1280xf32> -> vector<8x1280xf32>
    %3 = vector.extract_strided_slice %2 {offsets = [0, 0], sizes = [1, 1280], strides = [1, 1]} : vector<8x1280xf32> to vector<1x1280xf32>
    %c0_3 = arith.constant 0 : index
    %c0_4 = arith.constant 0 : index
    %4 = vector.load %arg3[%c0_3, %c0_4] : memref<1x1xf32, #tpu.memory_space<vmem>>, vector<1x1xf32>
    %5 = vector.broadcast %4 : vector<1x1xf32> to vector<1x1280xf32>
    %6 = arith.addf %3, %5 : vector<1x1280xf32>
    %7 = math.tanh %6 : vector<1x1280xf32>
    %c0_5 = arith.constant 0 : index
    %c0_6 = arith.constant 0 : index
    %8 = vector.load %arg4[%c0_5, %c0_6] : memref<1x1280xf32, #tpu.memory_space<vmem>>, vector<1x1280xf32>
    tpu.vector_store %arg4[%c0_5, %c0_6], %7 {strides = array<i32>} : memref<1x1280xf32, #tpu.memory_space<vmem>>, vector<1x1280xf32>,
    return
  }
  func.func @transform_0(%arg0: i32) -> (i32, i32) {
    %c0_i32 = arith.constant 0 : i32
    %c0_i32_0 = arith.constant 0 : i32
    %c0_i32_1 = arith.constant 0 : i32
    return %c0_i32, %c0_i32_0 : i32, i32
  }
  func.func @transform_1(%arg0: i32) -> (i32, i32) {
    %c0_i32 = arith.constant 0 : i32
    %c0_i32_0 = arith.constant 0 : i32
    %c0_i32_1 = arith.constant 0 : i32
    return %c0_i32, %c0_i32_0 : i32, i32
  }
  func.func @transform_2(%arg0: i32) -> (i32, i32) {
    %c0_i32 = arith.constant 0 : i32
    %c0_i32_0 = arith.constant 0 : i32
    %c0_i32_1 = arith.constant 0 : i32
    return %c0_i32, %c0_i32_0 : i32, i32
  }
  func.func @transform_3(%arg0: i32) -> (i32, i32) {
    %c0_i32 = arith.constant 0 : i32
    %c0_i32_0 = arith.constant 0 : i32
    %c0_i32_1 = arith.constant 0 : i32
    return %c0_i32, %c0_i32_0 : i32, i32
  }
}

</mosaic_0001>

<llo_original>
// kernel: generator_forward.4
$region0: #{generator_forward.4}
  #allocation0 [shape = 'u32[]', space=smem, size = 0x4, offset = 0x4, fixed_abs, tag = 'smem constant byte address 0x4 - core index']
  #allocation1 [shape = 'u32[144,128]{1,0:T(1,128)}', space=vmem, size = 0x12000, scoped, tag = 'internal scratch']
  %s0 = inlined_call_operand.hbm [shape: bf16[64,1152], index: 0, kind: input, shape index: {}]
  %s1 = inlined_call_operand.vmem [shape: bf16[1152,128], index: 1, kind: input, shape index: {}]
  %s2 = inlined_call_operand.vmem [shape: f32[64,1], index: 2, kind: input, shape index: {}]
  %s3 = inlined_call_operand.vmem [shape: f32[64,1], index: 3, kind: input, shape index: {}]
  %s4 = inlined_call_operand.vmem [shape: bf16[64,128], index: 4, kind: output, shape index: {}]
  %s5 = sld [smem:[#allocation0]]
  $region30: #{generator_forward.4} parent=0
    _
  %s7 = ssub.s32 1, %s5
  %s8 = scalar_select 0, %s7, %s5
  $region1: #{generator_forward.4} parent=0
    #allocation2 [shape = 'u8[147456]{0}', space=vmem, size = 0x24000, scoped, tag = 'input window, operand 0, single buffered']
    #allocation3 [shape = 's32[1]{0}', space=sflag, size = 0x4, scoped, tag = 'scoped memory for generator_forward.4']
    %9 = vsyncpa [#allocation3], 0
    // Predicated region
    $region2: #{generator_forward.4} parent=1 // pred_check
      _
    $region3: #{generator_forward.4} parent=1 // pred_check_branch
      %11 = sbr.rel (0) target = $region5
    $region4: #{generator_forward.4} parent=1 // pred_region
      %s13 = ssub.s32 4608, 4608
      %14 = vsyncadd [#allocation3], %s13
      %s15 = sshll.u32 [#allocation2], 4
      %s16 = int_to_ptr.vmem [resolvable:$true] %s15
      %21 = dma.hbm_to_vmem [thread:$0]  %s0, 4608, %s16, [#allocation3], 576, 576, 36
    $region5: #{generator_forward.4} parent=1 // pred_fallthru
      _
    // Predicated region
    $region6: #{generator_forward.4} parent=1 // pred_check
      _
    $region7: #{generator_forward.4} parent=1 // pred_check_branch
      %23 = sbr.rel (0) target = $region9
    $region8: #{generator_forward.4} parent=1 // pred_region
      _
    $region9: #{generator_forward.4} parent=1 // pred_fallthru
      _
    // Predicated region
    $region10: #{generator_forward.4} parent=1 // pred_check
      _
    $region11: #{generator_forward.4} parent=1 // pred_check_branch
      %25 = sbr.rel (0) target = $region13
    $region12: #{generator_forward.4} parent=1 // pred_region
      _
    $region13: #{generator_forward.4} parent=1 // pred_fallthru
      _
    // Predicated region
    $region14: #{generator_forward.4} parent=1 // pred_check
      _
    $region15: #{generator_forward.4} parent=1 // pred_check_branch
      %27 = sbr.rel (0) target = $region17
    $region16: #{generator_forward.4} parent=1 // pred_region
      _
    $region17: #{generator_forward.4} parent=1 // pred_fallthru
      _
    // Predicated region
    $region18: #{generator_forward.4} parent=1 // pred_check
      _
    $region19: #{generator_forward.4} parent=1 // pred_check_branch
      %29 = sbr.rel (0) target = $region21
    $region20: #{generator_forward.4} parent=1 // pred_region
      %30 = dma.done [#allocation3], 4608
    $region21: #{generator_forward.4} parent=1 // pred_fallthru
      _
    %v32 = vld [vmem:[#allocation2] sm:$0xff]
    %v33 = vld [vmem:[#allocation2 + $0x8] sm:$0xff]
    %v34 = vld [vmem:[#allocation2 + $0x10] sm:$0xff]
    %v35 = vld [vmem:[#allocation2 + $0x18] sm:$0xff]
    %v36 = vld [vmem:[#allocation2 + $0x20] sm:$0xf]
    %v37 = vld [vmem:[#allocation2 + $0x24] sm:$0xff]
    %v38 = vld [vmem:[#allocation2 + $0x2c] sm:$0xff]
    %v39 = vld [vmem:[#allocation2 + $0x34] sm:$0xff]
    %v40 = vld [vmem:[#allocation2 + $0x3c] sm:$0xff]
    %v41 = vld [vmem:[#allocation2 + $0x44] sm:$0xf]
    %v42 = vld [vmem:[#allocation2 + $0x48] sm:$0xff]
    %v43 = vld [vmem:[#allocation2 + $0x50] sm:$0xff]
    %v44 = vld [vmem:[#allocation2 + $0x58] sm:$0xff]
    %v45 = vld [vmem:[#allocation2 + $0x60] sm:$0xff]
    %v46 = vld [vmem:[#allocation2 + $0x68] sm:$0xf]
    %v47 = vld [vmem:[#allocation2 + $0x6c] sm:$0xff]
    %v48 = vld [vmem:[#allocation2 + $0x74] sm:$0xff]
    %v49 = vld [vmem:[#allocation2 + $0x7c] sm:$0xff]
    %v50 = vld [vmem:[#allocation2 + $0x84] sm:$0xff]
    %v51 = vld [vmem:[#allocation2 + $0x8c] sm:$0xf]
    %v52 = vld [vmem:[#allocation2 + $0x90] sm:$0xff]
    %v53 = vld [vmem:[#allocation2 + $0x98] sm:$0xff]
    %v54 = vld [vmem:[#allocation2 + $0xa0] sm:$0xff]
    %v55 = vld [vmem:[#allocation2 + $0xa8] sm:$0xff]
    %v56 = vld [vmem:[#allocation2 + $0xb0] sm:$0xf]
    %v57 = vld [vmem:[#allocation2 + $0xb4] sm:$0xff]
    %v58 = vld [vmem:[#allocation2 + $0xbc] sm:$0xff]
    %v59 = vld [vmem:[#allocation2 + $0xc4] sm:$0xff]
    %v60 = vld [vmem:[#allocation2 + $0xcc] sm:$0xff]
    %v61 = vld [vmem:[#allocation2 + $0xd4] sm:$0xf]
    %v62 = vld [vmem:[#allocation2 + $0xd8] sm:$0xff]
    %v63 = vld [vmem:[#allocation2 + $0xe0] sm:$0xff]
    %v64 = vld [vmem:[#allocation2 + $0xe8] sm:$0xff]
    %v65 = vld [vmem:[#allocation2 + $0xf0] sm:$0xff]
    %v66 = vld [vmem:[#allocation2 + $0xf8] sm:$0xf]
    %v67 = vld [vmem:[#allocation2 + $0xfc] sm:$0xff]
    %v68 = vld [vmem:[#allocation2 + $0x104] sm:$0xff]
    %v69 = vld [vmem:[#allocation2 + $0x10c] sm:$0xff]
    %v70 = vld [vmem:[#allocation2 + $0x114] sm:$0xff]
    %v71 = vld [vmem:[#allocation2 + $0x11c] sm:$0xf]
    %v72 = vld [vmem:[%s1] sm:$0xf]
    %v73 = vld [vmem:[%s1 + $0x4] sm:$0xf]
    %v74 = vld [vmem:[%s1 + $0x8] sm:$0xf]
    %v75 = vld [vmem:[%s1 + $0xc] sm:$0xf]
    %v76 = vld [vmem:[%s1 + $0x10] sm:$0xf]
    %v77 = vld [vmem:[%s1 + $0x14] sm:$0xf]
    %v78 = vld [vmem:[%s1 + $0x18] sm:$0xf]
    %v79 = vld [vmem:[%s1 + $0x1c] sm:$0xf]
    %v80 = vld [vmem:[%s1 + $0x20] sm:$0xf]
    %v81 = vld [vmem:[%s1 + $0x24] sm:$0xf]
    %v82 = vld [vmem:[%s1 + $0x28] sm:$0xf]
    %v83 = vld [vmem:[%s1 + $0x2c] sm:$0xf]
    %v84 = vld [vmem:[%s1 + $0x30] sm:$0xf]
    %v85 = vld [vmem:[%s1 + $0x34] sm:$0xf]
    %v86 = vld [vmem:[%s1 + $0x38] sm:$0xf]
    %v87 = vld [vmem:[%s1 + $0x3c] sm:$0xf]
    %v88 = vld [vmem:[%s1 + $0x40] sm:$0xf]
    %v89 = vld [vmem:[%s1 + $0x44] sm:$0xf]
    %v90 = vld [vmem:[%s1 + $0x48] sm:$0xf]
    %v91 = vld [vmem:[%s1 + $0x4c] sm:$0xf]
    %v92 = vld [vmem:[%s1 + $0x50] sm:$0xf]
    %v93 = vld [vmem:[%s1 + $0x54] sm:$0xf]
    %v94 = vld [vmem:[%s1 + $0x58] sm:$0xf]
    %v95 = vld [vmem:[%s1 + $0x5c] sm:$0xf]
    %v96 = vld [vmem:[%s1 + $0x60] sm:$0xf]
    %v97 = vld [vmem:[%s1 + $0x64] sm:$0xf]
    %v98 = vld [vmem:[%s1 + $0x68] sm:$0xf]
    %v99 = vld [vmem:[%s1 + $0x6c] sm:$0xf]
    %v100 = vld [vmem:[%s1 + $0x70] sm:$0xf]
    %v101 = vld [vmem:[%s1 + $0x74] sm:$0xf]
    %v102 = vld [vmem:[%s1 + $0x78] sm:$0xf]
    %v103 = vld [vmem:[%s1 + $0x7c] sm:$0xf]
    %v104 = vld [vmem:[%s1 + $0x80] sm:$0xf]
    %v105 = vld [vmem:[%s1 + $0x84] sm:$0xf]
    %v106 = vld [vmem:[%s1 + $0x88] sm:$0xf]
    %v107 = vld [vmem:[%s1 + $0x8c] sm:$0xf]
    %v108 = vld [vmem:[%s1 + $0x90] sm:$0xf]
    %v109 = vld [vmem:[%s1 + $0x94] sm:$0xf]
    %v110 = vld [vmem:[%s1 + $0x98] sm:$0xf]
    %v111 = vld [vmem:[%s1 + $0x9c] sm:$0xf]
    %v112 = vld [vmem:[%s1 + $0xa0] sm:$0xf]
    %v113 = vld [vmem:[%s1 + $0xa4] sm:$0xf]
    %v114 = vld [vmem:[%s1 + $0xa8] sm:$0xf]
    %v115 = vld [vmem:[%s1 + $0xac] sm:$0xf]
    %v116 = vld [vmem:[%s1 + $0xb0] sm:$0xf]
    %v117 = vld [vmem:[%s1 + $0xb4] sm:$0xf]
    %v118 = vld [vmem:[%s1 + $0xb8] sm:$0xf]
    %v119 = vld [vmem:[%s1 + $0xbc] sm:$0xf]
    %v120 = vld [vmem:[%s1 + $0xc0] sm:$0xf]
    %v121 = vld [vmem:[%s1 + $0xc4] sm:$0xf]
    %v122 = vld [vmem:[%s1 + $0xc8] sm:$0xf]
    %v123 = vld [vmem:[%s1 + $0xcc] sm:$0xf]
    %v124 = vld [vmem:[%s1 + $0xd0] sm:$0xf]
    %v125 = vld [vmem:[%s1 + $0xd4] sm:$0xf]
    %v126 = vld [vmem:[%s1 + $0xd8] sm:$0xf]
    %v127 = vld [vmem:[%s1 + $0xdc] sm:$0xf]
    %v128 = vld [vmem:[%s1 + $0xe0] sm:$0xf]
    %v129 = vld [vmem:[%s1 + $0xe4] sm:$0xf]
    %v130 = vld [vmem:[%s1 + $0xe8] sm:$0xf]
    %v131 = vld [vmem:[%s1 + $0xec] sm:$0xf]
    %v132 = vld [vmem:[%s1 + $0xf0] sm:$0xf]
    %v133 = vld [vmem:[%s1 + $0xf4] sm:$0xf]
    %v134 = vld [vmem:[%s1 + $0xf8] sm:$0xf]
    %v135 = vld [vmem:[%s1 + $0xfc] sm:$0xf]
    %v136 = vld [vmem:[%s1 + $0x100] sm:$0xf]
    %v137 = vld [vmem:[%s1 + $0x104] sm:$0xf]
    %v138 = vld [vmem:[%s1 + $0x108] sm:$0xf]
    %v139 = vld [vmem:[%s1 + $0x10c] sm:$0xf]
    %v140 = vld [vmem:[%s1 + $0x110] sm:$0xf]
    %v141 = vld [vmem:[%s1 + $0x114] sm:$0xf]
    %v142 = vld [vmem:[%s1 + $0x118] sm:$0xf]
    %v143 = vld [vmem:[%s1 + $0x11c] sm:$0xf]
    %v144 = vld [vmem:[%s1 + $0x120] sm:$0xf]
    %v145 = vld [vmem:[%s1 + $0x124] sm:$0xf]
    %v146 = vld [vmem:[%s1 + $0x128] sm:$0xf]
    %v147 = vld [vmem:[%s1 + $0x12c] sm:$0xf]
    %v148 = vld [vmem:[%s1 + $0x130] sm:$0xf]
    %v149 = vld [vmem:[%s1 + $0x134] sm:$0xf]
    %v150 = vld [vmem:[%s1 + $0x138] sm:$0xf]
    %v151 = vld [vmem:[%s1 + $0x13c] sm:$0xf]
    %v152 = vld [vmem:[%s1 + $0x140] sm:$0xf]
    %v153 = vld [vmem:[%s1 + $0x144] sm:$0xf]
    %v154 = vld [vmem:[%s1 + $0x148] sm:$0xf]
    %v155 = vld [vmem:[%s1 + $0x14c] sm:$0xf]
    %v156 = vld [vmem:[%s1 + $0x150] sm:$0xf]
    %v157 = vld [vmem:[%s1 + $0x154] sm:$0xf]
    %v158 = vld [vmem:[%s1 + $0x158] sm:$0xf]
    %v159 = vld [vmem:[%s1 + $0x15c] sm:$0xf]
    %v160 = vld [vmem:[%s1 + $0x160] sm:$0xf]
    %v161 = vld [vmem:[%s1 + $0x164] sm:$0xf]
    %v162 = vld [vmem:[%s1 + $0x168] sm:$0xf]
    %v163 = vld [vmem:[%s1 + $0x16c] sm:$0xf]
    %v164 = vld [vmem:[%s1 + $0x170] sm:$0xf]
    %v165 = vld [vmem:[%s1 + $0x174] sm:$0xf]
    %v166 = vld [vmem:[%s1 + $0x178] sm:$0xf]
    %v167 = vld [vmem:[%s1 + $0x17c] sm:$0xf]
    %v168 = vld [vmem:[%s1 + $0x180] sm:$0xf]
    %v169 = vld [vmem:[%s1 + $0x184] sm:$0xf]
    %v170 = vld [vmem:[%s1 + $0x188] sm:$0xf]
    %v171 = vld [vmem:[%s1 + $0x18c] sm:$0xf]
    %v172 = vld [vmem:[%s1 + $0x190] sm:$0xf]
    %v173 = vld [vmem:[%s1 + $0x194] sm:$0xf]
    %v174 = vld [vmem:[%s1 + $0x198] sm:$0xf]
    %v175 = vld [vmem:[%s1 + $0x19c] sm:$0xf]
    %v176 = vld [vmem:[%s1 + $0x1a0] sm:$0xf]
    %v177 = vld [vmem:[%s1 + $0x1a4] sm:$0xf]
    %v178 = vld [vmem:[%s1 + $0x1a8] sm:$0xf]
    %v179 = vld [vmem:[%s1 + $0x1ac] sm:$0xf]
    %v180 = vld [vmem:[%s1 + $0x1b0] sm:$0xf]
    %v181 = vld [vmem:[%s1 + $0x1b4] sm:$0xf]
    %v182 = vld [vmem:[%s1 + $0x1b8] sm:$0xf]
    %v183 = vld [vmem:[%s1 + $0x1bc] sm:$0xf]
    %v184 = vld [vmem:[%s1 + $0x1c0] sm:$0xf]
    %v185 = vld [vmem:[%s1 + $0x1c4] sm:$0xf]
    %v186 = vld [vmem:[%s1 + $0x1c8] sm:$0xf]
    %v187 = vld [vmem:[%s1 + $0x1cc] sm:$0xf]
    %v188 = vld [vmem:[%s1 + $0x1d0] sm:$0xf]
    %v189 = vld [vmem:[%s1 + $0x1d4] sm:$0xf]
    %v190 = vld [vmem:[%s1 + $0x1d8] sm:$0xf]
    %v191 = vld [vmem:[%s1 + $0x1dc] sm:$0xf]
    %v192 = vld [vmem:[%s1 + $0x1e0] sm:$0xf]
    %v193 = vld [vmem:[%s1 + $0x1e4] sm:$0xf]
    %v194 = vld [vmem:[%s1 + $0x1e8] sm:$0xf]
    %v195 = vld [vmem:[%s1 + $0x1ec] sm:$0xf]
    %v196 = vld [vmem:[%s1 + $0x1f0] sm:$0xf]
    %v197 = vld [vmem:[%s1 + $0x1f4] sm:$0xf]
    %v198 = vld [vmem:[%s1 + $0x1f8] sm:$0xf]
    %v199 = vld [vmem:[%s1 + $0x1fc] sm:$0xf]
    %v200 = vld [vmem:[%s1 + $0x200] sm:$0xf]
    %v201 = vld [vmem:[%s1 + $0x204] sm:$0xf]
    %v202 = vld [vmem:[%s1 + $0x208] sm:$0xf]
    %v203 = vld [vmem:[%s1 + $0x20c] sm:$0xf]
    %v204 = vld [vmem:[%s1 + $0x210] sm:$0xf]
    %v205 = vld [vmem:[%s1 + $0x214] sm:$0xf]
    %v206 = vld [vmem:[%s1 + $0x218] sm:$0xf]
    %v207 = vld [vmem:[%s1 + $0x21c] sm:$0xf]
    %v208 = vld [vmem:[%s1 + $0x220] sm:$0xf]
    %v209 = vld [vmem:[%s1 + $0x224] sm:$0xf]
    %v210 = vld [vmem:[%s1 + $0x228] sm:$0xf]
    %v211 = vld [vmem:[%s1 + $0x22c] sm:$0xf]
    %v212 = vld [vmem:[%s1 + $0x230] sm:$0xf]
    %v213 = vld [vmem:[%s1 + $0x234] sm:$0xf]
    %v214 = vld [vmem:[%s1 + $0x238] sm:$0xf]
    %v215 = vld [vmem:[%s1 + $0x23c] sm:$0xf]
    %v256 = vunpack.c.l.b16 %v32
    %v257 = vunpack.c.h.b16 %v32
    %v258 = vunpack.c.l.b16 %v33
    %v259 = vunpack.c.h.b16 %v33
    %v260 = vunpack.c.l.b16 %v34
    %v261 = vunpack.c.h.b16 %v34
    %v262 = vunpack.c.l.b16 %v35
    %v263 = vunpack.c.h.b16 %v35
    %v264 = vunpack.c.l.b16 %v36
    %v265 = vunpack.c.l.b16 %v37
    %v266 = vunpack.c.h.b16 %v37
    %v267 = vunpack.c.l.b16 %v38
    %v268 = vunpack.c.h.b16 %v38
    %v269 = vunpack.c.l.b16 %v39
    %v270 = vunpack.c.h.b16 %v39
    %v271 = vunpack.c.l.b16 %v40
    %v272 = vunpack.c.h.b16 %v40
    %v273 = vunpack.c.l.b16 %v41
    %v274 = vunpack.c.l.b16 %v42
    %v275 = vunpack.c.h.b16 %v42
    %v276 = vunpack.c.l.b16 %v43
    %v277 = vunpack.c.h.b16 %v43
    %v278 = vunpack.c.l.b16 %v44
    %v279 = vunpack.c.h.b16 %v44
    %v280 = vunpack.c.l.b16 %v45
    %v281 = vunpack.c.h.b16 %v45
    %v282 = vunpack.c.l.b16 %v46
    %v283 = vunpack.c.l.b16 %v47
    %v284 = vunpack.c.h.b16 %v47
    %v285 = vunpack.c.l.b16 %v48
    %v286 = vunpack.c.h.b16 %v48
    %v287 = vunpack.c.l.b16 %v49
    %v288 = vunpack.c.h.b16 %v49
    %v289 = vunpack.c.l.b16 %v50
    %v290 = vunpack.c.h.b16 %v50
    %v291 = vunpack.c.l.b16 %v51
    %v292 = vunpack.c.l.b16 %v52
    %v293 = vunpack.c.h.b16 %v52
    %v294 = vunpack.c.l.b16 %v53
    %v295 = vunpack.c.h.b16 %v53
    %v296 = vunpack.c.l.b16 %v54
    %v297 = vunpack.c.h.b16 %v54
    %v298 = vunpack.c.l.b16 %v55
    %v299 = vunpack.c.h.b16 %v55
    %v300 = vunpack.c.l.b16 %v56
    %v301 = vunpack.c.l.b16 %v57
    %v302 = vunpack.c.h.b16 %v57
    %v303 = vunpack.c.l.b16 %v58
    %v304 = vunpack.c.h.b16 %v58
    %v305 = vunpack.c.l.b16 %v59
    %v306 = vunpack.c.h.b16 %v59
    %v307 = vunpack.c.l.b16 %v60
    %v308 = vunpack.c.h.b16 %v60
    %v309 = vunpack.c.l.b16 %v61
    %v310 = vunpack.c.l.b16 %v62
    %v311 = vunpack.c.h.b16 %v62
    %v312 = vunpack.c.l.b16 %v63
    %v313 = vunpack.c.h.b16 %v63
    %v314 = vunpack.c.l.b16 %v64
    %v315 = vunpack.c.h.b16 %v64
    %v316 = vunpack.c.l.b16 %v65
    %v317 = vunpack.c.h.b16 %v65
    %v318 = vunpack.c.l.b16 %v66
    %v319 = vunpack.c.l.b16 %v67
    %v320 = vunpack.c.h.b16 %v67
    %v321 = vunpack.c.l.b16 %v68
    %v322 = vunpack.c.h.b16 %v68
    %v323 = vunpack.c.l.b16 %v69
    %v324 = vunpack.c.h.b16 %v69
    %v325 = vunpack.c.l.b16 %v70
    %v326 = vunpack.c.h.b16 %v70
    %v327 = vunpack.c.l.b16 %v71
    %v328 = vpack.c.b16 %v265, %v256
    %v329 = vpack.c.b16 %v266, %v257
    %v330 = vpack.c.b16 %v267, %v258
    %v331 = vpack.c.b16 %v268, %v259
    %v332 = vpack.c.b16 %v269, %v260
    %v333 = vpack.c.b16 %v270, %v261
    %v334 = vpack.c.b16 %v271, %v262
    %v335 = vpack.c.b16 %v272, %v263
    %v336 = vpack.c.b16 %v273, %v264
    %v337 = vpack.c.b16 %v283, %v274
    %v338 = vpack.c.b16 %v284, %v275
    %v339 = vpack.c.b16 %v285, %v276
    %v340 = vpack.c.b16 %v286, %v277
    %v341 = vpack.c.b16 %v287, %v278
    %v342 = vpack.c.b16 %v288, %v279
    %v343 = vpack.c.b16 %v289, %v280
    %v344 = vpack.c.b16 %v290, %v281
    %v345 = vpack.c.b16 %v291, %v282
    %v346 = vpack.c.b16 %v301, %v292
    %v347 = vpack.c.b16 %v302, %v293
    %v348 = vpack.c.b16 %v303, %v294
    %v349 = vpack.c.b16 %v304, %v295
    %v350 = vpack.c.b16 %v305, %v296
    %v351 = vpack.c.b16 %v306, %v297
    %v352 = vpack.c.b16 %v307, %v298
    %v353 = vpack.c.b16 %v308, %v299
    %v354 = vpack.c.b16 %v309, %v300
    %v355 = vpack.c.b16 %v319, %v310
    %v356 = vpack.c.b16 %v320, %v311
    %v357 = vpack.c.b16 %v321, %v312
    %v358 = vpack.c.b16 %v322, %v313
    %v359 = vpack.c.b16 %v323, %v314
    %v360 = vpack.c.b16 %v324, %v315
    %v361 = vpack.c.b16 %v325, %v316
    %v362 = vpack.c.b16 %v326, %v317
    %v363 = vpack.c.b16 %v327, %v318
    %v544 = vunpack.c.l.b16 %v72
    %v545 = vunpack.c.l.b16 %v73
    %v546 = vunpack.c.l.b16 %v74
    %v547 = vunpack.c.l.b16 %v75
    %v548 = vunpack.c.l.b16 %v76
    %v549 = vunpack.c.l.b16 %v77
    %v550 = vunpack.c.l.b16 %v78
    %v551 = vunpack.c.l.b16 %v79
    %v552 = vunpack.c.l.b16 %v80
    %v553 = vunpack.c.l.b16 %v81
    %v554 = vunpack.c.l.b16 %v82
    %v555 = vunpack.c.l.b16 %v83
    %v556 = vunpack.c.l.b16 %v84
    %v557 = vunpack.c.l.b16 %v85
    %v558 = vunpack.c.l.b16 %v86
    %v559 = vunpack.c.l.b16 %v87
    %v560 = vunpack.c.l.b16 %v88
    %v561 = vunpack.c.l.b16 %v89
    %v562 = vunpack.c.l.b16 %v90
    %v563 = vunpack.c.l.b16 %v91
    %v564 = vunpack.c.l.b16 %v92
    %v565 = vunpack.c.l.b16 %v93
    %v566 = vunpack.c.l.b16 %v94
    %v567 = vunpack.c.l.b16 %v95
    %v568 = vunpack.c.l.b16 %v96
    %v569 = vunpack.c.l.b16 %v97
    %v570 = vunpack.c.l.b16 %v98
    %v571 = vunpack.c.l.b16 %v99
    %v572 = vunpack.c.l.b16 %v100
    %v573 = vunpack.c.l.b16 %v101
    %v574 = vunpack.c.l.b16 %v102
    %v575 = vunpack.c.l.b16 %v103
    %v576 = vunpack.c.l.b16 %v104
    %v577 = vunpack.c.l.b16 %v105
    %v578 = vunpack.c.l.b16 %v106
    %v579 = vunpack.c.l.b16 %v107
    %v580 = vunpack.c.l.b16 %v108
    %v581 = vunpack.c.l.b16 %v109
    %v582 = vunpack.c.l.b16 %v110
    %v583 = vunpack.c.l.b16 %v111
    %v584 = vunpack.c.l.b16 %v112
    %v585 = vunpack.c.l.b16 %v113
    %v586 = vunpack.c.l.b16 %v114
    %v587 = vunpack.c.l.b16 %v115
    %v588 = vunpack.c.l.b16 %v116
    %v589 = vunpack.c.l.b16 %v117
    %v590 = vunpack.c.l.b16 %v118
    %v591 = vunpack.c.l.b16 %v119
    %v592 = vunpack.c.l.b16 %v120
    %v593 = vunpack.c.l.b16 %v121
    %v594 = vunpack.c.l.b16 %v122
    %v595 = vunpack.c.l.b16 %v123
    %v596 = vunpack.c.l.b16 %v124
    %v597 = vunpack.c.l.b16 %v125
    %v598 = vunpack.c.l.b16 %v126
    %v599 = vunpack.c.l.b16 %v127
    %v600 = vunpack.c.l.b16 %v128
    %v601 = vunpack.c.l.b16 %v129
    %v602 = vunpack.c.l.b16 %v130
    %v603 = vunpack.c.l.b16 %v131
    %v604 = vunpack.c.l.b16 %v132
    %v605 = vunpack.c.l.b16 %v133
    %v606 = vunpack.c.l.b16 %v134
    %v607 = vunpack.c.l.b16 %v135
    %v608 = vunpack.c.l.b16 %v136
    %v609 = vunpack.c.l.b16 %v137
    %v610 = vunpack.c.l.b16 %v138
    %v611 = vunpack.c.l.b16 %v139
    %v612 = vunpack.c.l.b16 %v140
    %v613 = vunpack.c.l.b16 %v141
    %v614 = vunpack.c.l.b16 %v142
    %v615 = vunpack.c.l.b16 %v143
    %v616 = vunpack.c.l.b16 %v144
    %v617 = vunpack.c.l.b16 %v145
    %v618 = vunpack.c.l.b16 %v146
    %v619 = vunpack.c.l.b16 %v147
    %v620 = vunpack.c.l.b16 %v148
    %v621 = vunpack.c.l.b16 %v149
    %v622 = vunpack.c.l.b16 %v150
    %v623 = vunpack.c.l.b16 %v151
    %v624 = vunpack.c.l.b16 %v152
    %v625 = vunpack.c.l.b16 %v153
    %v626 = vunpack.c.l.b16 %v154
    %v627 = vunpack.c.l.b16 %v155
    %v628 = vunpack.c.l.b16 %v156
    %v629 = vunpack.c.l.b16 %v157
    %v630 = vunpack.c.l.b16 %v158
    %v631 = vunpack.c.l.b16 %v159
    %v632 = vunpack.c.l.b16 %v160
    %v633 = vunpack.c.l.b16 %v161
    %v634 = vunpack.c.l.b16 %v162
    %v635 = vunpack.c.l.b16 %v163
    %v636 = vunpack.c.l.b16 %v164
    %v637 = vunpack.c.l.b16 %v165
    %v638 = vunpack.c.l.b16 %v166
    %v639 = vunpack.c.l.b16 %v167
    %v640 = vunpack.c.l.b16 %v168
    %v641 = vunpack.c.l.b16 %v169
    %v642 = vunpack.c.l.b16 %v170
    %v643 = vunpack.c.l.b16 %v171
    %v644 = vunpack.c.l.b16 %v172
    %v645 = vunpack.c.l.b16 %v173
    %v646 = vunpack.c.l.b16 %v174
    %v647 = vunpack.c.l.b16 %v175
    %v648 = vunpack.c.l.b16 %v176
    %v649 = vunpack.c.l.b16 %v177
    %v650 = vunpack.c.l.b16 %v178
    %v651 = vunpack.c.l.b16 %v179
    %v652 = vunpack.c.l.b16 %v180
    %v653 = vunpack.c.l.b16 %v181
    %v654 = vunpack.c.l.b16 %v182
    %v655 = vunpack.c.l.b16 %v183
    %v656 = vunpack.c.l.b16 %v184
    %v657 = vunpack.c.l.b16 %v185
    %v658 = vunpack.c.l.b16 %v186
    %v659 = vunpack.c.l.b16 %v187
    %v660 = vunpack.c.l.b16 %v188
    %v661 = vunpack.c.l.b16 %v189
    %v662 = vunpack.c.l.b16 %v190
    %v663 = vunpack.c.l.b16 %v191
    %v664 = vunpack.c.l.b16 %v192
    %v665 = vunpack.c.l.b16 %v193
    %v666 = vunpack.c.l.b16 %v194
    %v667 = vunpack.c.l.b16 %v195
    %v668 = vunpack.c.l.b16 %v196
    %v669 = vunpack.c.l.b16 %v197
    %v670 = vunpack.c.l.b16 %v198
    %v671 = vunpack.c.l.b16 %v199
    %v672 = vunpack.c.l.b16 %v200
    %v673 = vunpack.c.l.b16 %v201
    %v674 = vunpack.c.l.b16 %v202
    %v675 = vunpack.c.l.b16 %v203
    %v676 = vunpack.c.l.b16 %v204
    %v677 = vunpack.c.l.b16 %v205
    %v678 = vunpack.c.l.b16 %v206
    %v679 = vunpack.c.l.b16 %v207
    %v680 = vunpack.c.l.b16 %v208
    %v681 = vunpack.c.l.b16 %v209
    %v682 = vunpack.c.l.b16 %v210
    %v683 = vunpack.c.l.b16 %v211
    %v684 = vunpack.c.l.b16 %v212
    %v685 = vunpack.c.l.b16 %v213
    %v686 = vunpack.c.l.b16 %v214
    %v687 = vunpack.c.l.b16 %v215
    %v688 = vpack.c.b16 %v545, %v544
    %v689 = vpack.c.b16 %v547, %v546
    %v690 = vpack.c.b16 %v549, %v548
    %v691 = vpack.c.b16 %v551, %v550
    %v692 = vpack.c.b16 %v553, %v552
    %v693 = vpack.c.b16 %v555, %v554
    %v694 = vpack.c.b16 %v557, %v556
    %v695 = vpack.c.b16 %v559, %v558
    %v696 = vpack.c.b16 %v561, %v560
    %v697 = vpack.c.b16 %v563, %v562
    %v698 = vpack.c.b16 %v565, %v564
    %v699 = vpack.c.b16 %v567, %v566
    %v700 = vpack.c.b16 %v569, %v568
    %v701 = vpack.c.b16 %v571, %v570
    %v702 = vpack.c.b16 %v573, %v572
    %v703 = vpack.c.b16 %v575, %v574
    %v704 = vpack.c.b16 %v577, %v576
    %v705 = vpack.c.b16 %v579, %v578
    %v706 = vpack.c.b16 %v581, %v580
    %v707 = vpack.c.b16 %v583, %v582
    %v708 = vpack.c.b16 %v585, %v584
    %v709 = vpack.c.b16 %v587, %v586
    %v710 = vpack.c.b16 %v589, %v588
    %v711 = vpack.c.b16 %v591, %v590
    %v712 = vpack.c.b16 %v593, %v592
    %v713 = vpack.c.b16 %v595, %v594
    %v714 = vpack.c.b16 %v597, %v596
    %v715 = vpack.c.b16 %v599, %v598
    %v716 = vpack.c.b16 %v601, %v600
    %v717 = vpack.c.b16 %v603, %v602
    %v718 = vpack.c.b16 %v605, %v604
    %v719 = vpack.c.b16 %v607, %v606
    %v720 = vpack.c.b16 %v609, %v608
    %v721 = vpack.c.b16 %v611, %v610
    %v722 = vpack.c.b16 %v613, %v612
    %v723 = vpack.c.b16 %v615, %v614
    %v724 = vpack.c.b16 %v617, %v616
    %v725 = vpack.c.b16 %v619, %v618
    %v726 = vpack.c.b16 %v621, %v620
    %v727 = vpack.c.b16 %v623, %v622
    %v728 = vpack.c.b16 %v625, %v624
    %v729 = vpack.c.b16 %v627, %v626
    %v730 = vpack.c.b16 %v629, %v628
    %v731 = vpack.c.b16 %v631, %v630
    %v732 = vpack.c.b16 %v633, %v632
    %v733 = vpack.c.b16 %v635, %v634
    %v734 = vpack.c.b16 %v637, %v636
    %v735 = vpack.c.b16 %v639, %v638
    %v736 = vpack.c.b16 %v641, %v640
    %v737 = vpack.c.b16 %v643, %v642
    %v738 = vpack.c.b16 %v645, %v644
    %v739 = vpack.c.b16 %v647, %v646
    %v740 = vpack.c.b16 %v649, %v648
    %v741 = vpack.c.b16 %v651, %v650
    %v742 = vpack.c.b16 %v653, %v652
    %v743 = vpack.c.b16 %v655, %v654
    %v744 = vpack.c.b16 %v657, %v656
    %v745 = vpack.c.b16 %v659, %v658
    %v746 = vpack.c.b16 %v661, %v660
    %v747 = vpack.c.b16 %v663, %v662
    %v748 = vpack.c.b16 %v665, %v664
    %v749 = vpack.c.b16 %v667, %v666
    %v750 = vpack.c.b16 %v669, %v668
    %v751 = vpack.c.b16 %v671, %v670
    %v752 = vpack.c.b16 %v673, %v672
    %v753 = vpack.c.b16 %v675, %v674
    %v754 = vpack.c.b16 %v677, %v676
    %v755 = vpack.c.b16 %v679, %v678
    %v756 = vpack.c.b16 %v681, %v680
    %v757 = vpack.c.b16 %v683, %v682
    %v758 = vpack.c.b16 %v685, %v684
    %v759 = vpack.c.b16 %v687, %v686
    %832 = vmatprep.subr.bf16.mxu0 0
    %833 = vmatpush1.bf16.msra.mxu0 %v688
    %834 = vmatprep.subr.bf16.mxu0 0
    %835 = vmatpush1.bf16.msra.mxu0 %v689
    %836 = vmatprep.subr.bf16.mxu0 0
    %837 = vmatpush1.bf16.msra.mxu0 %v690
    %838 = vmatprep.subr.bf16.mxu0 0
    %839 = vmatpush1.bf16.msra.mxu0 %v691
    %840 = vmatprep.subr.bf16.mxu0 0
    %841 = vmatpush1.bf16.msra.mxu0 %v692
    %842 = vmatprep.subr.bf16.mxu0 0
    %843 = vmatpush1.bf16.msra.mxu0 %v693
    %844 = vmatprep.subr.bf16.mxu0 0
    %845 = vmatpush1.bf16.msra.mxu0 %v694
    %846 = vmatprep.subr.bf16.mxu0 0
    %847 = vmatpush1.bf16.msra.mxu0 %v695
    %848 = vmatprep.subr.bf16.mxu0 0
    %849 = vmatpush1.bf16.msra.mxu0 %v696
    %850 = vmatprep.subr.bf16.mxu0 0
    %851 = vmatpush1.bf16.msra.mxu0 %v697
    %852 = vmatprep.subr.bf16.mxu0 0
    %853 = vmatpush1.bf16.msra.mxu0 %v698
    %854 = vmatprep.subr.bf16.mxu0 0
    %855 = vmatpush1.bf16.msra.mxu0 %v699
    %856 = vmatprep.subr.bf16.mxu0 0
    %857 = vmatpush1.bf16.msra.mxu0 %v700
    %858 = vmatprep.subr.bf16.mxu0 0
    %859 = vmatpush1.bf16.msra.mxu0 %v701
    %860 = vmatprep.subr.bf16.mxu0 0
    %861 = vmatpush1.bf16.msra.mxu0 %v702
    %862 = vmatprep.subr.bf16.mxu0 0
    %863 = vmatpush1.bf16.msra.mxu0 %v703
    %864 = vmatprep.mubr.bf16.mxu0 %v329
    %865 = vmatmul.mubr.bf16.gmra.mrb[0].mxu0 %v328
    %v866 = vpop.f32.mrb[0].mxu0
    %v867 = vadd.f32 0.0, %v866
    %v868 = vpop.f32.mrb[0].mxu0
    %v869 = vpop.f32.mrb[0].mxu0
    %v870 = vadd.f32 0.0, %v869
    %v871 = vpop.f32.mrb[0].mxu0
    %872 = vmatprep.mubr.bf16.mxu0 %v338
    %873 = vmatmul.mubr.bf16.gmra.mrb[0].mxu0 %v337
    %v874 = vpop.f32.mrb[0].mxu0
    %v875 = vadd.f32 0.0, %v874
    %v876 = vpop.f32.mrb[0].mxu0
    %v877 = vpop.f32.mrb[0].mxu0
    %v878 = vadd.f32 0.0, %v877
    %v879 = vpop.f32.mrb[0].mxu0
    %880 = vmatprep.mubr.bf16.mxu0 %v347
    %881 = vmatmul.mubr.bf16.gmra.mrb[0].mxu0 %v346
    %v882 = vpop.f32.mrb[0].mxu0
    %v883 = vadd.f32 0.0, %v882
    %v884 = vpop.f32.mrb[0].mxu0
    %v885 = vpop.f32.mrb[0].mxu0
    %v886 = vadd.f32 0.0, %v885
    %v887 = vpop.f32.mrb[0].mxu0
    %888 = vmatprep.mubr.bf16.mxu0 %v356
    %889 = vmatmul.mubr.bf16.gmra.mrb[0].mxu0 %v355
    %v890 = vpop.f32.mrb[0].mxu0
    %v891 = vadd.f32 0.0, %v890
    %v892 = vpop.f32.mrb[0].mxu0
    %v893 = vpop.f32.mrb[0].mxu0
    %v894 = vadd.f32 0.0, %v893
    %v895 = vpop.f32.mrb[0].mxu0
    %896 = vdwg.mxu0
    %897 = vmatprep.subr.bf16.mxu0 0
    %898 = vmatpush1.bf16.msra.mxu0 %v704
    %899 = vmatprep.subr.bf16.mxu0 0
    %900 = vmatpush1.bf16.msra.mxu0 %v705
    %901 = vmatprep.subr.bf16.mxu0 0
    %902 = vmatpush1.bf16.msra.mxu0 %v706
    %903 = vmatprep.subr.bf16.mxu0 0
    %904 = vmatpush1.bf16.msra.mxu0 %v707
    %905 = vmatprep.subr.bf16.mxu0 0
    %906 = vmatpush1.bf16.msra.mxu0 %v708
    %907 = vmatprep.subr.bf16.mxu0 0
    %908 = vmatpush1.bf16.msra.mxu0 %v709
    %909 = vmatprep.subr.bf16.mxu0 0
    %910 = vmatpush1.bf16.msra.mxu0 %v710
    %911 = vmatprep.subr.bf16.mxu0 0
    %912 = vmatpush1.bf16.msra.mxu0 %v711
    %913 = vmatprep.subr.bf16.mxu0 0
    %914 = vmatpush1.bf16.msra.mxu0 %v712
    %915 = vmatprep.subr.bf16.mxu0 0
    %916 = vmatpush1.bf16.msra.mxu0 %v713
    %917 = vmatprep.subr.bf16.mxu0 0
    %918 = vmatpush1.bf16.msra.mxu0 %v714
    %919 = vmatprep.subr.bf16.mxu0 0
    %920 = vmatpush1.bf16.msra.mxu0 %v715
    %921 = vmatprep.subr.bf16.mxu0 0
    %922 = vmatpush1.bf16.msra.mxu0 %v716
    %923 = vmatprep.subr.bf16.mxu0 0
    %924 = vmatpush1.bf16.msra.mxu0 %v717
    %925 = vmatprep.subr.bf16.mxu0 0
    %926 = vmatpush1.bf16.msra.mxu0 %v718
    %927 = vmatprep.subr.bf16.mxu0 0
    %928 = vmatpush1.bf16.msra.mxu0 %v719
    %929 = vmatprep.mubr.bf16.mxu0 %v331
    %930 = vmatmul.mubr.bf16.gmra.mrb[0].mxu0 %v330
    %v931 = vpop.f32.mrb[0].mxu0
    %v932 = vadd.f32 %v867, %v931
    %v933 = vpop.f32.mrb[0].mxu0
    %v934 = vpop.f32.mrb[0].mxu0
    %v935 = vadd.f32 %v870, %v934
    %v936 = vpop.f32.mrb[0].mxu0
    %937 = vmatprep.mubr.bf16.mxu0 %v340
    %938 = vmatmul.mubr.bf16.gmra.mrb[0].mxu0 %v339
    %v939 = vpop.f32.mrb[0].mxu0
    %v940 = vadd.f32 %v875, %v939
    %v941 = vpop.f32.mrb[0].mxu0
    %v942 = vpop.f32.mrb[0].mxu0
    %v943 = vadd.f32 %v878, %v942
    %v944 = vpop.f32.mrb[0].mxu0
    %945 = vmatprep.mubr.bf16.mxu0 %v349
    %946 = vmatmul.mubr.bf16.gmra.mrb[0].mxu0 %v348
    %v947 = vpop.f32.mrb[0].mxu0
    %v948 = vadd.f32 %v883, %v947
    %v949 = vpop.f32.mrb[0].mxu0
    %v950 = vpop.f32.mrb[0].mxu0
    %v951 = vadd.f32 %v886, %v950
    %v952 = vpop.f32.mrb[0].mxu0
    %953 = vmatprep.mubr.bf16.mxu0 %v358
    %954 = vmatmul.mubr.bf16.gmra.mrb[0].mxu0 %v357
    %v955 = vpop.f32.mrb[0].mxu0
    %v956 = vadd.f32 %v891, %v955
    %v957 = vpop.f32.mrb[0].mxu0
    %v958 = vpop.f32.mrb[0].mxu0
    %v959 = vadd.f32 %v894, %v958
    %v960 = vpop.f32.mrb[0].mxu0
    %961 = vdwg.mxu0
    %962 = vmatprep.subr.bf16.mxu0 0
    %963 = vmatpush1.bf16.msra.mxu0 %v720
    %964 = vmatprep.subr.bf16.mxu0 0
    %965 = vmatpush1.bf16.msra.mxu0 %v721
    %966 = vmatprep.subr.bf16.mxu0 0
    %967 = vmatpush1.bf16.msra.mxu0 %v722
    %968 = vmatprep.subr.bf16.mxu0 0
    %969 = vmatpush1.bf16.msra.mxu0 %v723
    %970 = vmatprep.subr.bf16.mxu0 0
    %971 = vmatpush1.bf16.msra.mxu0 %v724
    %972 = vmatprep.subr.bf16.mxu0 0
    %973 = vmatpush1.bf16.msra.mxu0 %v725
    %974 = vmatprep.subr.bf16.mxu0 0
    %975 = vmatpush1.bf16.msra.mxu0 %v726
    %976 = vmatprep.subr.bf16.mxu0 0
    %977 = vmatpush1.bf16.msra.mxu0 %v727
    %978 = vmatprep.subr.bf16.mxu0 0
    %979 = vmatpush1.bf16.msra.mxu0 %v728
    %980 = vmatprep.subr.bf16.mxu0 0
    %981 = vmatpush1.bf16.msra.mxu0 %v729
    %982 = vmatprep.subr.bf16.mxu0 0
    %983 = vmatpush1.bf16.msra.mxu0 %v730
    %984 = vmatprep.subr.bf16.mxu0 0
    %985 = vmatpush1.bf16.msra.mxu0 %v731
    %986 = vmatprep.subr.bf16.mxu0 0
    %987 = vmatpush1.bf16.msra.mxu0 %v732
    %988 = vmatprep.subr.bf16.mxu0 0
    %989 = vmatpush1.bf16.msra.mxu0 %v733
    %990 = vmatprep.subr.bf16.mxu0 0
    %991 = vmatpush1.bf16.msra.mxu0 %v734
    %992 = vmatprep.subr.bf16.mxu0 0
    %993 = vmatpush1.bf16.msra.mxu0 %v735
    %994 = vmatprep.mubr.bf16.mxu0 %v333
    %995 = vmatmul.mubr.bf16.gmra.mrb[0].mxu0 %v332
    %v996 = vpop.f32.mrb[0].mxu0
    %v997 = vadd.f32 %v932, %v996
    %v998 = vpop.f32.mrb[0].mxu0
    %v999 = vpop.f32.mrb[0].mxu0
    %v1000 = vadd.f32 %v935, %v999
    %v1001 = vpop.f32.mrb[0].mxu0
    %1002 = vmatprep.mubr.bf16.mxu0 %v342
    %1003 = vmatmul.mubr.bf16.gmra.mrb[0].mxu0 %v341
    %v1004 = vpop.f32.mrb[0].mxu0
    %v1005 = vadd.f32 %v940, %v1004
    %v1006 = vpop.f32.mrb[0].mxu0
    %v1007 = vpop.f32.mrb[0].mxu0
    %v1008 = vadd.f32 %v943, %v1007
    %v1009 = vpop.f32.mrb[0].mxu0
    %1010 = vmatprep.mubr.bf16.mxu0 %v351
    %1011 = vmatmul.mubr.bf16.gmra.mrb[0].mxu0 %v350
    %v1012 = vpop.f32.mrb[0].mxu0
    %v1013 = vadd.f32 %v948, %v1012
    %v1014 = vpop.f32.mrb[0].mxu0
    %v1015 = vpop.f32.mrb[0].mxu0
    %v1016 = vadd.f32 %v951, %v1015
    %v1017 = vpop.f32.mrb[0].mxu0
    %1018 = vmatprep.mubr.bf16.mxu0 %v360
    %1019 = vmatmul.mubr.bf16.gmra.mrb[0].mxu0 %v359
    %v1020 = vpop.f32.mrb[0].mxu0
    %v1021 = vadd.f32 %v956, %v1020
    %v1022 = vpop.f32.mrb[0].mxu0
    %v1023 = vpop.f32.mrb[0].mxu0
    %v1024 = vadd.f32 %v959, %v1023
    %v1025 = vpop.f32.mrb[0].mxu0
    %1026 = vdwg.mxu0
    %1027 = vmatprep.subr.bf16.mxu0 0
    %1028 = vmatpush1.bf16.msra.mxu0 %v736
    %1029 = vmatprep.subr.bf16.mxu0 0
    %1030 = vmatpush1.bf16.msra.mxu0 %v737
    %1031 = vmatprep.subr.bf16.mxu0 0
    %1032 = vmatpush1.bf16.msra.mxu0 %v738
    %1033 = vmatprep.subr.bf16.mxu0 0
    %1034 = vmatpush1.bf16.msra.mxu0 %v739
    %1035 = vmatprep.subr.bf16.mxu0 0
    %1036 = vmatpush1.bf16.msra.mxu0 %v740
    %1037 = vmatprep.subr.bf16.mxu0 0
    %1038 = vmatpush1.bf16.msra.mxu0 %v741
    %1039 = vmatprep.subr.bf16.mxu0 0
    %1040 = vmatpush1.bf16.msra.mxu0 %v742
    %1041 = vmatprep.subr.bf16.mxu0 0
    %1042 = vmatpush1.bf16.msra.mxu0 %v743
    %1043 = vmatprep.subr.bf16.mxu0 0
    %1044 = vmatpush1.bf16.msra.mxu0 %v744
    %1045 = vmatprep.subr.bf16.mxu0 0
    %1046 = vmatpush1.bf16.msra.mxu0 %v745
    %1047 = vmatprep.subr.bf16.mxu0 0
    %1048 = vmatpush1.bf16.msra.mxu0 %v746
    %1049 = vmatprep.subr.bf16.mxu0 0
    %1050 = vmatpush1.bf16.msra.mxu0 %v747
    %1051 = vmatprep.subr.bf16.mxu0 0
    %1052 = vmatpush1.bf16.msra.mxu0 %v748
    %1053 = vmatprep.subr.bf16.mxu0 0
    %1054 = vmatpush1.bf16.msra.mxu0 %v749
    %1055 = vmatprep.subr.bf16.mxu0 0
    %1056 = vmatpush1.bf16.msra.mxu0 %v750
    %1057 = vmatprep.subr.bf16.mxu0 0
    %1058 = vmatpush1.bf16.msra.mxu0 %v751
    %1059 = vmatprep.mubr.bf16.mxu0 %v335
    %1060 = vmatmul.mubr.bf16.gmra.mrb[0].mxu0 %v334
    %v1061 = vpop.f32.mrb[0].mxu0
    %v1062 = vadd.f32 %v997, %v1061
    %v1063 = vpop.f32.mrb[0].mxu0
    %v1064 = vpop.f32.mrb[0].mxu0
    %v1065 = vadd.f32 %v1000, %v1064
    %v1066 = vpop.f32.mrb[0].mxu0
    %1067 = vmatprep.mubr.bf16.mxu0 %v344
    %1068 = vmatmul.mubr.bf16.gmra.mrb[0].mxu0 %v343
    %v1069 = vpop.f32.mrb[0].mxu0
    %v1070 = vadd.f32 %v1005, %v1069
    %v1071 = vpop.f32.mrb[0].mxu0
    %v1072 = vpop.f32.mrb[0].mxu0
    %v1073 = vadd.f32 %v1008, %v1072
    %v1074 = vpop.f32.mrb[0].mxu0
    %1075 = vmatprep.mubr.bf16.mxu0 %v353
    %1076 = vmatmul.mubr.bf16.gmra.mrb[0].mxu0 %v352
    %v1077 = vpop.f32.mrb[0].mxu0
    %v1078 = vadd.f32 %v1013, %v1077
    %v1079 = vpop.f32.mrb[0].mxu0
    %v1080 = vpop.f32.mrb[0].mxu0
    %v1081 = vadd.f32 %v1016, %v1080
    %v1082 = vpop.f32.mrb[0].mxu0
    %1083 = vmatprep.mubr.bf16.mxu0 %v362
    %1084 = vmatmul.mubr.bf16.gmra.mrb[0].mxu0 %v361
    %v1085 = vpop.f32.mrb[0].mxu0
    %v1086 = vadd.f32 %v1021, %v1085
    %v1087 = vpop.f32.mrb[0].mxu0
    %v1088 = vpop.f32.mrb[0].mxu0
    %v1089 = vadd.f32 %v1024, %v1088
    %v1090 = vpop.f32.mrb[0].mxu0
    %1091 = vdwg.mxu0
    %1092 = vmatprep.subr.bf16.mxu0 0
    %1093 = vmatpush1.bf16.msra.mxu0 %v752
    %1094 = vmatprep.subr.bf16.mxu0 0
    %1095 = vmatpush1.bf16.msra.mxu0 %v753
    %1096 = vmatprep.subr.bf16.mxu0 0
    %1097 = vmatpush1.bf16.msra.mxu0 %v754
    %1098 = vmatprep.subr.bf16.mxu0 0
    %1099 = vmatpush1.bf16.msra.mxu0 %v755
    %1100 = vmatprep.subr.bf16.mxu0 0
    %1101 = vmatpush1.bf16.msra.mxu0 %v756
    %1102 = vmatprep.subr.bf16.mxu0 0
    %1103 = vmatpush1.bf16.msra.mxu0 %v757
    %1104 = vmatprep.subr.bf16.mxu0 0
    %1105 = vmatpush1.bf16.msra.mxu0 %v758
    %1106 = vmatprep.subr.bf16.mxu0 0
    %1107 = vmatpush1.bf16.msra.mxu0 %v759
    %1108 = vmatprep.subr.bf16.mxu0 0
    %1109 = vmatpush1.bf16.msra.mxu0 0
    %1110 = vmatprep.subr.bf16.mxu0 0
    %1111 = vmatpush1.bf16.msra.mxu0 0
    %1112 = vmatprep.subr.bf16.mxu0 0
    %1113 = vmatpush1.bf16.msra.mxu0 0
    %1114 = vmatprep.subr.bf16.mxu0 0
    %1115 = vmatpush1.bf16.msra.mxu0 0
    %1116 = vmatprep.subr.bf16.mxu0 0
    %1117 = vmatpush1.bf16.msra.mxu0 0
    %1118 = vmatprep.subr.bf16.mxu0 0
    %1119 = vmatpush1.bf16.msra.mxu0 0
    %1120 = vmatprep.subr.bf16.mxu0 0
    %1121 = vmatpush1.bf16.msra.mxu0 0
    %1122 = vmatprep.subr.bf16.mxu0 0
    %1123 = vmatpush1.bf16.msra.mxu0 0
    %1124 = vmatprep.mubr.bf16.mxu0 0
    %1125 = vmatmul.mubr.bf16.gmra.mrb[0].mxu0 %v336
    %v1126 = vpop.f32.mrb[0].mxu0
    %v1127 = vadd.f32 %v1062, %v1126
    %v1128 = vpop.f32.mrb[0].mxu0
    %v1129 = vpop.f32.mrb[0].mxu0
    %v1130 = vadd.f32 %v1065, %v1129
    %v1131 = vpop.f32.mrb[0].mxu0
    %1132 = vmatprep.mubr.bf16.mxu0 0
    %1133 = vmatmul.mubr.bf16.gmra.mrb[0].mxu0 %v345
    %v1134 = vpop.f32.mrb[0].mxu0
    %v1135 = vadd.f32 %v1070, %v1134
    %v1136 = vpop.f32.mrb[0].mxu0
    %v1137 = vpop.f32.mrb[0].mxu0
    %v1138 = vadd.f32 %v1073, %v1137
    %v1139 = vpop.f32.mrb[0].mxu0
    %1140 = vmatprep.mubr.bf16.mxu0 0
    %1141 = vmatmul.mubr.bf16.gmra.mrb[0].mxu0 %v354
    %v1142 = vpop.f32.mrb[0].mxu0
    %v1143 = vadd.f32 %v1078, %v1142
    %v1144 = vpop.f32.mrb[0].mxu0
    %v1145 = vpop.f32.mrb[0].mxu0
    %v1146 = vadd.f32 %v1081, %v1145
    %v1147 = vpop.f32.mrb[0].mxu0
    %1148 = vmatprep.mubr.bf16.mxu0 0
    %1149 = vmatmul.mubr.bf16.gmra.mrb[0].mxu0 %v363
    %v1150 = vpop.f32.mrb[0].mxu0
    %v1151 = vadd.f32 %v1086, %v1150
    %v1152 = vpop.f32.mrb[0].mxu0
    %v1153 = vpop.f32.mrb[0].mxu0
    %v1154 = vadd.f32 %v1089, %v1153
    %v1155 = vpop.f32.mrb[0].mxu0
    %1156 = vdwg.mxu0
    %1157 = vadd.xlane.f32.xlu0 %v1127
    %v1158 = vpop.xlane.xlu0 %1157
    %1159 = vadd.xlane.f32.xlu0 %v1130
    %v1160 = vpop.xlane.xlu0 %1159
    %1161 = vadd.xlane.f32.xlu0 %v1135
    %v1162 = vpop.xlane.xlu0 %1161
    %1163 = vadd.xlane.f32.xlu0 %v1138
    %v1164 = vpop.xlane.xlu0 %1163
    %1165 = vadd.xlane.f32.xlu0 %v1143
    %v1166 = vpop.xlane.xlu0 %1165
    %1167 = vadd.xlane.f32.xlu0 %v1146
    %v1168 = vpop.xlane.xlu0 %1167
    %1169 = vadd.xlane.f32.xlu0 %v1151
    %v1170 = vpop.xlane.xlu0 %1169
    %1171 = vadd.xlane.f32.xlu0 %v1154
    %v1172 = vpop.xlane.xlu0 %1171
    %v1173 = vmul.f32 %v1158, 0.03125
    %v1174 = vmul.f32 %v1160, 0.03125
    %v1175 = vmul.f32 %v1162, 0.03125
    %v1176 = vmul.f32 %v1164, 0.03125
    %v1177 = vmul.f32 %v1166, 0.03125
    %v1178 = vmul.f32 %v1168, 0.03125
    %v1179 = vmul.f32 %v1170, 0.03125
    %v1180 = vmul.f32 %v1172, 0.03125
    %v1181 = vmul.f32 %v1127, %v1127
    %v1182 = vmul.f32 %v1130, %v1130
    %v1183 = vmul.f32 %v1135, %v1135
    %v1184 = vmul.f32 %v1138, %v1138
    %v1185 = vmul.f32 %v1143, %v1143
    %v1186 = vmul.f32 %v1146, %v1146
    %v1187 = vmul.f32 %v1151, %v1151
    %v1188 = vmul.f32 %v1154, %v1154
    %1189 = vadd.xlane.f32.xlu0 %v1181
    %v1190 = vpop.xlane.xlu0 %1189
    %1191 = vadd.xlane.f32.xlu0 %v1182
    %v1192 = vpop.xlane.xlu0 %1191
    %1193 = vadd.xlane.f32.xlu0 %v1183
    %v1194 = vpop.xlane.xlu0 %1193
    %1195 = vadd.xlane.f32.xlu0 %v1184
    %v1196 = vpop.xlane.xlu0 %1195
    %1197 = vadd.xlane.f32.xlu0 %v1185
    %v1198 = vpop.xlane.xlu0 %1197
    %1199 = vadd.xlane.f32.xlu0 %v1186
    %v1200 = vpop.xlane.xlu0 %1199
    %1201 = vadd.xlane.f32.xlu0 %v1187
    %v1202 = vpop.xlane.xlu0 %1201
    %1203 = vadd.xlane.f32.xlu0 %v1188
    %v1204 = vpop.xlane.xlu0 %1203
    %v1205 = vmul.f32 %v1190, 0.03125
    %v1206 = vmul.f32 %v1192, 0.03125
    %v1207 = vmul.f32 %v1194, 0.03125
    %v1208 = vmul.f32 %v1196, 0.03125
    %v1209 = vmul.f32 %v1198, 0.03125
    %v1210 = vmul.f32 %v1200, 0.03125
    %v1211 = vmul.f32 %v1202, 0.03125
    %v1212 = vmul.f32 %v1204, 0.03125
    %v1213 = vmul.f32 %v1173, %v1173
    %v1214 = vmul.f32 %v1174, %v1174
    %v1215 = vmul.f32 %v1175, %v1175
    %v1216 = vmul.f32 %v1176, %v1176
    %v1217 = vmul.f32 %v1177, %v1177
    %v1218 = vmul.f32 %v1178, %v1178
    %v1219 = vmul.f32 %v1179, %v1179
    %v1220 = vmul.f32 %v1180, %v1180
    %v1221 = vsub.f32 %v1205, %v1213
    %v1222 = vsub.f32 %v1206, %v1214
    %v1223 = vsub.f32 %v1207, %v1215
    %v1224 = vsub.f32 %v1208, %v1216
    %v1225 = vsub.f32 %v1209, %v1217
    %v1226 = vsub.f32 %v1210, %v1218
    %v1227 = vsub.f32 %v1211, %v1219
    %v1228 = vsub.f32 %v1212, %v1220
    %v1229 = vmax.f32 %v1221, 0.0
    %v1230 = vmax.f32 %v1222, 0.0
    %v1231 = vmax.f32 %v1223, 0.0
    %v1232 = vmax.f32 %v1224, 0.0
    %v1233 = vmax.f32 %v1225, 0.0
    %v1234 = vmax.f32 %v1226, 0.0
    %v1235 = vmax.f32 %v1227, 0.0
    %v1236 = vmax.f32 %v1228, 0.0
    %v1237 = vadd.f32 %v1229, 1e-05
    %v1238 = vadd.f32 %v1230, 1e-05
    %v1239 = vadd.f32 %v1231, 1e-05
    %v1240 = vadd.f32 %v1232, 1e-05
    %v1241 = vadd.f32 %v1233, 1e-05
    %v1242 = vadd.f32 %v1234, 1e-05
    %v1243 = vadd.f32 %v1235, 1e-05
    %v1244 = vadd.f32 %v1236, 1e-05
    %v1245 = vrsqrt.pop %v1237
    %v1246 = vrsqrt.pop %v1238
    %v1247 = vrsqrt.pop %v1239
    %v1248 = vrsqrt.pop %v1240
    %v1249 = vrsqrt.pop %v1241
    %v1250 = vrsqrt.pop %v1242
    %v1251 = vrsqrt.pop %v1243
    %v1252 = vrsqrt.pop %v1244
    %v1253 = vld [vmem:[%s2] sm:$0xff]
    %v1254 = vld [vmem:[%s2 + $0x8] sm:$0xff]
    %v1255 = vld [vmem:[%s2 + $0x10] sm:$0xff]
    %v1256 = vld [vmem:[%s2 + $0x18] sm:$0xff]
    %v1257 = vld [vmem:[%s2 + $0x20] sm:$0xff]
    %v1258 = vld [vmem:[%s2 + $0x28] sm:$0xff]
    %v1259 = vld [vmem:[%s2 + $0x30] sm:$0xff]
    %v1260 = vld [vmem:[%s2 + $0x38] sm:$0xff]
    %v1261 = vmul.f32 %v1245, %v1253
    %v1262 = vmul.f32 %v1246, %v1254
    %v1263 = vmul.f32 %v1247, %v1255
    %v1264 = vmul.f32 %v1248, %v1256
    %v1265 = vmul.f32 %v1249, %v1257
    %v1266 = vmul.f32 %v1250, %v1258
    %v1267 = vmul.f32 %v1251, %v1259
    %v1268 = vmul.f32 %v1252, %v1260
    %v1269 = vsub.f32 %v1127, %v1173
    %v1270 = vsub.f32 %v1130, %v1174
    %v1271 = vsub.f32 %v1135, %v1175
    %v1272 = vsub.f32 %v1138, %v1176
    %v1273 = vsub.f32 %v1143, %v1177
    %v1274 = vsub.f32 %v1146, %v1178
    %v1275 = vsub.f32 %v1151, %v1179
    %v1276 = vsub.f32 %v1154, %v1180
    %1278 = vset.pattern.permute.xlu0 0
    %1279 = vperm.xlu0 %1278, %v1261
    %v1280 = vpop.permute.xlu0 %1279
    %1283 = vset.pattern.permute.xlu0 0
    %1284 = vperm.xlu0 %1283, %v1262
    %v1285 = vpop.permute.xlu0 %1284
    %1288 = vset.pattern.permute.xlu0 0
    %1289 = vperm.xlu0 %1288, %v1263
    %v1290 = vpop.permute.xlu0 %1289
    %1293 = vset.pattern.permute.xlu0 0
    %1294 = vperm.xlu0 %1293, %v1264
    %v1295 = vpop.permute.xlu0 %1294
    %1298 = vset.pattern.permute.xlu0 0
    %1299 = vperm.xlu0 %1298, %v1265
    %v1300 = vpop.permute.xlu0 %1299
    %1303 = vset.pattern.permute.xlu0 0
    %1304 = vperm.xlu0 %1303, %v1266
    %v1305 = vpop.permute.xlu0 %1304
    %1308 = vset.pattern.permute.xlu0 0
    %1309 = vperm.xlu0 %1308, %v1267
    %v1310 = vpop.permute.xlu0 %1309
    %1313 = vset.pattern.permute.xlu0 0
    %1314 = vperm.xlu0 %1313, %v1268
    %v1315 = vpop.permute.xlu0 %1314
    %v1317 = vmul.f32 %v1269, %v1280
    %v1318 = vmul.f32 %v1270, %v1285
    %v1319 = vmul.f32 %v1271, %v1290
    %v1320 = vmul.f32 %v1272, %v1295
    %v1321 = vmul.f32 %v1273, %v1300
    %v1322 = vmul.f32 %v1274, %v1305
    %v1323 = vmul.f32 %v1275, %v1310
    %v1324 = vmul.f32 %v1276, %v1315
    %v1325 = vld [vmem:[%s3] sm:$0xff]
    %v1326 = vld [vmem:[%s3 + $0x8] sm:$0xff]
    %v1327 = vld [vmem:[%s3 + $0x10] sm:$0xff]
    %v1328 = vld [vmem:[%s3 + $0x18] sm:$0xff]
    %v1329 = vld [vmem:[%s3 + $0x20] sm:$0xff]
    %v1330 = vld [vmem:[%s3 + $0x28] sm:$0xff]
    %v1331 = vld [vmem:[%s3 + $0x30] sm:$0xff]
    %v1332 = vld [vmem:[%s3 + $0x38] sm:$0xff]
    %1334 = vset.pattern.permute.xlu0 0
    %1335 = vperm.xlu0 %1334, %v1325
    %v1336 = vpop.permute.xlu0 %1335
    %1339 = vset.pattern.permute.xlu0 0
    %1340 = vperm.xlu0 %1339, %v1326
    %v1341 = vpop.permute.xlu0 %1340
    %1344 = vset.pattern.permute.xlu0 0
    %1345 = vperm.xlu0 %1344, %v1327
    %v1346 = vpop.permute.xlu0 %1345
    %1349 = vset.pattern.permute.xlu0 0
    %1350 = vperm.xlu0 %1349, %v1328
    %v1351 = vpop.permute.xlu0 %1350
    %1354 = vset.pattern.permute.xlu0 0
    %1355 = vperm.xlu0 %1354, %v1329
    %v1356 = vpop.permute.xlu0 %1355
    %1359 = vset.pattern.permute.xlu0 0
    %1360 = vperm.xlu0 %1359, %v1330
    %v1361 = vpop.permute.xlu0 %1360
    %1364 = vset.pattern.permute.xlu0 0
    %1365 = vperm.xlu0 %1364, %v1331
    %v1366 = vpop.permute.xlu0 %1365
    %1369 = vset.pattern.permute.xlu0 0
    %1370 = vperm.xlu0 %1369, %v1332
    %v1371 = vpop.permute.xlu0 %1370
    %v1373 = vadd.f32 %v1317, %v1336
    %v1374 = vadd.f32 %v1318, %v1341
    %v1375 = vadd.f32 %v1319, %v1346
    %v1376 = vadd.f32 %v1320, %v1351
    %v1377 = vadd.f32 %v1321, %v1356
    %v1378 = vadd.f32 %v1322, %v1361
    %v1379 = vadd.f32 %v1323, %v1366
    %v1380 = vadd.f32 %v1324, %v1371
    %v1381 = vmax.f32 %v1373, 0.0
    %v1382 = vmax.f32 %v1374, 0.0
    %v1383 = vmax.f32 %v1375, 0.0
    %v1384 = vmax.f32 %v1376, 0.0
    %v1385 = vmax.f32 %v1377, 0.0
    %v1386 = vmax.f32 %v1378, 0.0
    %v1387 = vmax.f32 %v1379, 0.0
    %v1388 = vmax.f32 %v1380, 0.0
    %v1389 = vpack.c.bf16 %v1382, %v1381
    %v1390 = vpack.c.bf16 %v1384, %v1383
    %v1391 = vpack.c.bf16 %v1386, %v1385
    %v1392 = vpack.c.bf16 %v1388, %v1387
    %v1397 = vunpack.c.l.b16 %v1389
    %v1398 = vunpack.c.h.b16 %v1389
    %v1399 = vunpack.c.l.b16 %v1390
    %v1400 = vunpack.c.h.b16 %v1390
    %v1401 = vunpack.c.l.b16 %v1391
    %v1402 = vunpack.c.h.b16 %v1391
    %v1403 = vunpack.c.l.b16 %v1392
    %v1404 = vunpack.c.h.b16 %v1392
    %v1405 = vpack.c.b16 %v1397, %v1397
    %v1406 = vpack.c.b16 %v1398, %v1398
    %v1407 = vpack.c.b16 %v1399, %v1399
    %v1408 = vpack.c.b16 %v1400, %v1400
    %v1409 = vpack.c.b16 %v1401, %v1401
    %v1410 = vpack.c.b16 %v1402, %v1402
    %v1411 = vpack.c.b16 %v1403, %v1403
    %v1412 = vpack.c.b16 %v1404, %v1404
    %1421 = vst [vmem:[%s4] sm:$0xf] %v1405
    %1422 = vst [vmem:[%s4 + $0x4] sm:$0xf] %v1406
    %1423 = vst [vmem:[%s4 + $0x8] sm:$0xf] %v1407
    %1424 = vst [vmem:[%s4 + $0xc] sm:$0xf] %v1408
    %1425 = vst [vmem:[%s4 + $0x10] sm:$0xf] %v1409
    %1426 = vst [vmem:[%s4 + $0x14] sm:$0xf] %v1410
    %1427 = vst [vmem:[%s4 + $0x18] sm:$0xf] %v1411
    %1428 = vst [vmem:[%s4 + $0x1c] sm:$0xf] %v1412
    // Predicated region
    $region22: #{generator_forward.4} parent=1 // pred_check
      _
    $region23: #{generator_forward.4} parent=1 // pred_check_branch
      %1430 = sbr.rel (0) target = $region25
    $region24: #{generator_forward.4} parent=1 // pred_region
      _
    $region25: #{generator_forward.4} parent=1 // pred_fallthru
      _
    // Predicated region
    $region26: #{generator_forward.4} parent=1 // pred_check
      _
    $region27: #{generator_forward.4} parent=1 // pred_check_branch
      %1432 = sbr.rel (0) target = $region29
    $region28: #{generator_forward.4} parent=1 // pred_region
      _
    $region29: #{generator_forward.4} parent=1 // pred_fallthru
      _
    %1433 = vsyncpa [#allocation3], 1

// kernel: generator_forward.5
$region0: #{generator_forward.5}
  #allocation0 [shape = 'u32[]', space=smem, size = 0x4, offset = 0x4, fixed_abs, tag = 'smem constant byte address 0x4 - core index']
  #allocation1 [shape = 'u32[144,128]{1,0:T(1,128)}', space=vmem, size = 0x12000, scoped, tag = 'internal scratch']
  %s0 = inlined_call_operand.vmem [shape: bf16[32,1024], index: 0, kind: input, shape index: {}]
  %s1 = inlined_call_operand.vmem [shape: bf16[1024,256], index: 1, kind: input, shape index: {}]
  %s2 = inlined_call_operand.vmem [shape: f32[32,1], index: 2, kind: input, shape index: {}]
  %s3 = inlined_call_operand.vmem [shape: f32[32,1], index: 3, kind: input, shape index: {}]
  %s4 = inlined_call_operand.vmem [shape: bf16[32,256], index: 4, kind: output, shape index: {}]
  %s5 = sld [smem:[#allocation0]]
  $region26: #{generator_forward.5} parent=0
    _
  %s7 = ssub.s32 1, %s5
  %s8 = scalar_select 0, %s7, %s5
  // Predicated region
  $region2: #{generator_forward.5} parent=0 // pred_check
    _
  $region3: #{generator_forward.5} parent=0 // pred_check_branch
    %10 = sbr.rel (0) target = $region5
  $region4: #{generator_forward.5} parent=0 // pred_region
    _
  $region5: #{generator_forward.5} parent=0 // pred_fallthru
    _
  // Predicated region
  $region6: #{generator_forward.5} parent=0 // pred_check
    _
  $region7: #{generator_forward.5} parent=0 // pred_check_branch
    %12 = sbr.rel (0) target = $region9
  $region8: #{generator_forward.5} parent=0 // pred_region
    _
  $region9: #{generator_forward.5} parent=0 // pred_fallthru
    _
  // Predicated region
  $region10: #{generator_forward.5} parent=0 // pred_check
    _
  $region11: #{generator_forward.5} parent=0 // pred_check_branch
    %14 = sbr.rel (0) target = $region13
  $region12: #{generator_forward.5} parent=0 // pred_region
    _
  $region13: #{generator_forward.5} parent=0 // pred_fallthru
    _
  // Predicated region
  $region14: #{generator_forward.5} parent=0 // pred_check
    _
  $region15: #{generator_forward.5} parent=0 // pred_check_branch
    %16 = sbr.rel (0) target = $region17
  $region16: #{generator_forward.5} parent=0 // pred_region
    _
  $region17: #{generator_forward.5} parent=0 // pred_fallthru
    _
  %v17 = vld [vmem:[%s0] sm:$0xff]
  %v18 = vld [vmem:[%s0 + $0x8] sm:$0xff]
  %v19 = vld [vmem:[%s0 + $0x10] sm:$0xff]
  %v20 = vld [vmem:[%s0 + $0x18] sm:$0xff]
  %v21 = vld [vmem:[%s0 + $0x20] sm:$0xff]
  %v22 = vld [vmem:[%s0 + $0x28] sm:$0xff]
  %v23 = vld [vmem:[%s0 + $0x30] sm:$0xff]
  %v24 = vld [vmem:[%s0 + $0x38] sm:$0xff]
  %v25 = vld [vmem:[%s0 + $0x40] sm:$0xff]
  %v26 = vld [vmem:[%s0 + $0x48] sm:$0xff]
  %v27 = vld [vmem:[%s0 + $0x50] sm:$0xff]
  %v28 = vld [vmem:[%s0 + $0x58] sm:$0xff]
  %v29 = vld [vmem:[%s0 + $0x60] sm:$0xff]
  %v30 = vld [vmem:[%s0 + $0x68] sm:$0xff]
  %v31 = vld [vmem:[%s0 + $0x70] sm:$0xff]
  %v32 = vld [vmem:[%s0 + $0x78] sm:$0xff]
  %v33 = vld [vmem:[%s1] sm:$0xff]
  %v34 = vld [vmem:[%s1 + $0x8] sm:$0xff]
  %v35 = vld [vmem:[%s1 + $0x10] sm:$0xff]
  %v36 = vld [vmem:[%s1 + $0x18] sm:$0xff]
  %v37 = vld [vmem:[%s1 + $0x20] sm:$0xff]
  %v38 = vld [vmem:[%s1 + $0x28] sm:$0xff]
  %v39 = vld [vmem:[%s1 + $0x30] sm:$0xff]
  %v40 = vld [vmem:[%s1 + $0x38] sm:$0xff]
  %v41 = vld [vmem:[%s1 + $0x40] sm:$0xff]
  %v42 = vld [vmem:[%s1 + $0x48] sm:$0xff]
  %v43 = vld [vmem:[%s1 + $0x50] sm:$0xff]
  %v44 = vld [vmem:[%s1 + $0x58] sm:$0xff]
  %v45 = vld [vmem:[%s1 + $0x60] sm:$0xff]
  %v46 = vld [vmem:[%s1 + $0x68] sm:$0xff]
  %v47 = vld [vmem:[%s1 + $0x70] sm:$0xff]
  %v48 = vld [vmem:[%s1 + $0x78] sm:$0xff]
  %v49 = vld [vmem:[%s1 + $0x80] sm:$0xff]
  %v50 = vld [vmem:[%s1 + $0x88] sm:$0xff]
  %v51 = vld [vmem:[%s1 + $0x90] sm:$0xff]
  %v52 = vld [vmem:[%s1 + $0x98] sm:$0xff]
  %v53 = vld [vmem:[%s1 + $0xa0] sm:$0xff]
  %v54 = vld [vmem:[%s1 + $0xa8] sm:$0xff]
  %v55 = vld [vmem:[%s1 + $0xb0] sm:$0xff]
  %v56 = vld [vmem:[%s1 + $0xb8] sm:$0xff]
  %v57 = vld [vmem:[%s1 + $0xc0] sm:$0xff]
  %v58 = vld [vmem:[%s1 + $0xc8] sm:$0xff]
  %v59 = vld [vmem:[%s1 + $0xd0] sm:$0xff]
  %v60 = vld [vmem:[%s1 + $0xd8] sm:$0xff]
  %v61 = vld [vmem:[%s1 + $0xe0] sm:$0xff]
  %v62 = vld [vmem:[%s1 + $0xe8] sm:$0xff]
  %v63 = vld [vmem:[%s1 + $0xf0] sm:$0xff]
  %v64 = vld [vmem:[%s1 + $0xf8] sm:$0xff]
  %v65 = vld [vmem:[%s1 + $0x100] sm:$0xff]
  %v66 = vld [vmem:[%s1 + $0x108] sm:$0xff]
  %v67 = vld [vmem:[%s1 + $0x110] sm:$0xff]
  %v68 = vld [vmem:[%s1 + $0x118] sm:$0xff]
  %v69 = vld [vmem:[%s1 + $0x120] sm:$0xff]
  %v70 = vld [vmem:[%s1 + $0x128] sm:$0xff]
  %v71 = vld [vmem:[%s1 + $0x130] sm:$0xff]
  %v72 = vld [vmem:[%s1 + $0x138] sm:$0xff]
  %v73 = vld [vmem:[%s1 + $0x140] sm:$0xff]
  %v74 = vld [vmem:[%s1 + $0x148] sm:$0xff]
  %v75 = vld [vmem:[%s1 + $0x150] sm:$0xff]
  %v76 = vld [vmem:[%s1 + $0x158] sm:$0xff]
  %v77 = vld [vmem:[%s1 + $0x160] sm:$0xff]
  %v78 = vld [vmem:[%s1 + $0x168] sm:$0xff]
  %v79 = vld [vmem:[%s1 + $0x170] sm:$0xff]
  %v80 = vld [vmem:[%s1 + $0x178] sm:$0xff]
  %v81 = vld [vmem:[%s1 + $0x180] sm:$0xff]
  %v82 = vld [vmem:[%s1 + $0x188] sm:$0xff]
  %v83 = vld [vmem:[%s1 + $0x190] sm:$0xff]
  %v84 = vld [vmem:[%s1 + $0x198] sm:$0xff]
  %v85 = vld [vmem:[%s1 + $0x1a0] sm:$0xff]
  %v86 = vld [vmem:[%s1 + $0x1a8] sm:$0xff]
  %v87 = vld [vmem:[%s1 + $0x1b0] sm:$0xff]
  %v88 = vld [vmem:[%s1 + $0x1b8] sm:$0xff]
  %v89 = vld [vmem:[%s1 + $0x1c0] sm:$0xff]
  %v90 = vld [vmem:[%s1 + $0x1c8] sm:$0xff]
  %v91 = vld [vmem:[%s1 + $0x1d0] sm:$0xff]
  %v92 = vld [vmem:[%s1 + $0x1d8] sm:$0xff]
  %v93 = vld [vmem:[%s1 + $0x1e0] sm:$0xff]
  %v94 = vld [vmem:[%s1 + $0x1e8] sm:$0xff]
  %v95 = vld [vmem:[%s1 + $0x1f0] sm:$0xff]
  %v96 = vld [vmem:[%s1 + $0x1f8] sm:$0xff]
  %v97 = vld [vmem:[%s1 + $0x200] sm:$0xff]
  %v98 = vld [vmem:[%s1 + $0x208] sm:$0xff]
  %v99 = vld [vmem:[%s1 + $0x210] sm:$0xff]
  %v100 = vld [vmem:[%s1 + $0x218] sm:$0xff]
  %v101 = vld [vmem:[%s1 + $0x220] sm:$0xff]
  %v102 = vld [vmem:[%s1 + $0x228] sm:$0xff]
  %v103 = vld [vmem:[%s1 + $0x230] sm:$0xff]
  %v104 = vld [vmem:[%s1 + $0x238] sm:$0xff]
  %v105 = vld [vmem:[%s1 + $0x240] sm:$0xff]
  %v106 = vld [vmem:[%s1 + $0x248] sm:$0xff]
  %v107 = vld [vmem:[%s1 + $0x250] sm:$0xff]
  %v108 = vld [vmem:[%s1 + $0x258] sm:$0xff]
  %v109 = vld [vmem:[%s1 + $0x260] sm:$0xff]
  %v110 = vld [vmem:[%s1 + $0x268] sm:$0xff]
  %v111 = vld [vmem:[%s1 + $0x270] sm:$0xff]
  %v112 = vld [vmem:[%s1 + $0x278] sm:$0xff]
  %v113 = vld [vmem:[%s1 + $0x280] sm:$0xff]
  %v114 = vld [vmem:[%s1 + $0x288] sm:$0xff]
  %v115 = vld [vmem:[%s1 + $0x290] sm:$0xff]
  %v116 = vld [vmem:[%s1 + $0x298] sm:$0xff]
  %v117 = vld [vmem:[%s1 + $0x2a0] sm:$0xff]
  %v118 = vld [vmem:[%s1 + $0x2a8] sm:$0xff]
  %v119 = vld [vmem:[%s1 + $0x2b0] sm:$0xff]
  %v120 = vld [vmem:[%s1 + $0x2b8] sm:$0xff]
  %v121 = vld [vmem:[%s1 + $0x2c0] sm:$0xff]
  %v122 = vld [vmem:[%s1 + $0x2c8] sm:$0xff]
  %v123 = vld [vmem:[%s1 + $0x2d0] sm:$0xff]
  %v124 = vld [vmem:[%s1 + $0x2d8] sm:$0xff]
  %v125 = vld [vmem:[%s1 + $0x2e0] sm:$0xff]
  %v126 = vld [vmem:[%s1 + $0x2e8] sm:$0xff]
  %v127 = vld [vmem:[%s1 + $0x2f0] sm:$0xff]
  %v128 = vld [vmem:[%s1 + $0x2f8] sm:$0xff]
  %v129 = vld [vmem:[%s1 + $0x300] sm:$0xff]
  %v130 = vld [vmem:[%s1 + $0x308] sm:$0xff]
  %v131 = vld [vmem:[%s1 + $0x310] sm:$0xff]
  %v132 = vld [vmem:[%s1 + $0x318] sm:$0xff]
  %v133 = vld [vmem:[%s1 + $0x320] sm:$0xff]
  %v134 = vld [vmem:[%s1 + $0x328] sm:$0xff]
  %v135 = vld [vmem:[%s1 + $0x330] sm:$0xff]
  %v136 = vld [vmem:[%s1 + $0x338] sm:$0xff]
  %v137 = vld [vmem:[%s1 + $0x340] sm:$0xff]
  %v138 = vld [vmem:[%s1 + $0x348] sm:$0xff]
  %v139 = vld [vmem:[%s1 + $0x350] sm:$0xff]
  %v140 = vld [vmem:[%s1 + $0x358] sm:$0xff]
  %v141 = vld [vmem:[%s1 + $0x360] sm:$0xff]
  %v142 = vld [vmem:[%s1 + $0x368] sm:$0xff]
  %v143 = vld [vmem:[%s1 + $0x370] sm:$0xff]
  %v144 = vld [vmem:[%s1 + $0x378] sm:$0xff]
  %v145 = vld [vmem:[%s1 + $0x380] sm:$0xff]
  %v146 = vld [vmem:[%s1 + $0x388] sm:$0xff]
  %v147 = vld [vmem:[%s1 + $0x390] sm:$0xff]
  %v148 = vld [vmem:[%s1 + $0x398] sm:$0xff]
  %v149 = vld [vmem:[%s1 + $0x3a0] sm:$0xff]
  %v150 = vld [vmem:[%s1 + $0x3a8] sm:$0xff]
  %v151 = vld [vmem:[%s1 + $0x3b0] sm:$0xff]
  %v152 = vld [vmem:[%s1 + $0x3b8] sm:$0xff]
  %v153 = vld [vmem:[%s1 + $0x3c0] sm:$0xff]
  %v154 = vld [vmem:[%s1 + $0x3c8] sm:$0xff]
  %v155 = vld [vmem:[%s1 + $0x3d0] sm:$0xff]
  %v156 = vld [vmem:[%s1 + $0x3d8] sm:$0xff]
  %v157 = vld [vmem:[%s1 + $0x3e0] sm:$0xff]
  %v158 = vld [vmem:[%s1 + $0x3e8] sm:$0xff]
  %v159 = vld [vmem:[%s1 + $0x3f0] sm:$0xff]
  %v160 = vld [vmem:[%s1 + $0x3f8] sm:$0xff]
  %v177 = vunpack.c.l.b16 %v17
  %v178 = vunpack.c.h.b16 %v17
  %v179 = vunpack.c.l.b16 %v18
  %v180 = vunpack.c.h.b16 %v18
  %v181 = vunpack.c.l.b16 %v19
  %v182 = vunpack.c.h.b16 %v19
  %v183 = vunpack.c.l.b16 %v20
  %v184 = vunpack.c.h.b16 %v20
  %v185 = vunpack.c.l.b16 %v21
  %v186 = vunpack.c.h.b16 %v21
  %v187 = vunpack.c.l.b16 %v22
  %v188 = vunpack.c.h.b16 %v22
  %v189 = vunpack.c.l.b16 %v23
  %v190 = vunpack.c.h.b16 %v23
  %v191 = vunpack.c.l.b16 %v24
  %v192 = vunpack.c.h.b16 %v24
  %v193 = vunpack.c.l.b16 %v25
  %v194 = vunpack.c.h.b16 %v25
  %v195 = vunpack.c.l.b16 %v26
  %v196 = vunpack.c.h.b16 %v26
  %v197 = vunpack.c.l.b16 %v27
  %v198 = vunpack.c.h.b16 %v27
  %v199 = vunpack.c.l.b16 %v28
  %v200 = vunpack.c.h.b16 %v28
  %v201 = vunpack.c.l.b16 %v29
  %v202 = vunpack.c.h.b16 %v29
  %v203 = vunpack.c.l.b16 %v30
  %v204 = vunpack.c.h.b16 %v30
  %v205 = vunpack.c.l.b16 %v31
  %v206 = vunpack.c.h.b16 %v31
  %v207 = vunpack.c.l.b16 %v32
  %v208 = vunpack.c.h.b16 %v32
  %v209 = vpack.c.b16 %v185, %v177
  %v210 = vpack.c.b16 %v186, %v178
  %v211 = vpack.c.b16 %v187, %v179
  %v212 = vpack.c.b16 %v188, %v180
  %v213 = vpack.c.b16 %v189, %v181
  %v214 = vpack.c.b16 %v190, %v182
  %v215 = vpack.c.b16 %v191, %v183
  %v216 = vpack.c.b16 %v192, %v184
  %v217 = vpack.c.b16 %v201, %v193
  %v218 = vpack.c.b16 %v202, %v194
  %v219 = vpack.c.b16 %v203, %v195
  %v220 = vpack.c.b16 %v204, %v196
  %v221 = vpack.c.b16 %v205, %v197
  %v222 = vpack.c.b16 %v206, %v198
  %v223 = vpack.c.b16 %v207, %v199
  %v224 = vpack.c.b16 %v208, %v200
  %v369 = vunpack.c.l.b16 %v33
  %v370 = vunpack.c.h.b16 %v33
  %v371 = vunpack.c.l.b16 %v34
  %v372 = vunpack.c.h.b16 %v34
  %v373 = vunpack.c.l.b16 %v35
  %v374 = vunpack.c.h.b16 %v35
  %v375 = vunpack.c.l.b16 %v36
  %v376 = vunpack.c.h.b16 %v36
  %v377 = vunpack.c.l.b16 %v37
  %v378 = vunpack.c.h.b16 %v37
  %v379 = vunpack.c.l.b16 %v38
  %v380 = vunpack.c.h.b16 %v38
  %v381 = vunpack.c.l.b16 %v39
  %v382 = vunpack.c.h.b16 %v39
  %v383 = vunpack.c.l.b16 %v40
  %v384 = vunpack.c.h.b16 %v40
  %v385 = vunpack.c.l.b16 %v41
  %v386 = vunpack.c.h.b16 %v41
  %v387 = vunpack.c.l.b16 %v42
  %v388 = vunpack.c.h.b16 %v42
  %v389 = vunpack.c.l.b16 %v43
  %v390 = vunpack.c.h.b16 %v43
  %v391 = vunpack.c.l.b16 %v44
  %v392 = vunpack.c.h.b16 %v44
  %v393 = vunpack.c.l.b16 %v45
  %v394 = vunpack.c.h.b16 %v45
  %v395 = vunpack.c.l.b16 %v46
  %v396 = vunpack.c.h.b16 %v46
  %v397 = vunpack.c.l.b16 %v47
  %v398 = vunpack.c.h.b16 %v47
  %v399 = vunpack.c.l.b16 %v48
  %v400 = vunpack.c.h.b16 %v48
  %v401 = vunpack.c.l.b16 %v49
  %v402 = vunpack.c.h.b16 %v49
  %v403 = vunpack.c.l.b16 %v50
  %v404 = vunpack.c.h.b16 %v50
  %v405 = vunpack.c.l.b16 %v51
  %v406 = vunpack.c.h.b16 %v51
  %v407 = vunpack.c.l.b16 %v52
  %v408 = vunpack.c.h.b16 %v52
  %v409 = vunpack.c.l.b16 %v53
  %v410 = vunpack.c.h.b16 %v53
  %v411 = vunpack.c.l.b16 %v54
  %v412 = vunpack.c.h.b16 %v54
  %v413 = vunpack.c.l.b16 %v55
  %v414 = vunpack.c.h.b16 %v55
  %v415 = vunpack.c.l.b16 %v56
  %v416 = vunpack.c.h.b16 %v56
  %v417 = vunpack.c.l.b16 %v57
  %v418 = vunpack.c.h.b16 %v57
  %v419 = vunpack.c.l.b16 %v58
  %v420 = vunpack.c.h.b16 %v58
  %v421 = vunpack.c.l.b16 %v59
  %v422 = vunpack.c.h.b16 %v59
  %v423 = vunpack.c.l.b16 %v60
  %v424 = vunpack.c.h.b16 %v60
  %v425 = vunpack.c.l.b16 %v61
  %v426 = vunpack.c.h.b16 %v61
  %v427 = vunpack.c.l.b16 %v62
  %v428 = vunpack.c.h.b16 %v62
  %v429 = vunpack.c.l.b16 %v63
  %v430 = vunpack.c.h.b16 %v63
  %v431 = vunpack.c.l.b16 %v64
  %v432 = vunpack.c.h.b16 %v64
  %v433 = vunpack.c.l.b16 %v65
  %v434 = vunpack.c.h.b16 %v65
  %v435 = vunpack.c.l.b16 %v66
  %v436 = vunpack.c.h.b16 %v66
  %v437 = vunpack.c.l.b16 %v67
  %v438 = vunpack.c.h.b16 %v67
  %v439 = vunpack.c.l.b16 %v68
  %v440 = vunpack.c.h.b16 %v68
  %v441 = vunpack.c.l.b16 %v69
  %v442 = vunpack.c.h.b16 %v69
  %v443 = vunpack.c.l.b16 %v70
  %v444 = vunpack.c.h.b16 %v70
  %v445 = vunpack.c.l.b16 %v71
  %v446 = vunpack.c.h.b16 %v71
  %v447 = vunpack.c.l.b16 %v72
  %v448 = vunpack.c.h.b16 %v72
  %v449 = vunpack.c.l.b16 %v73
  %v450 = vunpack.c.h.b16 %v73
  %v451 = vunpack.c.l.b16 %v74
  %v452 = vunpack.c.h.b16 %v74
  %v453 = vunpack.c.l.b16 %v75
  %v454 = vunpack.c.h.b16 %v75
  %v455 = vunpack.c.l.b16 %v76
  %v456 = vunpack.c.h.b16 %v76
  %v457 = vunpack.c.l.b16 %v77
  %v458 = vunpack.c.h.b16 %v77
  %v459 = vunpack.c.l.b16 %v78
  %v460 = vunpack.c.h.b16 %v78
  %v461 = vunpack.c.l.b16 %v79
  %v462 = vunpack.c.h.b16 %v79
  %v463 = vunpack.c.l.b16 %v80
  %v464 = vunpack.c.h.b16 %v80
  %v465 = vunpack.c.l.b16 %v81
  %v466 = vunpack.c.h.b16 %v81
  %v467 = vunpack.c.l.b16 %v82
  %v468 = vunpack.c.h.b16 %v82
  %v469 = vunpack.c.l.b16 %v83
  %v470 = vunpack.c.h.b16 %v83
  %v471 = vunpack.c.l.b16 %v84
  %v472 = vunpack.c.h.b16 %v84
  %v473 = vunpack.c.l.b16 %v85
  %v474 = vunpack.c.h.b16 %v85
  %v475 = vunpack.c.l.b16 %v86
  %v476 = vunpack.c.h.b16 %v86
  %v477 = vunpack.c.l.b16 %v87
  %v478 = vunpack.c.h.b16 %v87
  %v479 = vunpack.c.l.b16 %v88
  %v480 = vunpack.c.h.b16 %v88
  %v481 = vunpack.c.l.b16 %v89
  %v482 = vunpack.c.h.b16 %v89
  %v483 = vunpack.c.l.b16 %v90
  %v484 = vunpack.c.h.b16 %v90
  %v485 = vunpack.c.l.b16 %v91
  %v486 = vunpack.c.h.b16 %v91
  %v487 = vunpack.c.l.b16 %v92
  %v488 = vunpack.c.h.b16 %v92
  %v489 = vunpack.c.l.b16 %v93
  %v490 = vunpack.c.h.b16 %v93
  %v491 = vunpack.c.l.b16 %v94
  %v492 = vunpack.c.h.b16 %v94
  %v493 = vunpack.c.l.b16 %v95
  %v494 = vunpack.c.h.b16 %v95
  %v495 = vunpack.c.l.b16 %v96
  %v496 = vunpack.c.h.b16 %v96
  %v497 = vunpack.c.l.b16 %v97
  %v498 = vunpack.c.h.b16 %v97
  %v499 = vunpack.c.l.b16 %v98
  %v500 = vunpack.c.h.b16 %v98
  %v501 = vunpack.c.l.b16 %v99
  %v502 = vunpack.c.h.b16 %v99
  %v503 = vunpack.c.l.b16 %v100
  %v504 = vunpack.c.h.b16 %v100
  %v505 = vunpack.c.l.b16 %v101
  %v506 = vunpack.c.h.b16 %v101
  %v507 = vunpack.c.l.b16 %v102
  %v508 = vunpack.c.h.b16 %v102
  %v509 = vunpack.c.l.b16 %v103
  %v510 = vunpack.c.h.b16 %v103
  %v511 = vunpack.c.l.b16 %v104
  %v512 = vunpack.c.h.b16 %v104
  %v513 = vunpack.c.l.b16 %v105
  %v514 = vunpack.c.h.b16 %v105
  %v515 = vunpack.c.l.b16 %v106
  %v516 = vunpack.c.h.b16 %v106
  %v517 = vunpack.c.l.b16 %v107
  %v518 = vunpack.c.h.b16 %v107
  %v519 = vunpack.c.l.b16 %v108
  %v520 = vunpack.c.h.b16 %v108
  %v521 = vunpack.c.l.b16 %v109
  %v522 = vunpack.c.h.b16 %v109
  %v523 = vunpack.c.l.b16 %v110
  %v524 = vunpack.c.h.b16 %v110
  %v525 = vunpack.c.l.b16 %v111
  %v526 = vunpack.c.h.b16 %v111
  %v527 = vunpack.c.l.b16 %v112
  %v528 = vunpack.c.h.b16 %v112
  %v529 = vunpack.c.l.b16 %v113
  %v530 = vunpack.c.h.b16 %v113
  %v531 = vunpack.c.l.b16 %v114
  %v532 = vunpack.c.h.b16 %v114
  %v533 = vunpack.c.l.b16 %v115
  %v534 = vunpack.c.h.b16 %v115
  %v535 = vunpack.c.l.b16 %v116
  %v536 = vunpack.c.h.b16 %v116
  %v537 = vunpack.c.l.b16 %v117
  %v538 = vunpack.c.h.b16 %v117
  %v539 = vunpack.c.l.b16 %v118
  %v540 = vunpack.c.h.b16 %v118
  %v541 = vunpack.c.l.b16 %v119
  %v542 = vunpack.c.h.b16 %v119
  %v543 = vunpack.c.l.b16 %v120
  %v544 = vunpack.c.h.b16 %v120
  %v545 = vunpack.c.l.b16 %v121
  %v546 = vunpack.c.h.b16 %v121
  %v547 = vunpack.c.l.b16 %v122
  %v548 = vunpack.c.h.b16 %v122
  %v549 = vunpack.c.l.b16 %v123
  %v550 = vunpack.c.h.b16 %v123
  %v551 = vunpack.c.l.b16 %v124
  %v552 = vunpack.c.h.b16 %v124
  %v553 = vunpack.c.l.b16 %v125
  %v554 = vunpack.c.h.b16 %v125
  %v555 = vunpack.c.l.b16 %v126
  %v556 = vunpack.c.h.b16 %v126
  %v557 = vunpack.c.l.b16 %v127
  %v558 = vunpack.c.h.b16 %v127
  %v559 = vunpack.c.l.b16 %v128
  %v560 = vunpack.c.h.b16 %v128
  %v561 = vunpack.c.l.b16 %v129
  %v562 = vunpack.c.h.b16 %v129
  %v563 = vunpack.c.l.b16 %v130
  %v564 = vunpack.c.h.b16 %v130
  %v565 = vunpack.c.l.b16 %v131
  %v566 = vunpack.c.h.b16 %v131
  %v567 = vunpack.c.l.b16 %v132
  %v568 = vunpack.c.h.b16 %v132
  %v569 = vunpack.c.l.b16 %v133
  %v570 = vunpack.c.h.b16 %v133
  %v571 = vunpack.c.l.b16 %v134
  %v572 = vunpack.c.h.b16 %v134
  %v573 = vunpack.c.l.b16 %v135
  %v574 = vunpack.c.h.b16 %v135
  %v575 = vunpack.c.l.b16 %v136
  %v576 = vunpack.c.h.b16 %v136
  %v577 = vunpack.c.l.b16 %v137
  %v578 = vunpack.c.h.b16 %v137
  %v579 = vunpack.c.l.b16 %v138
  %v580 = vunpack.c.h.b16 %v138
  %v581 = vunpack.c.l.b16 %v139
  %v582 = vunpack.c.h.b16 %v139
  %v583 = vunpack.c.l.b16 %v140
  %v584 = vunpack.c.h.b16 %v140
  %v585 = vunpack.c.l.b16 %v141
  %v586 = vunpack.c.h.b16 %v141
  %v587 = vunpack.c.l.b16 %v142
  %v588 = vunpack.c.h.b16 %v142
  %v589 = vunpack.c.l.b16 %v143
  %v590 = vunpack.c.h.b16 %v143
  %v591 = vunpack.c.l.b16 %v144
  %v592 = vunpack.c.h.b16 %v144
  %v593 = vunpack.c.l.b16 %v145
  %v594 = vunpack.c.h.b16 %v145
  %v595 = vunpack.c.l.b16 %v146
  %v596 = vunpack.c.h.b16 %v146
  %v597 = vunpack.c.l.b16 %v147
  %v598 = vunpack.c.h.b16 %v147
  %v599 = vunpack.c.l.b16 %v148
  %v600 = vunpack.c.h.b16 %v148
  %v601 = vunpack.c.l.b16 %v149
  %v602 = vunpack.c.h.b16 %v149
  %v603 = vunpack.c.l.b16 %v150
  %v604 = vunpack.c.h.b16 %v150
  %v605 = vunpack.c.l.b16 %v151
  %v606 = vunpack.c.h.b16 %v151
  %v607 = vunpack.c.l.b16 %v152
  %v608 = vunpack.c.h.b16 %v152
  %v609 = vunpack.c.l.b16 %v153
  %v610 = vunpack.c.h.b16 %v153
  %v611 = vunpack.c.l.b16 %v154
  %v612 = vunpack.c.h.b16 %v154
  %v613 = vunpack.c.l.b16 %v155
  %v614 = vunpack.c.h.b16 %v155
  %v615 = vunpack.c.l.b16 %v156
  %v616 = vunpack.c.h.b16 %v156
  %v617 = vunpack.c.l.b16 %v157
  %v618 = vunpack.c.h.b16 %v157
  %v619 = vunpack.c.l.b16 %v158
  %v620 = vunpack.c.h.b16 %v158
  %v621 = vunpack.c.l.b16 %v159
  %v622 = vunpack.c.h.b16 %v159
  %v623 = vunpack.c.l.b16 %v160
  %v624 = vunpack.c.h.b16 %v160
  %v625 = vpack.c.b16 %v371, %v369
  %v626 = vpack.c.b16 %v372, %v370
  %v627 = vpack.c.b16 %v375, %v373
  %v628 = vpack.c.b16 %v376, %v374
  %v629 = vpack.c.b16 %v379, %v377
  %v630 = vpack.c.b16 %v380, %v378
  %v631 = vpack.c.b16 %v383, %v381
  %v632 = vpack.c.b16 %v384, %v382
  %v633 = vpack.c.b16 %v387, %v385
  %v634 = vpack.c.b16 %v388, %v386
  %v635 = vpack.c.b16 %v391, %v389
  %v636 = vpack.c.b16 %v392, %v390
  %v637 = vpack.c.b16 %v395, %v393
  %v638 = vpack.c.b16 %v396, %v394
  %v639 = vpack.c.b16 %v399, %v397
  %v640 = vpack.c.b16 %v400, %v398
  %v641 = vpack.c.b16 %v403, %v401
  %v642 = vpack.c.b16 %v404, %v402
  %v643 = vpack.c.b16 %v407, %v405
  %v644 = vpack.c.b16 %v408, %v406
  %v645 = vpack.c.b16 %v411, %v409
  %v646 = vpack.c.b16 %v412, %v410
  %v647 = vpack.c.b16 %v415, %v413
  %v648 = vpack.c.b16 %v416, %v414
  %v649 = vpack.c.b16 %v419, %v417
  %v650 = vpack.c.b16 %v420, %v418
  %v651 = vpack.c.b16 %v423, %v421
  %v652 = vpack.c.b16 %v424, %v422
  %v653 = vpack.c.b16 %v427, %v425
  %v654 = vpack.c.b16 %v428, %v426
  %v655 = vpack.c.b16 %v431, %v429
  %v656 = vpack.c.b16 %v432, %v430
  %v657 = vpack.c.b16 %v435, %v433
  %v658 = vpack.c.b16 %v436, %v434
  %v659 = vpack.c.b16 %v439, %v437
  %v660 = vpack.c.b16 %v440, %v438
  %v661 = vpack.c.b16 %v443, %v441
  %v662 = vpack.c.b16 %v444, %v442
  %v663 = vpack.c.b16 %v447, %v445
  %v664 = vpack.c.b16 %v448, %v446
  %v665 = vpack.c.b16 %v451, %v449
  %v666 = vpack.c.b16 %v452, %v450
  %v667 = vpack.c.b16 %v455, %v453
  %v668 = vpack.c.b16 %v456, %v454
  %v669 = vpack.c.b16 %v459, %v457
  %v670 = vpack.c.b16 %v460, %v458
  %v671 = vpack.c.b16 %v463, %v461
  %v672 = vpack.c.b16 %v464, %v462
  %v673 = vpack.c.b16 %v467, %v465
  %v674 = vpack.c.b16 %v468, %v466
  %v675 = vpack.c.b16 %v471, %v469
  %v676 = vpack.c.b16 %v472, %v470
  %v677 = vpack.c.b16 %v475, %v473
  %v678 = vpack.c.b16 %v476, %v474
  %v679 = vpack.c.b16 %v479, %v477
  %v680 = vpack.c.b16 %v480, %v478
  %v681 = vpack.c.b16 %v483, %v481
  %v682 = vpack.c.b16 %v484, %v482
  %v683 = vpack.c.b16 %v487, %v485
  %v684 = vpack.c.b16 %v488, %v486
  %v685 = vpack.c.b16 %v491, %v489
  %v686 = vpack.c.b16 %v492, %v490
  %v687 = vpack.c.b16 %v495, %v493
  %v688 = vpack.c.b16 %v496, %v494
  %v689 = vpack.c.b16 %v499, %v497
  %v690 = vpack.c.b16 %v500, %v498
  %v691 = vpack.c.b16 %v503, %v501
  %v692 = vpack.c.b16 %v504, %v502
  %v693 = vpack.c.b16 %v507, %v505
  %v694 = vpack.c.b16 %v508, %v506
  %v695 = vpack.c.b16 %v511, %v509
  %v696 = vpack.c.b16 %v512, %v510
  %v697 = vpack.c.b16 %v515, %v513
  %v698 = vpack.c.b16 %v516, %v514
  %v699 = vpack.c.b16 %v519, %v517
  %v700 = vpack.c.b16 %v520, %v518
  %v701 = vpack.c.b16 %v523, %v521
  %v702 = vpack.c.b16 %v524, %v522
  %v703 = vpack.c.b16 %v527, %v525
  %v704 = vpack.c.b16 %v528, %v526
  %v705 = vpack.c.b16 %v531, %v529
  %v706 = vpack.c.b16 %v532, %v530
  %v707 = vpack.c.b16 %v535, %v533
  %v708 = vpack.c.b16 %v536, %v534
  %v709 = vpack.c.b16 %v539, %v537
  %v710 = vpack.c.b16 %v540, %v538
  %v711 = vpack.c.b16 %v543, %v541
  %v712 = vpack.c.b16 %v544, %v542
  %v713 = vpack.c.b16 %v547, %v545
  %v714 = vpack.c.b16 %v548, %v546
  %v715 = vpack.c.b16 %v551, %v549
  %v716 = vpack.c.b16 %v552, %v550
  %v717 = vpack.c.b16 %v555, %v553
  %v718 = vpack.c.b16 %v556, %v554
  %v719 = vpack.c.b16 %v559, %v557
  %v720 = vpack.c.b16 %v560, %v558
  %v721 = vpack.c.b16 %v563, %v561
  %v722 = vpack.c.b16 %v564, %v562
  %v723 = vpack.c.b16 %v567, %v565
  %v724 = vpack.c.b16 %v568, %v566
  %v725 = vpack.c.b16 %v571, %v569
  %v726 = vpack.c.b16 %v572, %v570
  %v727 = vpack.c.b16 %v575, %v573
  %v728 = vpack.c.b16 %v576, %v574
  %v729 = vpack.c.b16 %v579, %v577
  %v730 = vpack.c.b16 %v580, %v578
  %v731 = vpack.c.b16 %v583, %v581
  %v732 = vpack.c.b16 %v584, %v582
  %v733 = vpack.c.b16 %v587, %v585
  %v734 = vpack.c.b16 %v588, %v586
  %v735 = vpack.c.b16 %v591, %v589
  %v736 = vpack.c.b16 %v592, %v590
  %v737 = vpack.c.b16 %v595, %v593
  %v738 = vpack.c.b16 %v596, %v594
  %v739 = vpack.c.b16 %v599, %v597
  %v740 = vpack.c.b16 %v600, %v598
  %v741 = vpack.c.b16 %v603, %v601
  %v742 = vpack.c.b16 %v604, %v602
  %v743 = vpack.c.b16 %v607, %v605
  %v744 = vpack.c.b16 %v608, %v606
  %v745 = vpack.c.b16 %v611, %v609
  %v746 = vpack.c.b16 %v612, %v610
  %v747 = vpack.c.b16 %v615, %v613
  %v748 = vpack.c.b16 %v616, %v614
  %v749 = vpack.c.b16 %v619, %v617
  %v750 = vpack.c.b16 %v620, %v618
  %v751 = vpack.c.b16 %v623, %v621
  %v752 = vpack.c.b16 %v624, %v622
  %881 = vmatprep.subr.bf16.mxu0 %v626
  %882 = vmatpush1.bf16.msra.mxu0 %v625
  %883 = vmatprep.subr.bf16.mxu0 %v628
  %884 = vmatpush1.bf16.msra.mxu0 %v627
  %885 = vmatprep.subr.bf16.mxu0 %v630
  %886 = vmatpush1.bf16.msra.mxu0 %v629
  %887 = vmatprep.subr.bf16.mxu0 %v632
  %888 = vmatpush1.bf16.msra.mxu0 %v631
  %889 = vmatprep.subr.bf16.mxu0 %v634
  %890 = vmatpush1.bf16.msra.mxu0 %v633
  %891 = vmatprep.subr.bf16.mxu0 %v636
  %892 = vmatpush1.bf16.msra.mxu0 %v635
  %893 = vmatprep.subr.bf16.mxu0 %v638
  %894 = vmatpush1.bf16.msra.mxu0 %v637
  %895 = vmatprep.subr.bf16.mxu0 %v640
  %896 = vmatpush1.bf16.msra.mxu0 %v639
  %897 = vmatprep.subr.bf16.mxu0 %v642
  %898 = vmatpush1.bf16.msra.mxu0 %v641
  %899 = vmatprep.subr.bf16.mxu0 %v644
  %900 = vmatpush1.bf16.msra.mxu0 %v643
  %901 = vmatprep.subr.bf16.mxu0 %v646
  %902 = vmatpush1.bf16.msra.mxu0 %v645
  %903 = vmatprep.subr.bf16.mxu0 %v648
  %904 = vmatpush1.bf16.msra.mxu0 %v647
  %905 = vmatprep.subr.bf16.mxu0 %v650
  %906 = vmatpush1.bf16.msra.mxu0 %v649
  %907 = vmatprep.subr.bf16.mxu0 %v652
  %908 = vmatpush1.bf16.msra.mxu0 %v651
  %909 = vmatprep.subr.bf16.mxu0 %v654
  %910 = vmatpush1.bf16.msra.mxu0 %v653
  %911 = vmatprep.subr.bf16.mxu0 %v656
  %912 = vmatpush1.bf16.msra.mxu0 %v655
  %913 = vmatprep.mubr.bf16.mxu0 %v210
  %914 = vmatmul.mubr.bf16.gmra.mrb[0].mxu0 %v209
  %v915 = vpop.f32.mrb[0].mxu0
  %v916 = vadd.f32 0.0, %v915
  %v917 = vpop.f32.mrb[0].mxu0
  %v918 = vadd.f32 0.0, %v917
  %v919 = vpop.f32.mrb[0].mxu0
  %v920 = vadd.f32 0.0, %v919
  %v921 = vpop.f32.mrb[0].mxu0
  %v922 = vadd.f32 0.0, %v921
  %923 = vmatprep.mubr.bf16.mxu0 %v218
  %924 = vmatmul.mubr.bf16.gmra.mrb[0].mxu0 %v217
  %v925 = vpop.f32.mrb[0].mxu0
  %v926 = vadd.f32 0.0, %v925
  %v927 = vpop.f32.mrb[0].mxu0
  %v928 = vadd.f32 0.0, %v927
  %v929 = vpop.f32.mrb[0].mxu0
  %v930 = vadd.f32 0.0, %v929
  %v931 = vpop.f32.mrb[0].mxu0
  %v932 = vadd.f32 0.0, %v931
  %933 = vdwg.mxu0
  %934 = vmatprep.subr.bf16.mxu0 %v658
  %935 = vmatpush1.bf16.msra.mxu0 %v657
  %936 = vmatprep.subr.bf16.mxu0 %v660
  %937 = vmatpush1.bf16.msra.mxu0 %v659
  %938 = vmatprep.subr.bf16.mxu0 %v662
  %939 = vmatpush1.bf16.msra.mxu0 %v661
  %940 = vmatprep.subr.bf16.mxu0 %v664
  %941 = vmatpush1.bf16.msra.mxu0 %v663
  %942 = vmatprep.subr.bf16.mxu0 %v666
  %943 = vmatpush1.bf16.msra.mxu0 %v665
  %944 = vmatprep.subr.bf16.mxu0 %v668
  %945 = vmatpush1.bf16.msra.mxu0 %v667
  %946 = vmatprep.subr.bf16.mxu0 %v670
  %947 = vmatpush1.bf16.msra.mxu0 %v669
  %948 = vmatprep.subr.bf16.mxu0 %v672
  %949 = vmatpush1.bf16.msra.mxu0 %v671
  %950 = vmatprep.subr.bf16.mxu0 %v674
  %951 = vmatpush1.bf16.msra.mxu0 %v673
  %952 = vmatprep.subr.bf16.mxu0 %v676
  %953 = vmatpush1.bf16.msra.mxu0 %v675
  %954 = vmatprep.subr.bf16.mxu0 %v678
  %955 = vmatpush1.bf16.msra.mxu0 %v677
  %956 = vmatprep.subr.bf16.mxu0 %v680
  %957 = vmatpush1.bf16.msra.mxu0 %v679
  %958 = vmatprep.subr.bf16.mxu0 %v682
  %959 = vmatpush1.bf16.msra.mxu0 %v681
  %960 = vmatprep.subr.bf16.mxu0 %v684
  %961 = vmatpush1.bf16.msra.mxu0 %v683
  %962 = vmatprep.subr.bf16.mxu0 %v686
  %963 = vmatpush1.bf16.msra.mxu0 %v685
  %964 = vmatprep.subr.bf16.mxu0 %v688
  %965 = vmatpush1.bf16.msra.mxu0 %v687
  %966 = vmatprep.mubr.bf16.mxu0 %v212
  %967 = vmatmul.mubr.bf16.gmra.mrb[0].mxu0 %v211
  %v968 = vpop.f32.mrb[0].mxu0
  %v969 = vadd.f32 %v916, %v968
  %v970 = vpop.f32.mrb[0].mxu0
  %v971 = vadd.f32 %v918, %v970
  %v972 = vpop.f32.mrb[0].mxu0
  %v973 = vadd.f32 %v920, %v972
  %v974 = vpop.f32.mrb[0].mxu0
  %v975 = vadd.f32 %v922, %v974
  %976 = vmatprep.mubr.bf16.mxu0 %v220
  %977 = vmatmul.mubr.bf16.gmra.mrb[0].mxu0 %v219
  %v978 = vpop.f32.mrb[0].mxu0
  %v979 = vadd.f32 %v926, %v978
  %v980 = vpop.f32.mrb[0].mxu0
  %v981 = vadd.f32 %v928, %v980
  %v982 = vpop.f32.mrb[0].mxu0
  %v983 = vadd.f32 %v930, %v982
  %v984 = vpop.f32.mrb[0].mxu0
  %v985 = vadd.f32 %v932, %v984
  %986 = vdwg.mxu0
  %987 = vmatprep.subr.bf16.mxu0 %v690
  %988 = vmatpush1.bf16.msra.mxu0 %v689
  %989 = vmatprep.subr.bf16.mxu0 %v692
  %990 = vmatpush1.bf16.msra.mxu0 %v691
  %991 = vmatprep.subr.bf16.mxu0 %v694
  %992 = vmatpush1.bf16.msra.mxu0 %v693
  %993 = vmatprep.subr.bf16.mxu0 %v696
  %994 = vmatpush1.bf16.msra.mxu0 %v695
  %995 = vmatprep.subr.bf16.mxu0 %v698
  %996 = vmatpush1.bf16.msra.mxu0 %v697
  %997 = vmatprep.subr.bf16.mxu0 %v700
  %998 = vmatpush1.bf16.msra.mxu0 %v699
  %999 = vmatprep.subr.bf16.mxu0 %v702
  %1000 = vmatpush1.bf16.msra.mxu0 %v701
  %1001 = vmatprep.subr.bf16.mxu0 %v704
  %1002 = vmatpush1.bf16.msra.mxu0 %v703
  %1003 = vmatprep.subr.bf16.mxu0 %v706
  %1004 = vmatpush1.bf16.msra.mxu0 %v705
  %1005 = vmatprep.subr.bf16.mxu0 %v708
  %1006 = vmatpush1.bf16.msra.mxu0 %v707
  %1007 = vmatprep.subr.bf16.mxu0 %v710
  %1008 = vmatpush1.bf16.msra.mxu0 %v709
  %1009 = vmatprep.subr.bf16.mxu0 %v712
  %1010 = vmatpush1.bf16.msra.mxu0 %v711
  %1011 = vmatprep.subr.bf16.mxu0 %v714
  %1012 = vmatpush1.bf16.msra.mxu0 %v713
  %1013 = vmatprep.subr.bf16.mxu0 %v716
  %1014 = vmatpush1.bf16.msra.mxu0 %v715
  %1015 = vmatprep.subr.bf16.mxu0 %v718
  %1016 = vmatpush1.bf16.msra.mxu0 %v717
  %1017 = vmatprep.subr.bf16.mxu0 %v720
  %1018 = vmatpush1.bf16.msra.mxu0 %v719
  %1019 = vmatprep.mubr.bf16.mxu0 %v214
  %1020 = vmatmul.mubr.bf16.gmra.mrb[0].mxu0 %v213
  %v1021 = vpop.f32.mrb[0].mxu0
  %v1022 = vadd.f32 %v969, %v1021
  %v1023 = vpop.f32.mrb[0].mxu0
  %v1024 = vadd.f32 %v971, %v1023
  %v1025 = vpop.f32.mrb[0].mxu0
  %v1026 = vadd.f32 %v973, %v1025
  %v1027 = vpop.f32.mrb[0].mxu0
  %v1028 = vadd.f32 %v975, %v1027
  %1029 = vmatprep.mubr.bf16.mxu0 %v222
  %1030 = vmatmul.mubr.bf16.gmra.mrb[0].mxu0 %v221
  %v1031 = vpop.f32.mrb[0].mxu0
  %v1032 = vadd.f32 %v979, %v1031
  %v1033 = vpop.f32.mrb[0].mxu0
  %v1034 = vadd.f32 %v981, %v1033
  %v1035 = vpop.f32.mrb[0].mxu0
  %v1036 = vadd.f32 %v983, %v1035
  %v1037 = vpop.f32.mrb[0].mxu0
  %v1038 = vadd.f32 %v985, %v1037
  %1039 = vdwg.mxu0
  %1040 = vmatprep.subr.bf16.mxu0 %v722
  %1041 = vmatpush1.bf16.msra.mxu0 %v721
  %1042 = vmatprep.subr.bf16.mxu0 %v724
  %1043 = vmatpush1.bf16.msra.mxu0 %v723
  %1044 = vmatprep.subr.bf16.mxu0 %v726
  %1045 = vmatpush1.bf16.msra.mxu0 %v725
  %1046 = vmatprep.subr.bf16.mxu0 %v728
  %1047 = vmatpush1.bf16.msra.mxu0 %v727
  %1048 = vmatprep.subr.bf16.mxu0 %v730
  %1049 = vmatpush1.bf16.msra.mxu0 %v729
  %1050 = vmatprep.subr.bf16.mxu0 %v732
  %1051 = vmatpush1.bf16.msra.mxu0 %v731
  %1052 = vmatprep.subr.bf16.mxu0 %v734
  %1053 = vmatpush1.bf16.msra.mxu0 %v733
  %1054 = vmatprep.subr.bf16.mxu0 %v736
  %1055 = vmatpush1.bf16.msra.mxu0 %v735
  %1056 = vmatprep.subr.bf16.mxu0 %v738
  %1057 = vmatpush1.bf16.msra.mxu0 %v737
  %1058 = vmatprep.subr.bf16.mxu0 %v740
  %1059 = vmatpush1.bf16.msra.mxu0 %v739
  %1060 = vmatprep.subr.bf16.mxu0 %v742
  %1061 = vmatpush1.bf16.msra.mxu0 %v741
  %1062 = vmatprep.subr.bf16.mxu0 %v744
  %1063 = vmatpush1.bf16.msra.mxu0 %v743
  %1064 = vmatprep.subr.bf16.mxu0 %v746
  %1065 = vmatpush1.bf16.msra.mxu0 %v745
  %1066 = vmatprep.subr.bf16.mxu0 %v748
  %1067 = vmatpush1.bf16.msra.mxu0 %v747
  %1068 = vmatprep.subr.bf16.mxu0 %v750
  %1069 = vmatpush1.bf16.msra.mxu0 %v749
  %1070 = vmatprep.subr.bf16.mxu0 %v752
  %1071 = vmatpush1.bf16.msra.mxu0 %v751
  %1072 = vmatprep.mubr.bf16.mxu0 %v216
  %1073 = vmatmul.mubr.bf16.gmra.mrb[0].mxu0 %v215
  %v1074 = vpop.f32.mrb[0].mxu0
  %v1075 = vadd.f32 %v1022, %v1074
  %v1076 = vpop.f32.mrb[0].mxu0
  %v1077 = vadd.f32 %v1024, %v1076
  %v1078 = vpop.f32.mrb[0].mxu0
  %v1079 = vadd.f32 %v1026, %v1078
  %v1080 = vpop.f32.mrb[0].mxu0
  %v1081 = vadd.f32 %v1028, %v1080
  %1082 = vmatprep.mubr.bf16.mxu0 %v224
  %1083 = vmatmul.mubr.bf16.gmra.mrb[0].mxu0 %v223
  %v1084 = vpop.f32.mrb[0].mxu0
  %v1085 = vadd.f32 %v1032, %v1084
  %v1086 = vpop.f32.mrb[0].mxu0
  %v1087 = vadd.f32 %v1034, %v1086
  %v1088 = vpop.f32.mrb[0].mxu0
  %v1089 = vadd.f32 %v1036, %v1088
  %v1090 = vpop.f32.mrb[0].mxu0
  %v1091 = vadd.f32 %v1038, %v1090
  %1092 = vdwg.mxu0
  %v1093 = vadd.f32 %v1075, %v1077
  %1094 = vadd.xlane.f32.xlu0 %v1093
  %v1095 = vpop.xlane.xlu0 %1094
  %v1096 = vadd.f32 %v1079, %v1081
  %1097 = vadd.xlane.f32.xlu0 %v1096
  %v1098 = vpop.xlane.xlu0 %1097
  %v1099 = vadd.f32 %v1085, %v1087
  %1100 = vadd.xlane.f32.xlu0 %v1099
  %v1101 = vpop.xlane.xlu0 %1100
  %v1102 = vadd.f32 %v1089, %v1091
  %1103 = vadd.xlane.f32.xlu0 %v1102
  %v1104 = vpop.xlane.xlu0 %1103
  %v1105 = vmul.f32 %v1095, 0.005
  %v1106 = vmul.f32 %v1098, 0.005
  %v1107 = vmul.f32 %v1101, 0.005
  %v1108 = vmul.f32 %v1104, 0.005
  %v1109 = vmul.f32 %v1075, %v1075
  %v1110 = vmul.f32 %v1077, %v1077
  %v1111 = vmul.f32 %v1079, %v1079
  %v1112 = vmul.f32 %v1081, %v1081
  %v1113 = vmul.f32 %v1085, %v1085
  %v1114 = vmul.f32 %v1087, %v1087
  %v1115 = vmul.f32 %v1089, %v1089
  %v1116 = vmul.f32 %v1091, %v1091
  %v1117 = vadd.f32 %v1109, %v1110
  %1118 = vadd.xlane.f32.xlu0 %v1117
  %v1119 = vpop.xlane.xlu0 %1118
  %v1120 = vadd.f32 %v1111, %v1112
  %1121 = vadd.xlane.f32.xlu0 %v1120
  %v1122 = vpop.xlane.xlu0 %1121
  %v1123 = vadd.f32 %v1113, %v1114
  %1124 = vadd.xlane.f32.xlu0 %v1123
  %v1125 = vpop.xlane.xlu0 %1124
  %v1126 = vadd.f32 %v1115, %v1116
  %1127 = vadd.xlane.f32.xlu0 %v1126
  %v1128 = vpop.xlane.xlu0 %1127
  %v1129 = vmul.f32 %v1119, 0.005
  %v1130 = vmul.f32 %v1122, 0.005
  %v1131 = vmul.f32 %v1125, 0.005
  %v1132 = vmul.f32 %v1128, 0.005
  %v1133 = vmul.f32 %v1105, %v1105
  %v1134 = vmul.f32 %v1106, %v1106
  %v1135 = vmul.f32 %v1107, %v1107
  %v1136 = vmul.f32 %v1108, %v1108
  %v1137 = vsub.f32 %v1129, %v1133
  %v1138 = vsub.f32 %v1130, %v1134
  %v1139 = vsub.f32 %v1131, %v1135
  %v1140 = vsub.f32 %v1132, %v1136
  %v1141 = vmax.f32 %v1137, 0.0
  %v1142 = vmax.f32 %v1138, 0.0
  %v1143 = vmax.f32 %v1139, 0.0
  %v1144 = vmax.f32 %v1140, 0.0
  %v1145 = vadd.f32 %v1141, 1e-05
  %v1146 = vadd.f32 %v1142, 1e-05
  %v1147 = vadd.f32 %v1143, 1e-05
  %v1148 = vadd.f32 %v1144, 1e-05
  %v1149 = vrsqrt.pop %v1145
  %v1150 = vrsqrt.pop %v1146
  %v1151 = vrsqrt.pop %v1147
  %v1152 = vrsqrt.pop %v1148
  %v1153 = vld [vmem:[%s2] sm:$0xff]
  %v1154 = vld [vmem:[%s2 + $0x8] sm:$0xff]
  %v1155 = vld [vmem:[%s2 + $0x10] sm:$0xff]
  %v1156 = vld [vmem:[%s2 + $0x18] sm:$0xff]
  %v1157 = vmul.f32 %v1149, %v1153
  %v1158 = vmul.f32 %v1150, %v1154
  %v1159 = vmul.f32 %v1151, %v1155
  %v1160 = vmul.f32 %v1152, %v1156
  %v1161 = vsub.f32 %v1075, %v1105
  %v1162 = vsub.f32 %v1077, %v1105
  %v1163 = vsub.f32 %v1079, %v1106
  %v1164 = vsub.f32 %v1081, %v1106
  %v1165 = vsub.f32 %v1085, %v1107
  %v1166 = vsub.f32 %v1087, %v1107
  %v1167 = vsub.f32 %v1089, %v1108
  %v1168 = vsub.f32 %v1091, %v1108
  %1170 = vset.pattern.permute.xlu0 0
  %1171 = vperm.xlu0 %1170, %v1157
  %v1172 = vpop.permute.xlu0 %1171
  %1175 = vset.pattern.permute.xlu0 0
  %1176 = vperm.xlu0 %1175, %v1158
  %v1177 = vpop.permute.xlu0 %1176
  %1180 = vset.pattern.permute.xlu0 0
  %1181 = vperm.xlu0 %1180, %v1159
  %v1182 = vpop.permute.xlu0 %1181
  %1185 = vset.pattern.permute.xlu0 0
  %1186 = vperm.xlu0 %1185, %v1160
  %v1187 = vpop.permute.xlu0 %1186
  %v1189 = vmul.f32 %v1161, %v1172
  %v1190 = vmul.f32 %v1162, %v1172
  %v1191 = vmul.f32 %v1163, %v1177
  %v1192 = vmul.f32 %v1164, %v1177
  %v1193 = vmul.f32 %v1165, %v1182
  %v1194 = vmul.f32 %v1166, %v1182
  %v1195 = vmul.f32 %v1167, %v1187
  %v1196 = vmul.f32 %v1168, %v1187
  %v1197 = vld [vmem:[%s3] sm:$0xff]
  %v1198 = vld [vmem:[%s3 + $0x8] sm:$0xff]
  %v1199 = vld [vmem:[%s3 + $0x10] sm:$0xff]
  %v1200 = vld [vmem:[%s3 + $0x18] sm:$0xff]
  %1202 = vset.pattern.permute.xlu0 0
  %1203 = vperm.xlu0 %1202, %v1197
  %v1204 = vpop.permute.xlu0 %1203
  %1207 = vset.pattern.permute.xlu0 0
  %1208 = vperm.xlu0 %1207, %v1198
  %v1209 = vpop.permute.xlu0 %1208
  %1212 = vset.pattern.permute.xlu0 0
  %1213 = vperm.xlu0 %1212, %v1199
  %v1214 = vpop.permute.xlu0 %1213
  %1217 = vset.pattern.permute.xlu0 0
  %1218 = vperm.xlu0 %1217, %v1200
  %v1219 = vpop.permute.xlu0 %1218
  %v1221 = vadd.f32 %v1189, %v1204
  %v1222 = vadd.f32 %v1190, %v1204
  %v1223 = vadd.f32 %v1191, %v1209
  %v1224 = vadd.f32 %v1192, %v1209
  %v1225 = vadd.f32 %v1193, %v1214
  %v1226 = vadd.f32 %v1194, %v1214
  %v1227 = vadd.f32 %v1195, %v1219
  %v1228 = vadd.f32 %v1196, %v1219
  %v1229 = vmax.f32 %v1221, 0.0
  %v1230 = vmax.f32 %v1222, 0.0
  %v1231 = vmax.f32 %v1223, 0.0
  %v1232 = vmax.f32 %v1224, 0.0
  %v1233 = vmax.f32 %v1225, 0.0
  %v1234 = vmax.f32 %v1226, 0.0
  %v1235 = vmax.f32 %v1227, 0.0
  %v1236 = vmax.f32 %v1228, 0.0
  %v1237 = vpack.c.bf16 %v1231, %v1229
  %v1238 = vpack.c.bf16 %v1232, %v1230
  %v1239 = vpack.c.bf16 %v1235, %v1233
  %v1240 = vpack.c.bf16 %v1236, %v1234
  %v1245 = vunpack.c.l.b16 %v1237
  %v1246 = vunpack.c.l.b16 %v1238
  %v1247 = vunpack.c.h.b16 %v1237
  %v1248 = vunpack.c.h.b16 %v1238
  %v1249 = vunpack.c.l.b16 %v1239
  %v1250 = vunpack.c.l.b16 %v1240
  %v1251 = vunpack.c.h.b16 %v1239
  %v1252 = vunpack.c.h.b16 %v1240
  %v1253 = vpack.c.b16 %v1246, %v1245
  %v1254 = vpack.c.b16 %v1248, %v1247
  %v1255 = vpack.c.b16 %v1250, %v1249
  %v1256 = vpack.c.b16 %v1252, %v1251
  %1261 = vst [vmem:[%s4] sm:$0xff] %v1253
  %1262 = vst [vmem:[%s4 + $0x8] sm:$0xff] %v1254
  %1263 = vst [vmem:[%s4 + $0x10] sm:$0xff] %v1255
  %1264 = vst [vmem:[%s4 + $0x18] sm:$0xff] %v1256
  // Predicated region
  $region18: #{generator_forward.5} parent=0 // pred_check
    _
  $region19: #{generator_forward.5} parent=0 // pred_check_branch
    %1266 = sbr.rel (0) target = $region21
  $region20: #{generator_forward.5} parent=0 // pred_region
    _
  $region21: #{generator_forward.5} parent=0 // pred_fallthru
    _
  // Predicated region
  $region22: #{generator_forward.5} parent=0 // pred_check
    _
  $region23: #{generator_forward.5} parent=0 // pred_check_branch
    %1268 = sbr.rel (0) target = $region25
  $region24: #{generator_forward.5} parent=0 // pred_region
    _
  $region25: #{generator_forward.5} parent=0 // pred_fallthru
    _

// kernel: generator_forward.6
$region0: #{generator_forward.6}
  #allocation0 [shape = 'u32[]', space=smem, size = 0x4, offset = 0x4, fixed_abs, tag = 'smem constant byte address 0x4 - core index']
  #allocation1 [shape = 'u32[144,128]{1,0:T(1,128)}', space=vmem, size = 0x12000, scoped, tag = 'internal scratch']
  %s0 = inlined_call_operand.vmem [shape: bf16[16,512], index: 0, kind: input, shape index: {}]
  %s1 = inlined_call_operand.vmem [shape: bf16[512,1024], index: 1, kind: input, shape index: {}]
  %s2 = inlined_call_operand.vmem [shape: f32[16,1], index: 2, kind: input, shape index: {}]
  %s3 = inlined_call_operand.vmem [shape: f32[16,1], index: 3, kind: input, shape index: {}]
  %s4 = inlined_call_operand.vmem [shape: bf16[16,1024], index: 4, kind: output, shape index: {}]
  %s5 = sld [smem:[#allocation0]]
  $region26: #{generator_forward.6} parent=0
    _
  %s7 = ssub.s32 1, %s5
  %s8 = scalar_select 0, %s7, %s5
  // Predicated region
  $region2: #{generator_forward.6} parent=0 // pred_check
    _
  $region3: #{generator_forward.6} parent=0 // pred_check_branch
    %10 = sbr.rel (0) target = $region5
  $region4: #{generator_forward.6} parent=0 // pred_region
    _
  $region5: #{generator_forward.6} parent=0 // pred_fallthru
    _
  // Predicated region
  $region6: #{generator_forward.6} parent=0 // pred_check
    _
  $region7: #{generator_forward.6} parent=0 // pred_check_branch
    %12 = sbr.rel (0) target = $region9
  $region8: #{generator_forward.6} parent=0 // pred_region
    _
  $region9: #{generator_forward.6} parent=0 // pred_fallthru
    _
  // Predicated region
  $region10: #{generator_forward.6} parent=0 // pred_check
    _
  $region11: #{generator_forward.6} parent=0 // pred_check_branch
    %14 = sbr.rel (0) target = $region13
  $region12: #{generator_forward.6} parent=0 // pred_region
    _
  $region13: #{generator_forward.6} parent=0 // pred_fallthru
    _
  // Predicated region
  $region14: #{generator_forward.6} parent=0 // pred_check
    _
  $region15: #{generator_forward.6} parent=0 // pred_check_branch
    %16 = sbr.rel (0) target = $region17
  $region16: #{generator_forward.6} parent=0 // pred_region
    _
  $region17: #{generator_forward.6} parent=0 // pred_fallthru
    _
  %v17 = vld [vmem:[%s0] sm:$0xff]
  %v18 = vld [vmem:[%s0 + $0x8] sm:$0xff]
  %v19 = vld [vmem:[%s0 + $0x10] sm:$0xff]
  %v20 = vld [vmem:[%s0 + $0x18] sm:$0xff]
  %v21 = vld [vmem:[%s1] sm:$0xff]
  %v22 = vld [vmem:[%s1 + $0x8] sm:$0xff]
  %v23 = vld [vmem:[%s1 + $0x10] sm:$0xff]
  %v24 = vld [vmem:[%s1 + $0x18] sm:$0xff]
  %v25 = vld [vmem:[%s1 + $0x20] sm:$0xff]
  %v26 = vld [vmem:[%s1 + $0x28] sm:$0xff]
  %v27 = vld [vmem:[%s1 + $0x30] sm:$0xff]
  %v28 = vld [vmem:[%s1 + $0x38] sm:$0xff]
  %v29 = vld [vmem:[%s1 + $0x40] sm:$0xff]
  %v30 = vld [vmem:[%s1 + $0x48] sm:$0xff]
  %v31 = vld [vmem:[%s1 + $0x50] sm:$0xff]
  %v32 = vld [vmem:[%s1 + $0x58] sm:$0xff]
  %v33 = vld [vmem:[%s1 + $0x60] sm:$0xff]
  %v34 = vld [vmem:[%s1 + $0x68] sm:$0xff]
  %v35 = vld [vmem:[%s1 + $0x70] sm:$0xff]
  %v36 = vld [vmem:[%s1 + $0x78] sm:$0xff]
  %v37 = vld [vmem:[%s1 + $0x80] sm:$0xff]
  %v38 = vld [vmem:[%s1 + $0x88] sm:$0xff]
  %v39 = vld [vmem:[%s1 + $0x90] sm:$0xff]
  %v40 = vld [vmem:[%s1 + $0x98] sm:$0xff]
  %v41 = vld [vmem:[%s1 + $0xa0] sm:$0xff]
  %v42 = vld [vmem:[%s1 + $0xa8] sm:$0xff]
  %v43 = vld [vmem:[%s1 + $0xb0] sm:$0xff]
  %v44 = vld [vmem:[%s1 + $0xb8] sm:$0xff]
  %v45 = vld [vmem:[%s1 + $0xc0] sm:$0xff]
  %v46 = vld [vmem:[%s1 + $0xc8] sm:$0xff]
  %v47 = vld [vmem:[%s1 + $0xd0] sm:$0xff]
  %v48 = vld [vmem:[%s1 + $0xd8] sm:$0xff]
  %v49 = vld [vmem:[%s1 + $0xe0] sm:$0xff]
  %v50 = vld [vmem:[%s1 + $0xe8] sm:$0xff]
  %v51 = vld [vmem:[%s1 + $0xf0] sm:$0xff]
  %v52 = vld [vmem:[%s1 + $0xf8] sm:$0xff]
  %v53 = vld [vmem:[%s1 + $0x100] sm:$0xff]
  %v54 = vld [vmem:[%s1 + $0x108] sm:$0xff]
  %v55 = vld [vmem:[%s1 + $0x110] sm:$0xff]
  %v56 = vld [vmem:[%s1 + $0x118] sm:$0xff]
  %v57 = vld [vmem:[%s1 + $0x120] sm:$0xff]
  %v58 = vld [vmem:[%s1 + $0x128] sm:$0xff]
  %v59 = vld [vmem:[%s1 + $0x130] sm:$0xff]
  %v60 = vld [vmem:[%s1 + $0x138] sm:$0xff]
  %v61 = vld [vmem:[%s1 + $0x140] sm:$0xff]
  %v62 = vld [vmem:[%s1 + $0x148] sm:$0xff]
  %v63 = vld [vmem:[%s1 + $0x150] sm:$0xff]
  %v64 = vld [vmem:[%s1 + $0x158] sm:$0xff]
  %v65 = vld [vmem:[%s1 + $0x160] sm:$0xff]
  %v66 = vld [vmem:[%s1 + $0x168] sm:$0xff]
  %v67 = vld [vmem:[%s1 + $0x170] sm:$0xff]
  %v68 = vld [vmem:[%s1 + $0x178] sm:$0xff]
  %v69 = vld [vmem:[%s1 + $0x180] sm:$0xff]
  %v70 = vld [vmem:[%s1 + $0x188] sm:$0xff]
  %v71 = vld [vmem:[%s1 + $0x190] sm:$0xff]
  %v72 = vld [vmem:[%s1 + $0x198] sm:$0xff]
  %v73 = vld [vmem:[%s1 + $0x1a0] sm:$0xff]
  %v74 = vld [vmem:[%s1 + $0x1a8] sm:$0xff]
  %v75 = vld [vmem:[%s1 + $0x1b0] sm:$0xff]
  %v76 = vld [vmem:[%s1 + $0x1b8] sm:$0xff]
  %v77 = vld [vmem:[%s1 + $0x1c0] sm:$0xff]
  %v78 = vld [vmem:[%s1 + $0x1c8] sm:$0xff]
  %v79 = vld [vmem:[%s1 + $0x1d0] sm:$0xff]
  %v80 = vld [vmem:[%s1 + $0x1d8] sm:$0xff]
  %v81 = vld [vmem:[%s1 + $0x1e0] sm:$0xff]
  %v82 = vld [vmem:[%s1 + $0x1e8] sm:$0xff]
  %v83 = vld [vmem:[%s1 + $0x1f0] sm:$0xff]
  %v84 = vld [vmem:[%s1 + $0x1f8] sm:$0xff]
  %v85 = vld [vmem:[%s1 + $0x200] sm:$0xff]
  %v86 = vld [vmem:[%s1 + $0x208] sm:$0xff]
  %v87 = vld [vmem:[%s1 + $0x210] sm:$0xff]
  %v88 = vld [vmem:[%s1 + $0x218] sm:$0xff]
  %v89 = vld [vmem:[%s1 + $0x220] sm:$0xff]
  %v90 = vld [vmem:[%s1 + $0x228] sm:$0xff]
  %v91 = vld [vmem:[%s1 + $0x230] sm:$0xff]
  %v92 = vld [vmem:[%s1 + $0x238] sm:$0xff]
  %v93 = vld [vmem:[%s1 + $0x240] sm:$0xff]
  %v94 = vld [vmem:[%s1 + $0x248] sm:$0xff]
  %v95 = vld [vmem:[%s1 + $0x250] sm:$0xff]
  %v96 = vld [vmem:[%s1 + $0x258] sm:$0xff]
  %v97 = vld [vmem:[%s1 + $0x260] sm:$0xff]
  %v98 = vld [vmem:[%s1 + $0x268] sm:$0xff]
  %v99 = vld [vmem:[%s1 + $0x270] sm:$0xff]
  %v100 = vld [vmem:[%s1 + $0x278] sm:$0xff]
  %v101 = vld [vmem:[%s1 + $0x280] sm:$0xff]
  %v102 = vld [vmem:[%s1 + $0x288] sm:$0xff]
  %v103 = vld [vmem:[%s1 + $0x290] sm:$0xff]
  %v104 = vld [vmem:[%s1 + $0x298] sm:$0xff]
  %v105 = vld [vmem:[%s1 + $0x2a0] sm:$0xff]
  %v106 = vld [vmem:[%s1 + $0x2a8] sm:$0xff]
  %v107 = vld [vmem:[%s1 + $0x2b0] sm:$0xff]
  %v108 = vld [vmem:[%s1 + $0x2b8] sm:$0xff]
  %v109 = vld [vmem:[%s1 + $0x2c0] sm:$0xff]
  %v110 = vld [vmem:[%s1 + $0x2c8] sm:$0xff]
  %v111 = vld [vmem:[%s1 + $0x2d0] sm:$0xff]
  %v112 = vld [vmem:[%s1 + $0x2d8] sm:$0xff]
  %v113 = vld [vmem:[%s1 + $0x2e0] sm:$0xff]
  %v114 = vld [vmem:[%s1 + $0x2e8] sm:$0xff]
  %v115 = vld [vmem:[%s1 + $0x2f0] sm:$0xff]
  %v116 = vld [vmem:[%s1 + $0x2f8] sm:$0xff]
  %v117 = vld [vmem:[%s1 + $0x300] sm:$0xff]
  %v118 = vld [vmem:[%s1 + $0x308] sm:$0xff]
  %v119 = vld [vmem:[%s1 + $0x310] sm:$0xff]
  %v120 = vld [vmem:[%s1 + $0x318] sm:$0xff]
  %v121 = vld [vmem:[%s1 + $0x320] sm:$0xff]
  %v122 = vld [vmem:[%s1 + $0x328] sm:$0xff]
  %v123 = vld [vmem:[%s1 + $0x330] sm:$0xff]
  %v124 = vld [vmem:[%s1 + $0x338] sm:$0xff]
  %v125 = vld [vmem:[%s1 + $0x340] sm:$0xff]
  %v126 = vld [vmem:[%s1 + $0x348] sm:$0xff]
  %v127 = vld [vmem:[%s1 + $0x350] sm:$0xff]
  %v128 = vld [vmem:[%s1 + $0x358] sm:$0xff]
  %v129 = vld [vmem:[%s1 + $0x360] sm:$0xff]
  %v130 = vld [vmem:[%s1 + $0x368] sm:$0xff]
  %v131 = vld [vmem:[%s1 + $0x370] sm:$0xff]
  %v132 = vld [vmem:[%s1 + $0x378] sm:$0xff]
  %v133 = vld [vmem:[%s1 + $0x380] sm:$0xff]
  %v134 = vld [vmem:[%s1 + $0x388] sm:$0xff]
  %v135 = vld [vmem:[%s1 + $0x390] sm:$0xff]
  %v136 = vld [vmem:[%s1 + $0x398] sm:$0xff]
  %v137 = vld [vmem:[%s1 + $0x3a0] sm:$0xff]
  %v138 = vld [vmem:[%s1 + $0x3a8] sm:$0xff]
  %v139 = vld [vmem:[%s1 + $0x3b0] sm:$0xff]
  %v140 = vld [vmem:[%s1 + $0x3b8] sm:$0xff]
  %v141 = vld [vmem:[%s1 + $0x3c0] sm:$0xff]
  %v142 = vld [vmem:[%s1 + $0x3c8] sm:$0xff]
  %v143 = vld [vmem:[%s1 + $0x3d0] sm:$0xff]
  %v144 = vld [vmem:[%s1 + $0x3d8] sm:$0xff]
  %v145 = vld [vmem:[%s1 + $0x3e0] sm:$0xff]
  %v146 = vld [vmem:[%s1 + $0x3e8] sm:$0xff]
  %v147 = vld [vmem:[%s1 + $0x3f0] sm:$0xff]
  %v148 = vld [vmem:[%s1 + $0x3f8] sm:$0xff]
  %v149 = vld [vmem:[%s1 + $0x400] sm:$0xff]
  %v150 = vld [vmem:[%s1 + $0x408] sm:$0xff]
  %v151 = vld [vmem:[%s1 + $0x410] sm:$0xff]
  %v152 = vld [vmem:[%s1 + $0x418] sm:$0xff]
  %v153 = vld [vmem:[%s1 + $0x420] sm:$0xff]
  %v154 = vld [vmem:[%s1 + $0x428] sm:$0xff]
  %v155 = vld [vmem:[%s1 + $0x430] sm:$0xff]
  %v156 = vld [vmem:[%s1 + $0x438] sm:$0xff]
  %v157 = vld [vmem:[%s1 + $0x440] sm:$0xff]
  %v158 = vld [vmem:[%s1 + $0x448] sm:$0xff]
  %v159 = vld [vmem:[%s1 + $0x450] sm:$0xff]
  %v160 = vld [vmem:[%s1 + $0x458] sm:$0xff]
  %v161 = vld [vmem:[%s1 + $0x460] sm:$0xff]
  %v162 = vld [vmem:[%s1 + $0x468] sm:$0xff]
  %v163 = vld [vmem:[%s1 + $0x470] sm:$0xff]
  %v164 = vld [vmem:[%s1 + $0x478] sm:$0xff]
  %v165 = vld [vmem:[%s1 + $0x480] sm:$0xff]
  %v166 = vld [vmem:[%s1 + $0x488] sm:$0xff]
  %v167 = vld [vmem:[%s1 + $0x490] sm:$0xff]
  %v168 = vld [vmem:[%s1 + $0x498] sm:$0xff]
  %v169 = vld [vmem:[%s1 + $0x4a0] sm:$0xff]
  %v170 = vld [vmem:[%s1 + $0x4a8] sm:$0xff]
  %v171 = vld [vmem:[%s1 + $0x4b0] sm:$0xff]
  %v172 = vld [vmem:[%s1 + $0x4b8] sm:$0xff]
  %v173 = vld [vmem:[%s1 + $0x4c0] sm:$0xff]
  %v174 = vld [vmem:[%s1 + $0x4c8] sm:$0xff]
  %v175 = vld [vmem:[%s1 + $0x4d0] sm:$0xff]
  %v176 = vld [vmem:[%s1 + $0x4d8] sm:$0xff]
  %v177 = vld [vmem:[%s1 + $0x4e0] sm:$0xff]
  %v178 = vld [vmem:[%s1 + $0x4e8] sm:$0xff]
  %v179 = vld [vmem:[%s1 + $0x4f0] sm:$0xff]
  %v180 = vld [vmem:[%s1 + $0x4f8] sm:$0xff]
  %v181 = vld [vmem:[%s1 + $0x500] sm:$0xff]
  %v182 = vld [vmem:[%s1 + $0x508] sm:$0xff]
  %v183 = vld [vmem:[%s1 + $0x510] sm:$0xff]
  %v184 = vld [vmem:[%s1 + $0x518] sm:$0xff]
  %v185 = vld [vmem:[%s1 + $0x520] sm:$0xff]
  %v186 = vld [vmem:[%s1 + $0x528] sm:$0xff]
  %v187 = vld [vmem:[%s1 + $0x530] sm:$0xff]
  %v188 = vld [vmem:[%s1 + $0x538] sm:$0xff]
  %v189 = vld [vmem:[%s1 + $0x540] sm:$0xff]
  %v190 = vld [vmem:[%s1 + $0x548] sm:$0xff]
  %v191 = vld [vmem:[%s1 + $0x550] sm:$0xff]
  %v192 = vld [vmem:[%s1 + $0x558] sm:$0xff]
  %v193 = vld [vmem:[%s1 + $0x560] sm:$0xff]
  %v194 = vld [vmem:[%s1 + $0x568] sm:$0xff]
  %v195 = vld [vmem:[%s1 + $0x570] sm:$0xff]
  %v196 = vld [vmem:[%s1 + $0x578] sm:$0xff]
  %v197 = vld [vmem:[%s1 + $0x580] sm:$0xff]
  %v198 = vld [vmem:[%s1 + $0x588] sm:$0xff]
  %v199 = vld [vmem:[%s1 + $0x590] sm:$0xff]
  %v200 = vld [vmem:[%s1 + $0x598] sm:$0xff]
  %v201 = vld [vmem:[%s1 + $0x5a0] sm:$0xff]
  %v202 = vld [vmem:[%s1 + $0x5a8] sm:$0xff]
  %v203 = vld [vmem:[%s1 + $0x5b0] sm:$0xff]
  %v204 = vld [vmem:[%s1 + $0x5b8] sm:$0xff]
  %v205 = vld [vmem:[%s1 + $0x5c0] sm:$0xff]
  %v206 = vld [vmem:[%s1 + $0x5c8] sm:$0xff]
  %v207 = vld [vmem:[%s1 + $0x5d0] sm:$0xff]
  %v208 = vld [vmem:[%s1 + $0x5d8] sm:$0xff]
  %v209 = vld [vmem:[%s1 + $0x5e0] sm:$0xff]
  %v210 = vld [vmem:[%s1 + $0x5e8] sm:$0xff]
  %v211 = vld [vmem:[%s1 + $0x5f0] sm:$0xff]
  %v212 = vld [vmem:[%s1 + $0x5f8] sm:$0xff]
  %v213 = vld [vmem:[%s1 + $0x600] sm:$0xff]
  %v214 = vld [vmem:[%s1 + $0x608] sm:$0xff]
  %v215 = vld [vmem:[%s1 + $0x610] sm:$0xff]
  %v216 = vld [vmem:[%s1 + $0x618] sm:$0xff]
  %v217 = vld [vmem:[%s1 + $0x620] sm:$0xff]
  %v218 = vld [vmem:[%s1 + $0x628] sm:$0xff]
  %v219 = vld [vmem:[%s1 + $0x630] sm:$0xff]
  %v220 = vld [vmem:[%s1 + $0x638] sm:$0xff]
  %v221 = vld [vmem:[%s1 + $0x640] sm:$0xff]
  %v222 = vld [vmem:[%s1 + $0x648] sm:$0xff]
  %v223 = vld [vmem:[%s1 + $0x650] sm:$0xff]
  %v224 = vld [vmem:[%s1 + $0x658] sm:$0xff]
  %v225 = vld [vmem:[%s1 + $0x660] sm:$0xff]
  %v226 = vld [vmem:[%s1 + $0x668] sm:$0xff]
  %v227 = vld [vmem:[%s1 + $0x670] sm:$0xff]
  %v228 = vld [vmem:[%s1 + $0x678] sm:$0xff]
  %v229 = vld [vmem:[%s1 + $0x680] sm:$0xff]
  %v230 = vld [vmem:[%s1 + $0x688] sm:$0xff]
  %v231 = vld [vmem:[%s1 + $0x690] sm:$0xff]
  %v232 = vld [vmem:[%s1 + $0x698] sm:$0xff]
  %v233 = vld [vmem:[%s1 + $0x6a0] sm:$0xff]
  %v234 = vld [vmem:[%s1 + $0x6a8] sm:$0xff]
  %v235 = vld [vmem:[%s1 + $0x6b0] sm:$0xff]
  %v236 = vld [vmem:[%s1 + $0x6b8] sm:$0xff]
  %v237 = vld [vmem:[%s1 + $0x6c0] sm:$0xff]
  %v238 = vld [vmem:[%s1 + $0x6c8] sm:$0xff]
  %v239 = vld [vmem:[%s1 + $0x6d0] sm:$0xff]
  %v240 = vld [vmem:[%s1 + $0x6d8] sm:$0xff]
  %v241 = vld [vmem:[%s1 + $0x6e0] sm:$0xff]
  %v242 = vld [vmem:[%s1 + $0x6e8] sm:$0xff]
  %v243 = vld [vmem:[%s1 + $0x6f0] sm:$0xff]
  %v244 = vld [vmem:[%s1 + $0x6f8] sm:$0xff]
  %v245 = vld [vmem:[%s1 + $0x700] sm:$0xff]
  %v246 = vld [vmem:[%s1 + $0x708] sm:$0xff]
  %v247 = vld [vmem:[%s1 + $0x710] sm:$0xff]
  %v248 = vld [vmem:[%s1 + $0x718] sm:$0xff]
  %v249 = vld [vmem:[%s1 + $0x720] sm:$0xff]
  %v250 = vld [vmem:[%s1 + $0x728] sm:$0xff]
  %v251 = vld [vmem:[%s1 + $0x730] sm:$0xff]
  %v252 = vld [vmem:[%s1 + $0x738] sm:$0xff]
  %v253 = vld [vmem:[%s1 + $0x740] sm:$0xff]
  %v254 = vld [vmem:[%s1 + $0x748] sm:$0xff]
  %v255 = vld [vmem:[%s1 + $0x750] sm:$0xff]
  %v256 = vld [vmem:[%s1 + $0x758] sm:$0xff]
  %v257 = vld [vmem:[%s1 + $0x760] sm:$0xff]
  %v258 = vld [vmem:[%s1 + $0x768] sm:$0xff]
  %v259 = vld [vmem:[%s1 + $0x770] sm:$0xff]
  %v260 = vld [vmem:[%s1 + $0x778] sm:$0xff]
  %v261 = vld [vmem:[%s1 + $0x780] sm:$0xff]
  %v262 = vld [vmem:[%s1 + $0x788] sm:$0xff]
  %v263 = vld [vmem:[%s1 + $0x790] sm:$0xff]
  %v264 = vld [vmem:[%s1 + $0x798] sm:$0xff]
  %v265 = vld [vmem:[%s1 + $0x7a0] sm:$0xff]
  %v266 = vld [vmem:[%s1 + $0x7a8] sm:$0xff]
  %v267 = vld [vmem:[%s1 + $0x7b0] sm:$0xff]
  %v268 = vld [vmem:[%s1 + $0x7b8] sm:$0xff]
  %v269 = vld [vmem:[%s1 + $0x7c0] sm:$0xff]
  %v270 = vld [vmem:[%s1 + $0x7c8] sm:$0xff]
  %v271 = vld [vmem:[%s1 + $0x7d0] sm:$0xff]
  %v272 = vld [vmem:[%s1 + $0x7d8] sm:$0xff]
  %v273 = vld [vmem:[%s1 + $0x7e0] sm:$0xff]
  %v274 = vld [vmem:[%s1 + $0x7e8] sm:$0xff]
  %v275 = vld [vmem:[%s1 + $0x7f0] sm:$0xff]
  %v276 = vld [vmem:[%s1 + $0x7f8] sm:$0xff]
  %v281 = vunpack.c.l.b16 %v17
  %v282 = vunpack.c.h.b16 %v17
  %v283 = vunpack.c.l.b16 %v18
  %v284 = vunpack.c.h.b16 %v18
  %v285 = vunpack.c.l.b16 %v19
  %v286 = vunpack.c.h.b16 %v19
  %v287 = vunpack.c.l.b16 %v20
  %v288 = vunpack.c.h.b16 %v20
  %v289 = vpack.c.b16 %v285, %v281
  %v290 = vpack.c.b16 %v286, %v282
  %v291 = vpack.c.b16 %v287, %v283
  %v292 = vpack.c.b16 %v288, %v284
  %v553 = vunpack.c.l.b16 %v21
  %v554 = vunpack.c.h.b16 %v21
  %v555 = vunpack.c.l.b16 %v22
  %v556 = vunpack.c.h.b16 %v22
  %v557 = vunpack.c.l.b16 %v23
  %v558 = vunpack.c.h.b16 %v23
  %v559 = vunpack.c.l.b16 %v24
  %v560 = vunpack.c.h.b16 %v24
  %v561 = vunpack.c.l.b16 %v25
  %v562 = vunpack.c.h.b16 %v25
  %v563 = vunpack.c.l.b16 %v26
  %v564 = vunpack.c.h.b16 %v26
  %v565 = vunpack.c.l.b16 %v27
  %v566 = vunpack.c.h.b16 %v27
  %v567 = vunpack.c.l.b16 %v28
  %v568 = vunpack.c.h.b16 %v28
  %v569 = vunpack.c.l.b16 %v29
  %v570 = vunpack.c.h.b16 %v29
  %v571 = vunpack.c.l.b16 %v30
  %v572 = vunpack.c.h.b16 %v30
  %v573 = vunpack.c.l.b16 %v31
  %v574 = vunpack.c.h.b16 %v31
  %v575 = vunpack.c.l.b16 %v32
  %v576 = vunpack.c.h.b16 %v32
  %v577 = vunpack.c.l.b16 %v33
  %v578 = vunpack.c.h.b16 %v33
  %v579 = vunpack.c.l.b16 %v34
  %v580 = vunpack.c.h.b16 %v34
  %v581 = vunpack.c.l.b16 %v35
  %v582 = vunpack.c.h.b16 %v35
  %v583 = vunpack.c.l.b16 %v36
  %v584 = vunpack.c.h.b16 %v36
  %v585 = vunpack.c.l.b16 %v37
  %v586 = vunpack.c.h.b16 %v37
  %v587 = vunpack.c.l.b16 %v38
  %v588 = vunpack.c.h.b16 %v38
  %v589 = vunpack.c.l.b16 %v39
  %v590 = vunpack.c.h.b16 %v39
  %v591 = vunpack.c.l.b16 %v40
  %v592 = vunpack.c.h.b16 %v40
  %v593 = vunpack.c.l.b16 %v41
  %v594 = vunpack.c.h.b16 %v41
  %v595 = vunpack.c.l.b16 %v42
  %v596 = vunpack.c.h.b16 %v42
  %v597 = vunpack.c.l.b16 %v43
  %v598 = vunpack.c.h.b16 %v43
  %v599 = vunpack.c.l.b16 %v44
  %v600 = vunpack.c.h.b16 %v44
  %v601 = vunpack.c.l.b16 %v45
  %v602 = vunpack.c.h.b16 %v45
  %v603 = vunpack.c.l.b16 %v46
  %v604 = vunpack.c.h.b16 %v46
  %v605 = vunpack.c.l.b16 %v47
  %v606 = vunpack.c.h.b16 %v47
  %v607 = vunpack.c.l.b16 %v48
  %v608 = vunpack.c.h.b16 %v48
  %v609 = vunpack.c.l.b16 %v49
  %v610 = vunpack.c.h.b16 %v49
  %v611 = vunpack.c.l.b16 %v50
  %v612 = vunpack.c.h.b16 %v50
  %v613 = vunpack.c.l.b16 %v51
  %v614 = vunpack.c.h.b16 %v51
  %v615 = vunpack.c.l.b16 %v52
  %v616 = vunpack.c.h.b16 %v52
  %v617 = vunpack.c.l.b16 %v53
  %v618 = vunpack.c.h.b16 %v53
  %v619 = vunpack.c.l.b16 %v54
  %v620 = vunpack.c.h.b16 %v54
  %v621 = vunpack.c.l.b16 %v55
  %v622 = vunpack.c.h.b16 %v55
  %v623 = vunpack.c.l.b16 %v56
  %v624 = vunpack.c.h.b16 %v56
  %v625 = vunpack.c.l.b16 %v57
  %v626 = vunpack.c.h.b16 %v57
  %v627 = vunpack.c.l.b16 %v58
  %v628 = vunpack.c.h.b16 %v58
  %v629 = vunpack.c.l.b16 %v59
  %v630 = vunpack.c.h.b16 %v59
  %v631 = vunpack.c.l.b16 %v60
  %v632 = vunpack.c.h.b16 %v60
  %v633 = vunpack.c.l.b16 %v61
  %v634 = vunpack.c.h.b16 %v61
  %v635 = vunpack.c.l.b16 %v62
  %v636 = vunpack.c.h.b16 %v62
  %v637 = vunpack.c.l.b16 %v63
  %v638 = vunpack.c.h.b16 %v63
  %v639 = vunpack.c.l.b16 %v64
  %v640 = vunpack.c.h.b16 %v64
  %v641 = vunpack.c.l.b16 %v65
  %v642 = vunpack.c.h.b16 %v65
  %v643 = vunpack.c.l.b16 %v66
  %v644 = vunpack.c.h.b16 %v66
  %v645 = vunpack.c.l.b16 %v67
  %v646 = vunpack.c.h.b16 %v67
  %v647 = vunpack.c.l.b16 %v68
  %v648 = vunpack.c.h.b16 %v68
  %v649 = vunpack.c.l.b16 %v69
  %v650 = vunpack.c.h.b16 %v69
  %v651 = vunpack.c.l.b16 %v70
  %v652 = vunpack.c.h.b16 %v70
  %v653 = vunpack.c.l.b16 %v71
  %v654 = vunpack.c.h.b16 %v71
  %v655 = vunpack.c.l.b16 %v72
  %v656 = vunpack.c.h.b16 %v72
  %v657 = vunpack.c.l.b16 %v73
  %v658 = vunpack.c.h.b16 %v73
  %v659 = vunpack.c.l.b16 %v74
  %v660 = vunpack.c.h.b16 %v74
  %v661 = vunpack.c.l.b16 %v75
  %v662 = vunpack.c.h.b16 %v75
  %v663 = vunpack.c.l.b16 %v76
  %v664 = vunpack.c.h.b16 %v76
  %v665 = vunpack.c.l.b16 %v77
  %v666 = vunpack.c.h.b16 %v77
  %v667 = vunpack.c.l.b16 %v78
  %v668 = vunpack.c.h.b16 %v78
  %v669 = vunpack.c.l.b16 %v79
  %v670 = vunpack.c.h.b16 %v79
  %v671 = vunpack.c.l.b16 %v80
  %v672 = vunpack.c.h.b16 %v80
  %v673 = vunpack.c.l.b16 %v81
  %v674 = vunpack.c.h.b16 %v81
  %v675 = vunpack.c.l.b16 %v82
  %v676 = vunpack.c.h.b16 %v82
  %v677 = vunpack.c.l.b16 %v83
  %v678 = vunpack.c.h.b16 %v83
  %v679 = vunpack.c.l.b16 %v84
  %v680 = vunpack.c.h.b16 %v84
  %v681 = vunpack.c.l.b16 %v85
  %v682 = vunpack.c.h.b16 %v85
  %v683 = vunpack.c.l.b16 %v86
  %v684 = vunpack.c.h.b16 %v86
  %v685 = vunpack.c.l.b16 %v87
  %v686 = vunpack.c.h.b16 %v87
  %v687 = vunpack.c.l.b16 %v88
  %v688 = vunpack.c.h.b16 %v88
  %v689 = vunpack.c.l.b16 %v89
  %v690 = vunpack.c.h.b16 %v89
  %v691 = vunpack.c.l.b16 %v90
  %v692 = vunpack.c.h.b16 %v90
  %v693 = vunpack.c.l.b16 %v91
  %v694 = vunpack.c.h.b16 %v91
  %v695 = vunpack.c.l.b16 %v92
  %v696 = vunpack.c.h.b16 %v92
  %v697 = vunpack.c.l.b16 %v93
  %v698 = vunpack.c.h.b16 %v93
  %v699 = vunpack.c.l.b16 %v94
  %v700 = vunpack.c.h.b16 %v94
  %v701 = vunpack.c.l.b16 %v95
  %v702 = vunpack.c.h.b16 %v95
  %v703 = vunpack.c.l.b16 %v96
  %v704 = vunpack.c.h.b16 %v96
  %v705 = vunpack.c.l.b16 %v97
  %v706 = vunpack.c.h.b16 %v97
  %v707 = vunpack.c.l.b16 %v98
  %v708 = vunpack.c.h.b16 %v98
  %v709 = vunpack.c.l.b16 %v99
  %v710 = vunpack.c.h.b16 %v99
  %v711 = vunpack.c.l.b16 %v100
  %v712 = vunpack.c.h.b16 %v100
  %v713 = vunpack.c.l.b16 %v101
  %v714 = vunpack.c.h.b16 %v101
  %v715 = vunpack.c.l.b16 %v102
  %v716 = vunpack.c.h.b16 %v102
  %v717 = vunpack.c.l.b16 %v103
  %v718 = vunpack.c.h.b16 %v103
  %v719 = vunpack.c.l.b16 %v104
  %v720 = vunpack.c.h.b16 %v104
  %v721 = vunpack.c.l.b16 %v105
  %v722 = vunpack.c.h.b16 %v105
  %v723 = vunpack.c.l.b16 %v106
  %v724 = vunpack.c.h.b16 %v106
  %v725 = vunpack.c.l.b16 %v107
  %v726 = vunpack.c.h.b16 %v107
  %v727 = vunpack.c.l.b16 %v108
  %v728 = vunpack.c.h.b16 %v108
  %v729 = vunpack.c.l.b16 %v109
  %v730 = vunpack.c.h.b16 %v109
  %v731 = vunpack.c.l.b16 %v110
  %v732 = vunpack.c.h.b16 %v110
  %v733 = vunpack.c.l.b16 %v111
  %v734 = vunpack.c.h.b16 %v111
  %v735 = vunpack.c.l.b16 %v112
  %v736 = vunpack.c.h.b16 %v112
  %v737 = vunpack.c.l.b16 %v113
  %v738 = vunpack.c.h.b16 %v113
  %v739 = vunpack.c.l.b16 %v114
  %v740 = vunpack.c.h.b16 %v114
  %v741 = vunpack.c.l.b16 %v115
  %v742 = vunpack.c.h.b16 %v115
  %v743 = vunpack.c.l.b16 %v116
  %v744 = vunpack.c.h.b16 %v116
  %v745 = vunpack.c.l.b16 %v117
  %v746 = vunpack.c.h.b16 %v117
  %v747 = vunpack.c.l.b16 %v118
  %v748 = vunpack.c.h.b16 %v118
  %v749 = vunpack.c.l.b16 %v119
  %v750 = vunpack.c.h.b16 %v119
  %v751 = vunpack.c.l.b16 %v120
  %v752 = vunpack.c.h.b16 %v120
  %v753 = vunpack.c.l.b16 %v121
  %v754 = vunpack.c.h.b16 %v121
  %v755 = vunpack.c.l.b16 %v122
  %v756 = vunpack.c.h.b16 %v122
  %v757 = vunpack.c.l.b16 %v123
  %v758 = vunpack.c.h.b16 %v123
  %v759 = vunpack.c.l.b16 %v124
  %v760 = vunpack.c.h.b16 %v124
  %v761 = vunpack.c.l.b16 %v125
  %v762 = vunpack.c.h.b16 %v125
  %v763 = vunpack.c.l.b16 %v126
  %v764 = vunpack.c.h.b16 %v126
  %v765 = vunpack.c.l.b16 %v127
  %v766 = vunpack.c.h.b16 %v127
  %v767 = vunpack.c.l.b16 %v128
  %v768 = vunpack.c.h.b16 %v128
  %v769 = vunpack.c.l.b16 %v129
  %v770 = vunpack.c.h.b16 %v129
  %v771 = vunpack.c.l.b16 %v130
  %v772 = vunpack.c.h.b16 %v130
  %v773 = vunpack.c.l.b16 %v131
  %v774 = vunpack.c.h.b16 %v131
  %v775 = vunpack.c.l.b16 %v132
  %v776 = vunpack.c.h.b16 %v132
  %v777 = vunpack.c.l.b16 %v133
  %v778 = vunpack.c.h.b16 %v133
  %v779 = vunpack.c.l.b16 %v134
  %v780 = vunpack.c.h.b16 %v134
  %v781 = vunpack.c.l.b16 %v135
  %v782 = vunpack.c.h.b16 %v135
  %v783 = vunpack.c.l.b16 %v136
  %v784 = vunpack.c.h.b16 %v136
  %v785 = vunpack.c.l.b16 %v137
  %v786 = vunpack.c.h.b16 %v137
  %v787 = vunpack.c.l.b16 %v138
  %v788 = vunpack.c.h.b16 %v138
  %v789 = vunpack.c.l.b16 %v139
  %v790 = vunpack.c.h.b16 %v139
  %v791 = vunpack.c.l.b16 %v140
  %v792 = vunpack.c.h.b16 %v140
  %v793 = vunpack.c.l.b16 %v141
  %v794 = vunpack.c.h.b16 %v141
  %v795 = vunpack.c.l.b16 %v142
  %v796 = vunpack.c.h.b16 %v142
  %v797 = vunpack.c.l.b16 %v143
  %v798 = vunpack.c.h.b16 %v143
  %v799 = vunpack.c.l.b16 %v144
  %v800 = vunpack.c.h.b16 %v144
  %v801 = vunpack.c.l.b16 %v145
  %v802 = vunpack.c.h.b16 %v145
  %v803 = vunpack.c.l.b16 %v146
  %v804 = vunpack.c.h.b16 %v146
  %v805 = vunpack.c.l.b16 %v147
  %v806 = vunpack.c.h.b16 %v147
  %v807 = vunpack.c.l.b16 %v148
  %v808 = vunpack.c.h.b16 %v148
  %v809 = vunpack.c.l.b16 %v149
  %v810 = vunpack.c.h.b16 %v149
  %v811 = vunpack.c.l.b16 %v150
  %v812 = vunpack.c.h.b16 %v150
  %v813 = vunpack.c.l.b16 %v151
  %v814 = vunpack.c.h.b16 %v151
  %v815 = vunpack.c.l.b16 %v152
  %v816 = vunpack.c.h.b16 %v152
  %v817 = vunpack.c.l.b16 %v153
  %v818 = vunpack.c.h.b16 %v153
  %v819 = vunpack.c.l.b16 %v154
  %v820 = vunpack.c.h.b16 %v154
  %v821 = vunpack.c.l.b16 %v155
  %v822 = vunpack.c.h.b16 %v155
  %v823 = vunpack.c.l.b16 %v156
  %v824 = vunpack.c.h.b16 %v156
  %v825 = vunpack.c.l.b16 %v157
  %v826 = vunpack.c.h.b16 %v157
  %v827 = vunpack.c.l.b16 %v158
  %v828 = vunpack.c.h.b16 %v158
  %v829 = vunpack.c.l.b16 %v159
  %v830 = vunpack.c.h.b16 %v159
  %v831 = vunpack.c.l.b16 %v160
  %v832 = vunpack.c.h.b16 %v160
  %v833 = vunpack.c.l.b16 %v161
  %v834 = vunpack.c.h.b16 %v161
  %v835 = vunpack.c.l.b16 %v162
  %v836 = vunpack.c.h.b16 %v162
  %v837 = vunpack.c.l.b16 %v163
  %v838 = vunpack.c.h.b16 %v163
  %v839 = vunpack.c.l.b16 %v164
  %v840 = vunpack.c.h.b16 %v164
  %v841 = vunpack.c.l.b16 %v165
  %v842 = vunpack.c.h.b16 %v165
  %v843 = vunpack.c.l.b16 %v166
  %v844 = vunpack.c.h.b16 %v166
  %v845 = vunpack.c.l.b16 %v167
  %v846 = vunpack.c.h.b16 %v167
  %v847 = vunpack.c.l.b16 %v168
  %v848 = vunpack.c.h.b16 %v168
  %v849 = vunpack.c.l.b16 %v169
  %v850 = vunpack.c.h.b16 %v169
  %v851 = vunpack.c.l.b16 %v170
  %v852 = vunpack.c.h.b16 %v170
  %v853 = vunpack.c.l.b16 %v171
  %v854 = vunpack.c.h.b16 %v171
  %v855 = vunpack.c.l.b16 %v172
  %v856 = vunpack.c.h.b16 %v172
  %v857 = vunpack.c.l.b16 %v173
  %v858 = vunpack.c.h.b16 %v173
  %v859 = vunpack.c.l.b16 %v174
  %v860 = vunpack.c.h.b16 %v174
  %v861 = vunpack.c.l.b16 %v175
  %v862 = vunpack.c.h.b16 %v175
  %v863 = vunpack.c.l.b16 %v176
  %v864 = vunpack.c.h.b16 %v176
  %v865 = vunpack.c.l.b16 %v177
  %v866 = vunpack.c.h.b16 %v177
  %v867 = vunpack.c.l.b16 %v178
  %v868 = vunpack.c.h.b16 %v178
  %v869 = vunpack.c.l.b16 %v179
  %v870 = vunpack.c.h.b16 %v179
  %v871 = vunpack.c.l.b16 %v180
  %v872 = vunpack.c.h.b16 %v180
  %v873 = vunpack.c.l.b16 %v181
  %v874 = vunpack.c.h.b16 %v181
  %v875 = vunpack.c.l.b16 %v182
  %v876 = vunpack.c.h.b16 %v182
  %v877 = vunpack.c.l.b16 %v183
  %v878 = vunpack.c.h.b16 %v183
  %v879 = vunpack.c.l.b16 %v184
  %v880 = vunpack.c.h.b16 %v184
  %v881 = vunpack.c.l.b16 %v185
  %v882 = vunpack.c.h.b16 %v185
  %v883 = vunpack.c.l.b16 %v186
  %v884 = vunpack.c.h.b16 %v186
  %v885 = vunpack.c.l.b16 %v187
  %v886 = vunpack.c.h.b16 %v187
  %v887 = vunpack.c.l.b16 %v188
  %v888 = vunpack.c.h.b16 %v188
  %v889 = vunpack.c.l.b16 %v189
  %v890 = vunpack.c.h.b16 %v189
  %v891 = vunpack.c.l.b16 %v190
  %v892 = vunpack.c.h.b16 %v190
  %v893 = vunpack.c.l.b16 %v191
  %v894 = vunpack.c.h.b16 %v191
  %v895 = vunpack.c.l.b16 %v192
  %v896 = vunpack.c.h.b16 %v192
  %v897 = vunpack.c.l.b16 %v193
  %v898 = vunpack.c.h.b16 %v193
  %v899 = vunpack.c.l.b16 %v194
  %v900 = vunpack.c.h.b16 %v194
  %v901 = vunpack.c.l.b16 %v195
  %v902 = vunpack.c.h.b16 %v195
  %v903 = vunpack.c.l.b16 %v196
  %v904 = vunpack.c.h.b16 %v196
  %v905 = vunpack.c.l.b16 %v197
  %v906 = vunpack.c.h.b16 %v197
  %v907 = vunpack.c.l.b16 %v198
  %v908 = vunpack.c.h.b16 %v198
  %v909 = vunpack.c.l.b16 %v199
  %v910 = vunpack.c.h.b16 %v199
  %v911 = vunpack.c.l.b16 %v200
  %v912 = vunpack.c.h.b16 %v200
  %v913 = vunpack.c.l.b16 %v201
  %v914 = vunpack.c.h.b16 %v201
  %v915 = vunpack.c.l.b16 %v202
  %v916 = vunpack.c.h.b16 %v202
  %v917 = vunpack.c.l.b16 %v203
  %v918 = vunpack.c.h.b16 %v203
  %v919 = vunpack.c.l.b16 %v204
  %v920 = vunpack.c.h.b16 %v204
  %v921 = vunpack.c.l.b16 %v205
  %v922 = vunpack.c.h.b16 %v205
  %v923 = vunpack.c.l.b16 %v206
  %v924 = vunpack.c.h.b16 %v206
  %v925 = vunpack.c.l.b16 %v207
  %v926 = vunpack.c.h.b16 %v207
  %v927 = vunpack.c.l.b16 %v208
  %v928 = vunpack.c.h.b16 %v208
  %v929 = vunpack.c.l.b16 %v209
  %v930 = vunpack.c.h.b16 %v209
  %v931 = vunpack.c.l.b16 %v210
  %v932 = vunpack.c.h.b16 %v210
  %v933 = vunpack.c.l.b16 %v211
  %v934 = vunpack.c.h.b16 %v211
  %v935 = vunpack.c.l.b16 %v212
  %v936 = vunpack.c.h.b16 %v212
  %v937 = vunpack.c.l.b16 %v213
  %v938 = vunpack.c.h.b16 %v213
  %v939 = vunpack.c.l.b16 %v214
  %v940 = vunpack.c.h.b16 %v214
  %v941 = vunpack.c.l.b16 %v215
  %v942 = vunpack.c.h.b16 %v215
  %v943 = vunpack.c.l.b16 %v216
  %v944 = vunpack.c.h.b16 %v216
  %v945 = vunpack.c.l.b16 %v217
  %v946 = vunpack.c.h.b16 %v217
  %v947 = vunpack.c.l.b16 %v218
  %v948 = vunpack.c.h.b16 %v218
  %v949 = vunpack.c.l.b16 %v219
  %v950 = vunpack.c.h.b16 %v219
  %v951 = vunpack.c.l.b16 %v220
  %v952 = vunpack.c.h.b16 %v220
  %v953 = vunpack.c.l.b16 %v221
  %v954 = vunpack.c.h.b16 %v221
  %v955 = vunpack.c.l.b16 %v222
  %v956 = vunpack.c.h.b16 %v222
  %v957 = vunpack.c.l.b16 %v223
  %v958 = vunpack.c.h.b16 %v223
  %v959 = vunpack.c.l.b16 %v224
  %v960 = vunpack.c.h.b16 %v224
  %v961 = vunpack.c.l.b16 %v225
  %v962 = vunpack.c.h.b16 %v225
  %v963 = vunpack.c.l.b16 %v226
  %v964 = vunpack.c.h.b16 %v226
  %v965 = vunpack.c.l.b16 %v227
  %v966 = vunpack.c.h.b16 %v227
  %v967 = vunpack.c.l.b16 %v228
  %v968 = vunpack.c.h.b16 %v228
  %v969 = vunpack.c.l.b16 %v229
  %v970 = vunpack.c.h.b16 %v229
  %v971 = vunpack.c.l.b16 %v230
  %v972 = vunpack.c.h.b16 %v230
  %v973 = vunpack.c.l.b16 %v231
  %v974 = vunpack.c.h.b16 %v231
  %v975 = vunpack.c.l.b16 %v232
  %v976 = vunpack.c.h.b16 %v232
  %v977 = vunpack.c.l.b16 %v233
  %v978 = vunpack.c.h.b16 %v233
  %v979 = vunpack.c.l.b16 %v234
  %v980 = vunpack.c.h.b16 %v234
  %v981 = vunpack.c.l.b16 %v235
  %v982 = vunpack.c.h.b16 %v235
  %v983 = vunpack.c.l.b16 %v236
  %v984 = vunpack.c.h.b16 %v236
  %v985 = vunpack.c.l.b16 %v237
  %v986 = vunpack.c.h.b16 %v237
  %v987 = vunpack.c.l.b16 %v238
  %v988 = vunpack.c.h.b16 %v238
  %v989 = vunpack.c.l.b16 %v239
  %v990 = vunpack.c.h.b16 %v239
  %v991 = vunpack.c.l.b16 %v240
  %v992 = vunpack.c.h.b16 %v240
  %v993 = vunpack.c.l.b16 %v241
  %v994 = vunpack.c.h.b16 %v241
  %v995 = vunpack.c.l.b16 %v242
  %v996 = vunpack.c.h.b16 %v242
  %v997 = vunpack.c.l.b16 %v243
  %v998 = vunpack.c.h.b16 %v243
  %v999 = vunpack.c.l.b16 %v244
  %v1000 = vunpack.c.h.b16 %v244
  %v1001 = vunpack.c.l.b16 %v245
  %v1002 = vunpack.c.h.b16 %v245
  %v1003 = vunpack.c.l.b16 %v246
  %v1004 = vunpack.c.h.b16 %v246
  %v1005 = vunpack.c.l.b16 %v247
  %v1006 = vunpack.c.h.b16 %v247
  %v1007 = vunpack.c.l.b16 %v248
  %v1008 = vunpack.c.h.b16 %v248
  %v1009 = vunpack.c.l.b16 %v249
  %v1010 = vunpack.c.h.b16 %v249
  %v1011 = vunpack.c.l.b16 %v250
  %v1012 = vunpack.c.h.b16 %v250
  %v1013 = vunpack.c.l.b16 %v251
  %v1014 = vunpack.c.h.b16 %v251
  %v1015 = vunpack.c.l.b16 %v252
  %v1016 = vunpack.c.h.b16 %v252
  %v1017 = vunpack.c.l.b16 %v253
  %v1018 = vunpack.c.h.b16 %v253
  %v1019 = vunpack.c.l.b16 %v254
  %v1020 = vunpack.c.h.b16 %v254
  %v1021 = vunpack.c.l.b16 %v255
  %v1022 = vunpack.c.h.b16 %v255
  %v1023 = vunpack.c.l.b16 %v256
  %v1024 = vunpack.c.h.b16 %v256
  %v1025 = vunpack.c.l.b16 %v257
  %v1026 = vunpack.c.h.b16 %v257
  %v1027 = vunpack.c.l.b16 %v258
  %v1028 = vunpack.c.h.b16 %v258
  %v1029 = vunpack.c.l.b16 %v259
  %v1030 = vunpack.c.h.b16 %v259
  %v1031 = vunpack.c.l.b16 %v260
  %v1032 = vunpack.c.h.b16 %v260
  %v1033 = vunpack.c.l.b16 %v261
  %v1034 = vunpack.c.h.b16 %v261
  %v1035 = vunpack.c.l.b16 %v262
  %v1036 = vunpack.c.h.b16 %v262
  %v1037 = vunpack.c.l.b16 %v263
  %v1038 = vunpack.c.h.b16 %v263
  %v1039 = vunpack.c.l.b16 %v264
  %v1040 = vunpack.c.h.b16 %v264
  %v1041 = vunpack.c.l.b16 %v265
  %v1042 = vunpack.c.h.b16 %v265
  %v1043 = vunpack.c.l.b16 %v266
  %v1044 = vunpack.c.h.b16 %v266
  %v1045 = vunpack.c.l.b16 %v267
  %v1046 = vunpack.c.h.b16 %v267
  %v1047 = vunpack.c.l.b16 %v268
  %v1048 = vunpack.c.h.b16 %v268
  %v1049 = vunpack.c.l.b16 %v269
  %v1050 = vunpack.c.h.b16 %v269
  %v1051 = vunpack.c.l.b16 %v270
  %v1052 = vunpack.c.h.b16 %v270
  %v1053 = vunpack.c.l.b16 %v271
  %v1054 = vunpack.c.h.b16 %v271
  %v1055 = vunpack.c.l.b16 %v272
  %v1056 = vunpack.c.h.b16 %v272
  %v1057 = vunpack.c.l.b16 %v273
  %v1058 = vunpack.c.h.b16 %v273
  %v1059 = vunpack.c.l.b16 %v274
  %v1060 = vunpack.c.h.b16 %v274
  %v1061 = vunpack.c.l.b16 %v275
  %v1062 = vunpack.c.h.b16 %v275
  %v1063 = vunpack.c.l.b16 %v276
  %v1064 = vunpack.c.h.b16 %v276
  %v1065 = vpack.c.b16 %v561, %v553
  %v1066 = vpack.c.b16 %v562, %v554
  %v1067 = vpack.c.b16 %v563, %v555
  %v1068 = vpack.c.b16 %v564, %v556
  %v1069 = vpack.c.b16 %v565, %v557
  %v1070 = vpack.c.b16 %v566, %v558
  %v1071 = vpack.c.b16 %v567, %v559
  %v1072 = vpack.c.b16 %v568, %v560
  %v1073 = vpack.c.b16 %v577, %v569
  %v1074 = vpack.c.b16 %v578, %v570
  %v1075 = vpack.c.b16 %v579, %v571
  %v1076 = vpack.c.b16 %v580, %v572
  %v1077 = vpack.c.b16 %v581, %v573
  %v1078 = vpack.c.b16 %v582, %v574
  %v1079 = vpack.c.b16 %v583, %v575
  %v1080 = vpack.c.b16 %v584, %v576
  %v1081 = vpack.c.b16 %v593, %v585
  %v1082 = vpack.c.b16 %v594, %v586
  %v1083 = vpack.c.b16 %v595, %v587
  %v1084 = vpack.c.b16 %v596, %v588
  %v1085 = vpack.c.b16 %v597, %v589
  %v1086 = vpack.c.b16 %v598, %v590
  %v1087 = vpack.c.b16 %v599, %v591
  %v1088 = vpack.c.b16 %v600, %v592
  %v1089 = vpack.c.b16 %v609, %v601
  %v1090 = vpack.c.b16 %v610, %v602
  %v1091 = vpack.c.b16 %v611, %v603
  %v1092 = vpack.c.b16 %v612, %v604
  %v1093 = vpack.c.b16 %v613, %v605
  %v1094 = vpack.c.b16 %v614, %v606
  %v1095 = vpack.c.b16 %v615, %v607
  %v1096 = vpack.c.b16 %v616, %v608
  %v1097 = vpack.c.b16 %v625, %v617
  %v1098 = vpack.c.b16 %v626, %v618
  %v1099 = vpack.c.b16 %v627, %v619
  %v1100 = vpack.c.b16 %v628, %v620
  %v1101 = vpack.c.b16 %v629, %v621
  %v1102 = vpack.c.b16 %v630, %v622
  %v1103 = vpack.c.b16 %v631, %v623
  %v1104 = vpack.c.b16 %v632, %v624
  %v1105 = vpack.c.b16 %v641, %v633
  %v1106 = vpack.c.b16 %v642, %v634
  %v1107 = vpack.c.b16 %v643, %v635
  %v1108 = vpack.c.b16 %v644, %v636
  %v1109 = vpack.c.b16 %v645, %v637
  %v1110 = vpack.c.b16 %v646, %v638
  %v1111 = vpack.c.b16 %v647, %v639
  %v1112 = vpack.c.b16 %v648, %v640
  %v1113 = vpack.c.b16 %v657, %v649
  %v1114 = vpack.c.b16 %v658, %v650
  %v1115 = vpack.c.b16 %v659, %v651
  %v1116 = vpack.c.b16 %v660, %v652
  %v1117 = vpack.c.b16 %v661, %v653
  %v1118 = vpack.c.b16 %v662, %v654
  %v1119 = vpack.c.b16 %v663, %v655
  %v1120 = vpack.c.b16 %v664, %v656
  %v1121 = vpack.c.b16 %v673, %v665
  %v1122 = vpack.c.b16 %v674, %v666
  %v1123 = vpack.c.b16 %v675, %v667
  %v1124 = vpack.c.b16 %v676, %v668
  %v1125 = vpack.c.b16 %v677, %v669
  %v1126 = vpack.c.b16 %v678, %v670
  %v1127 = vpack.c.b16 %v679, %v671
  %v1128 = vpack.c.b16 %v680, %v672
  %v1129 = vpack.c.b16 %v689, %v681
  %v1130 = vpack.c.b16 %v690, %v682
  %v1131 = vpack.c.b16 %v691, %v683
  %v1132 = vpack.c.b16 %v692, %v684
  %v1133 = vpack.c.b16 %v693, %v685
  %v1134 = vpack.c.b16 %v694, %v686
  %v1135 = vpack.c.b16 %v695, %v687
  %v1136 = vpack.c.b16 %v696, %v688
  %v1137 = vpack.c.b16 %v705, %v697
  %v1138 = vpack.c.b16 %v706, %v698
  %v1139 = vpack.c.b16 %v707, %v699
  %v1140 = vpack.c.b16 %v708, %v700
  %v1141 = vpack.c.b16 %v709, %v701
  %v1142 = vpack.c.b16 %v710, %v702
  %v1143 = vpack.c.b16 %v711, %v703
  %v1144 = vpack.c.b16 %v712, %v704
  %v1145 = vpack.c.b16 %v721, %v713
  %v1146 = vpack.c.b16 %v722, %v714
  %v1147 = vpack.c.b16 %v723, %v715
  %v1148 = vpack.c.b16 %v724, %v716
  %v1149 = vpack.c.b16 %v725, %v717
  %v1150 = vpack.c.b16 %v726, %v718
  %v1151 = vpack.c.b16 %v727, %v719
  %v1152 = vpack.c.b16 %v728, %v720
  %v1153 = vpack.c.b16 %v737, %v729
  %v1154 = vpack.c.b16 %v738, %v730
  %v1155 = vpack.c.b16 %v739, %v731
  %v1156 = vpack.c.b16 %v740, %v732
  %v1157 = vpack.c.b16 %v741, %v733
  %v1158 = vpack.c.b16 %v742, %v734
  %v1159 = vpack.c.b16 %v743, %v735
  %v1160 = vpack.c.b16 %v744, %v736
  %v1161 = vpack.c.b16 %v753, %v745
  %v1162 = vpack.c.b16 %v754, %v746
  %v1163 = vpack.c.b16 %v755, %v747
  %v1164 = vpack.c.b16 %v756, %v748
  %v1165 = vpack.c.b16 %v757, %v749
  %v1166 = vpack.c.b16 %v758, %v750
  %v1167 = vpack.c.b16 %v759, %v751
  %v1168 = vpack.c.b16 %v760, %v752
  %v1169 = vpack.c.b16 %v769, %v761
  %v1170 = vpack.c.b16 %v770, %v762
  %v1171 = vpack.c.b16 %v771, %v763
  %v1172 = vpack.c.b16 %v772, %v764
  %v1173 = vpack.c.b16 %v773, %v765
  %v1174 = vpack.c.b16 %v774, %v766
  %v1175 = vpack.c.b16 %v775, %v767
  %v1176 = vpack.c.b16 %v776, %v768
  %v1177 = vpack.c.b16 %v785, %v777
  %v1178 = vpack.c.b16 %v786, %v778
  %v1179 = vpack.c.b16 %v787, %v779
  %v1180 = vpack.c.b16 %v788, %v780
  %v1181 = vpack.c.b16 %v789, %v781
  %v1182 = vpack.c.b16 %v790, %v782
  %v1183 = vpack.c.b16 %v791, %v783
  %v1184 = vpack.c.b16 %v792, %v784
  %v1185 = vpack.c.b16 %v801, %v793
  %v1186 = vpack.c.b16 %v802, %v794
  %v1187 = vpack.c.b16 %v803, %v795
  %v1188 = vpack.c.b16 %v804, %v796
  %v1189 = vpack.c.b16 %v805, %v797
  %v1190 = vpack.c.b16 %v806, %v798
  %v1191 = vpack.c.b16 %v807, %v799
  %v1192 = vpack.c.b16 %v808, %v800
  %v1193 = vpack.c.b16 %v817, %v809
  %v1194 = vpack.c.b16 %v818, %v810
  %v1195 = vpack.c.b16 %v819, %v811
  %v1196 = vpack.c.b16 %v820, %v812
  %v1197 = vpack.c.b16 %v821, %v813
  %v1198 = vpack.c.b16 %v822, %v814
  %v1199 = vpack.c.b16 %v823, %v815
  %v1200 = vpack.c.b16 %v824, %v816
  %v1201 = vpack.c.b16 %v833, %v825
  %v1202 = vpack.c.b16 %v834, %v826
  %v1203 = vpack.c.b16 %v835, %v827
  %v1204 = vpack.c.b16 %v836, %v828
  %v1205 = vpack.c.b16 %v837, %v829
  %v1206 = vpack.c.b16 %v838, %v830
  %v1207 = vpack.c.b16 %v839, %v831
  %v1208 = vpack.c.b16 %v840, %v832
  %v1209 = vpack.c.b16 %v849, %v841
  %v1210 = vpack.c.b16 %v850, %v842
  %v1211 = vpack.c.b16 %v851, %v843
  %v1212 = vpack.c.b16 %v852, %v844
  %v1213 = vpack.c.b16 %v853, %v845
  %v1214 = vpack.c.b16 %v854, %v846
  %v1215 = vpack.c.b16 %v855, %v847
  %v1216 = vpack.c.b16 %v856, %v848
  %v1217 = vpack.c.b16 %v865, %v857
  %v1218 = vpack.c.b16 %v866, %v858
  %v1219 = vpack.c.b16 %v867, %v859
  %v1220 = vpack.c.b16 %v868, %v860
  %v1221 = vpack.c.b16 %v869, %v861
  %v1222 = vpack.c.b16 %v870, %v862
  %v1223 = vpack.c.b16 %v871, %v863
  %v1224 = vpack.c.b16 %v872, %v864
  %v1225 = vpack.c.b16 %v881, %v873
  %v1226 = vpack.c.b16 %v882, %v874
  %v1227 = vpack.c.b16 %v883, %v875
  %v1228 = vpack.c.b16 %v884, %v876
  %v1229 = vpack.c.b16 %v885, %v877
  %v1230 = vpack.c.b16 %v886, %v878
  %v1231 = vpack.c.b16 %v887, %v879
  %v1232 = vpack.c.b16 %v888, %v880
  %v1233 = vpack.c.b16 %v897, %v889
  %v1234 = vpack.c.b16 %v898, %v890
  %v1235 = vpack.c.b16 %v899, %v891
  %v1236 = vpack.c.b16 %v900, %v892
  %v1237 = vpack.c.b16 %v901, %v893
  %v1238 = vpack.c.b16 %v902, %v894
  %v1239 = vpack.c.b16 %v903, %v895
  %v1240 = vpack.c.b16 %v904, %v896
  %v1241 = vpack.c.b16 %v913, %v905
  %v1242 = vpack.c.b16 %v914, %v906
  %v1243 = vpack.c.b16 %v915, %v907
  %v1244 = vpack.c.b16 %v916, %v908
  %v1245 = vpack.c.b16 %v917, %v909
  %v1246 = vpack.c.b16 %v918, %v910
  %v1247 = vpack.c.b16 %v919, %v911
  %v1248 = vpack.c.b16 %v920, %v912
  %v1249 = vpack.c.b16 %v929, %v921
  %v1250 = vpack.c.b16 %v930, %v922
  %v1251 = vpack.c.b16 %v931, %v923
  %v1252 = vpack.c.b16 %v932, %v924
  %v1253 = vpack.c.b16 %v933, %v925
  %v1254 = vpack.c.b16 %v934, %v926
  %v1255 = vpack.c.b16 %v935, %v927
  %v1256 = vpack.c.b16 %v936, %v928
  %v1257 = vpack.c.b16 %v945, %v937
  %v1258 = vpack.c.b16 %v946, %v938
  %v1259 = vpack.c.b16 %v947, %v939
  %v1260 = vpack.c.b16 %v948, %v940
  %v1261 = vpack.c.b16 %v949, %v941
  %v1262 = vpack.c.b16 %v950, %v942
  %v1263 = vpack.c.b16 %v951, %v943
  %v1264 = vpack.c.b16 %v952, %v944
  %v1265 = vpack.c.b16 %v961, %v953
  %v1266 = vpack.c.b16 %v962, %v954
  %v1267 = vpack.c.b16 %v963, %v955
  %v1268 = vpack.c.b16 %v964, %v956
  %v1269 = vpack.c.b16 %v965, %v957
  %v1270 = vpack.c.b16 %v966, %v958
  %v1271 = vpack.c.b16 %v967, %v959
  %v1272 = vpack.c.b16 %v968, %v960
  %v1273 = vpack.c.b16 %v977, %v969
  %v1274 = vpack.c.b16 %v978, %v970
  %v1275 = vpack.c.b16 %v979, %v971
  %v1276 = vpack.c.b16 %v980, %v972
  %v1277 = vpack.c.b16 %v981, %v973
  %v1278 = vpack.c.b16 %v982, %v974
  %v1279 = vpack.c.b16 %v983, %v975
  %v1280 = vpack.c.b16 %v984, %v976
  %v1281 = vpack.c.b16 %v993, %v985
  %v1282 = vpack.c.b16 %v994, %v986
  %v1283 = vpack.c.b16 %v995, %v987
  %v1284 = vpack.c.b16 %v996, %v988
  %v1285 = vpack.c.b16 %v997, %v989
  %v1286 = vpack.c.b16 %v998, %v990
  %v1287 = vpack.c.b16 %v999, %v991
  %v1288 = vpack.c.b16 %v1000, %v992
  %v1289 = vpack.c.b16 %v1009, %v1001
  %v1290 = vpack.c.b16 %v1010, %v1002
  %v1291 = vpack.c.b16 %v1011, %v1003
  %v1292 = vpack.c.b16 %v1012, %v1004
  %v1293 = vpack.c.b16 %v1013, %v1005
  %v1294 = vpack.c.b16 %v1014, %v1006
  %v1295 = vpack.c.b16 %v1015, %v1007
  %v1296 = vpack.c.b16 %v1016, %v1008
  %v1297 = vpack.c.b16 %v1025, %v1017
  %v1298 = vpack.c.b16 %v1026, %v1018
  %v1299 = vpack.c.b16 %v1027, %v1019
  %v1300 = vpack.c.b16 %v1028, %v1020
  %v1301 = vpack.c.b16 %v1029, %v1021
  %v1302 = vpack.c.b16 %v1030, %v1022
  %v1303 = vpack.c.b16 %v1031, %v1023
  %v1304 = vpack.c.b16 %v1032, %v1024
  %v1305 = vpack.c.b16 %v1041, %v1033
  %v1306 = vpack.c.b16 %v1042, %v1034
  %v1307 = vpack.c.b16 %v1043, %v1035
  %v1308 = vpack.c.b16 %v1044, %v1036
  %v1309 = vpack.c.b16 %v1045, %v1037
  %v1310 = vpack.c.b16 %v1046, %v1038
  %v1311 = vpack.c.b16 %v1047, %v1039
  %v1312 = vpack.c.b16 %v1048, %v1040
  %v1313 = vpack.c.b16 %v1057, %v1049
  %v1314 = vpack.c.b16 %v1058, %v1050
  %v1315 = vpack.c.b16 %v1059, %v1051
  %v1316 = vpack.c.b16 %v1060, %v1052
  %v1317 = vpack.c.b16 %v1061, %v1053
  %v1318 = vpack.c.b16 %v1062, %v1054
  %v1319 = vpack.c.b16 %v1063, %v1055
  %v1320 = vpack.c.b16 %v1064, %v1056
  %1577 = vmatprep.subr.bf16.mxu0 %v1066
  %1578 = vmatpush1.bf16.msra.mxu0 %v1065
  %1579 = vmatprep.subr.bf16.mxu0 %v1074
  %1580 = vmatpush1.bf16.msra.mxu0 %v1073
  %1581 = vmatprep.subr.bf16.mxu0 %v1082
  %1582 = vmatpush1.bf16.msra.mxu0 %v1081
  %1583 = vmatprep.subr.bf16.mxu0 %v1090
  %1584 = vmatpush1.bf16.msra.mxu0 %v1089
  %1585 = vmatprep.subr.bf16.mxu0 %v1098
  %1586 = vmatpush1.bf16.msra.mxu0 %v1097
  %1587 = vmatprep.subr.bf16.mxu0 %v1106
  %1588 = vmatpush1.bf16.msra.mxu0 %v1105
  %1589 = vmatprep.subr.bf16.mxu0 %v1114
  %1590 = vmatpush1.bf16.msra.mxu0 %v1113
  %1591 = vmatprep.subr.bf16.mxu0 %v1122
  %1592 = vmatpush1.bf16.msra.mxu0 %v1121
  %1593 = vmatprep.subr.bf16.mxu0 %v1130
  %1594 = vmatpush1.bf16.msra.mxu0 %v1129
  %1595 = vmatprep.subr.bf16.mxu0 %v1138
  %1596 = vmatpush1.bf16.msra.mxu0 %v1137
  %1597 = vmatprep.subr.bf16.mxu0 %v1146
  %1598 = vmatpush1.bf16.msra.mxu0 %v1145
  %1599 = vmatprep.subr.bf16.mxu0 %v1154
  %1600 = vmatpush1.bf16.msra.mxu0 %v1153
  %1601 = vmatprep.subr.bf16.mxu0 %v1162
  %1602 = vmatpush1.bf16.msra.mxu0 %v1161
  %1603 = vmatprep.subr.bf16.mxu0 %v1170
  %1604 = vmatpush1.bf16.msra.mxu0 %v1169
  %1605 = vmatprep.subr.bf16.mxu0 %v1178
  %1606 = vmatpush1.bf16.msra.mxu0 %v1177
  %1607 = vmatprep.subr.bf16.mxu0 %v1186
  %1608 = vmatpush1.bf16.msra.mxu0 %v1185
  %1609 = vmatprep.mubr.bf16.mxu0 %v290
  %1610 = vmatmul.mubr.bf16.gmra.mrb[0].mxu0 %v289
  %v1611 = vpop.f32.mrb[0].mxu0
  %v1612 = vadd.f32 0.0, %v1611
  %v1613 = vpop.f32.mrb[0].mxu0
  %v1614 = vadd.f32 0.0, %v1613
  %v1615 = vpop.f32.mrb[0].mxu0
  %v1616 = vadd.f32 0.0, %v1615
  %v1617 = vpop.f32.mrb[0].mxu0
  %v1618 = vadd.f32 0.0, %v1617
  %1619 = vdwg.mxu0
  %1620 = vmatprep.subr.bf16.mxu0 %v1194
  %1621 = vmatpush1.bf16.msra.mxu0 %v1193
  %1622 = vmatprep.subr.bf16.mxu0 %v1202
  %1623 = vmatpush1.bf16.msra.mxu0 %v1201
  %1624 = vmatprep.subr.bf16.mxu0 %v1210
  %1625 = vmatpush1.bf16.msra.mxu0 %v1209
  %1626 = vmatprep.subr.bf16.mxu0 %v1218
  %1627 = vmatpush1.bf16.msra.mxu0 %v1217
  %1628 = vmatprep.subr.bf16.mxu0 %v1226
  %1629 = vmatpush1.bf16.msra.mxu0 %v1225
  %1630 = vmatprep.subr.bf16.mxu0 %v1234
  %1631 = vmatpush1.bf16.msra.mxu0 %v1233
  %1632 = vmatprep.subr.bf16.mxu0 %v1242
  %1633 = vmatpush1.bf16.msra.mxu0 %v1241
  %1634 = vmatprep.subr.bf16.mxu0 %v1250
  %1635 = vmatpush1.bf16.msra.mxu0 %v1249
  %1636 = vmatprep.subr.bf16.mxu0 %v1258
  %1637 = vmatpush1.bf16.msra.mxu0 %v1257
  %1638 = vmatprep.subr.bf16.mxu0 %v1266
  %1639 = vmatpush1.bf16.msra.mxu0 %v1265
  %1640 = vmatprep.subr.bf16.mxu0 %v1274
  %1641 = vmatpush1.bf16.msra.mxu0 %v1273
  %1642 = vmatprep.subr.bf16.mxu0 %v1282
  %1643 = vmatpush1.bf16.msra.mxu0 %v1281
  %1644 = vmatprep.subr.bf16.mxu0 %v1290
  %1645 = vmatpush1.bf16.msra.mxu0 %v1289
  %1646 = vmatprep.subr.bf16.mxu0 %v1298
  %1647 = vmatpush1.bf16.msra.mxu0 %v1297
  %1648 = vmatprep.subr.bf16.mxu0 %v1306
  %1649 = vmatpush1.bf16.msra.mxu0 %v1305
  %1650 = vmatprep.subr.bf16.mxu0 %v1314
  %1651 = vmatpush1.bf16.msra.mxu0 %v1313
  %1652 = vmatprep.mubr.bf16.mxu0 %v292
  %1653 = vmatmul.mubr.bf16.gmra.mrb[0].mxu0 %v291
  %v1654 = vpop.f32.mrb[0].mxu0
  %v1655 = vadd.f32 %v1612, %v1654
  %v1656 = vpop.f32.mrb[0].mxu0
  %v1657 = vadd.f32 %v1614, %v1656
  %v1658 = vpop.f32.mrb[0].mxu0
  %v1659 = vadd.f32 %v1616, %v1658
  %v1660 = vpop.f32.mrb[0].mxu0
  %v1661 = vadd.f32 %v1618, %v1660
  %1662 = vdwg.mxu0
  %1663 = vmatprep.subr.bf16.mxu0 %v1068
  %1664 = vmatpush1.bf16.msra.mxu0 %v1067
  %1665 = vmatprep.subr.bf16.mxu0 %v1076
  %1666 = vmatpush1.bf16.msra.mxu0 %v1075
  %1667 = vmatprep.subr.bf16.mxu0 %v1084
  %1668 = vmatpush1.bf16.msra.mxu0 %v1083
  %1669 = vmatprep.subr.bf16.mxu0 %v1092
  %1670 = vmatpush1.bf16.msra.mxu0 %v1091
  %1671 = vmatprep.subr.bf16.mxu0 %v1100
  %1672 = vmatpush1.bf16.msra.mxu0 %v1099
  %1673 = vmatprep.subr.bf16.mxu0 %v1108
  %1674 = vmatpush1.bf16.msra.mxu0 %v1107
  %1675 = vmatprep.subr.bf16.mxu0 %v1116
  %1676 = vmatpush1.bf16.msra.mxu0 %v1115
  %1677 = vmatprep.subr.bf16.mxu0 %v1124
  %1678 = vmatpush1.bf16.msra.mxu0 %v1123
  %1679 = vmatprep.subr.bf16.mxu0 %v1132
  %1680 = vmatpush1.bf16.msra.mxu0 %v1131
  %1681 = vmatprep.subr.bf16.mxu0 %v1140
  %1682 = vmatpush1.bf16.msra.mxu0 %v1139
  %1683 = vmatprep.subr.bf16.mxu0 %v1148
  %1684 = vmatpush1.bf16.msra.mxu0 %v1147
  %1685 = vmatprep.subr.bf16.mxu0 %v1156
  %1686 = vmatpush1.bf16.msra.mxu0 %v1155
  %1687 = vmatprep.subr.bf16.mxu0 %v1164
  %1688 = vmatpush1.bf16.msra.mxu0 %v1163
  %1689 = vmatprep.subr.bf16.mxu0 %v1172
  %1690 = vmatpush1.bf16.msra.mxu0 %v1171
  %1691 = vmatprep.subr.bf16.mxu0 %v1180
  %1692 = vmatpush1.bf16.msra.mxu0 %v1179
  %1693 = vmatprep.subr.bf16.mxu0 %v1188
  %1694 = vmatpush1.bf16.msra.mxu0 %v1187
  %1695 = vmatprep.mubr.bf16.mxu0 %v290
  %1696 = vmatmul.mubr.bf16.gmra.mrb[0].mxu0 %v289
  %v1697 = vpop.f32.mrb[0].mxu0
  %v1698 = vadd.f32 0.0, %v1697
  %v1699 = vpop.f32.mrb[0].mxu0
  %v1700 = vadd.f32 0.0, %v1699
  %v1701 = vpop.f32.mrb[0].mxu0
  %v1702 = vadd.f32 0.0, %v1701
  %v1703 = vpop.f32.mrb[0].mxu0
  %v1704 = vadd.f32 0.0, %v1703
  %1705 = vdwg.mxu0
  %1706 = vmatprep.subr.bf16.mxu0 %v1196
  %1707 = vmatpush1.bf16.msra.mxu0 %v1195
  %1708 = vmatprep.subr.bf16.mxu0 %v1204
  %1709 = vmatpush1.bf16.msra.mxu0 %v1203
  %1710 = vmatprep.subr.bf16.mxu0 %v1212
  %1711 = vmatpush1.bf16.msra.mxu0 %v1211
  %1712 = vmatprep.subr.bf16.mxu0 %v1220
  %1713 = vmatpush1.bf16.msra.mxu0 %v1219
  %1714 = vmatprep.subr.bf16.mxu0 %v1228
  %1715 = vmatpush1.bf16.msra.mxu0 %v1227
  %1716 = vmatprep.subr.bf16.mxu0 %v1236
  %1717 = vmatpush1.bf16.msra.mxu0 %v1235
  %1718 = vmatprep.subr.bf16.mxu0 %v1244
  %1719 = vmatpush1.bf16.msra.mxu0 %v1243
  %1720 = vmatprep.subr.bf16.mxu0 %v1252
  %1721 = vmatpush1.bf16.msra.mxu0 %v1251
  %1722 = vmatprep.subr.bf16.mxu0 %v1260
  %1723 = vmatpush1.bf16.msra.mxu0 %v1259
  %1724 = vmatprep.subr.bf16.mxu0 %v1268
  %1725 = vmatpush1.bf16.msra.mxu0 %v1267
  %1726 = vmatprep.subr.bf16.mxu0 %v1276
  %1727 = vmatpush1.bf16.msra.mxu0 %v1275
  %1728 = vmatprep.subr.bf16.mxu0 %v1284
  %1729 = vmatpush1.bf16.msra.mxu0 %v1283
  %1730 = vmatprep.subr.bf16.mxu0 %v1292
  %1731 = vmatpush1.bf16.msra.mxu0 %v1291
  %1732 = vmatprep.subr.bf16.mxu0 %v1300
  %1733 = vmatpush1.bf16.msra.mxu0 %v1299
  %1734 = vmatprep.subr.bf16.mxu0 %v1308
  %1735 = vmatpush1.bf16.msra.mxu0 %v1307
  %1736 = vmatprep.subr.bf16.mxu0 %v1316
  %1737 = vmatpush1.bf16.msra.mxu0 %v1315
  %1738 = vmatprep.mubr.bf16.mxu0 %v292
  %1739 = vmatmul.mubr.bf16.gmra.mrb[0].mxu0 %v291
  %v1740 = vpop.f32.mrb[0].mxu0
  %v1741 = vadd.f32 %v1698, %v1740
  %v1742 = vpop.f32.mrb[0].mxu0
  %v1743 = vadd.f32 %v1700, %v1742
  %v1744 = vpop.f32.mrb[0].mxu0
  %v1745 = vadd.f32 %v1702, %v1744
  %v1746 = vpop.f32.mrb[0].mxu0
  %v1747 = vadd.f32 %v1704, %v1746
  %1748 = vdwg.mxu0
  %1749 = vmatprep.subr.bf16.mxu0 %v1070
  %1750 = vmatpush1.bf16.msra.mxu0 %v1069
  %1751 = vmatprep.subr.bf16.mxu0 %v1078
  %1752 = vmatpush1.bf16.msra.mxu0 %v1077
  %1753 = vmatprep.subr.bf16.mxu0 %v1086
  %1754 = vmatpush1.bf16.msra.mxu0 %v1085
  %1755 = vmatprep.subr.bf16.mxu0 %v1094
  %1756 = vmatpush1.bf16.msra.mxu0 %v1093
  %1757 = vmatprep.subr.bf16.mxu0 %v1102
  %1758 = vmatpush1.bf16.msra.mxu0 %v1101
  %1759 = vmatprep.subr.bf16.mxu0 %v1110
  %1760 = vmatpush1.bf16.msra.mxu0 %v1109
  %1761 = vmatprep.subr.bf16.mxu0 %v1118
  %1762 = vmatpush1.bf16.msra.mxu0 %v1117
  %1763 = vmatprep.subr.bf16.mxu0 %v1126
  %1764 = vmatpush1.bf16.msra.mxu0 %v1125
  %1765 = vmatprep.subr.bf16.mxu0 %v1134
  %1766 = vmatpush1.bf16.msra.mxu0 %v1133
  %1767 = vmatprep.subr.bf16.mxu0 %v1142
  %1768 = vmatpush1.bf16.msra.mxu0 %v1141
  %1769 = vmatprep.subr.bf16.mxu0 %v1150
  %1770 = vmatpush1.bf16.msra.mxu0 %v1149
  %1771 = vmatprep.subr.bf16.mxu0 %v1158
  %1772 = vmatpush1.bf16.msra.mxu0 %v1157
  %1773 = vmatprep.subr.bf16.mxu0 %v1166
  %1774 = vmatpush1.bf16.msra.mxu0 %v1165
  %1775 = vmatprep.subr.bf16.mxu0 %v1174
  %1776 = vmatpush1.bf16.msra.mxu0 %v1173
  %1777 = vmatprep.subr.bf16.mxu0 %v1182
  %1778 = vmatpush1.bf16.msra.mxu0 %v1181
  %1779 = vmatprep.subr.bf16.mxu0 %v1190
  %1780 = vmatpush1.bf16.msra.mxu0 %v1189
  %1781 = vmatprep.mubr.bf16.mxu0 %v290
  %1782 = vmatmul.mubr.bf16.gmra.mrb[0].mxu0 %v289
  %v1783 = vpop.f32.mrb[0].mxu0
  %v1784 = vadd.f32 0.0, %v1783
  %v1785 = vpop.f32.mrb[0].mxu0
  %v1786 = vadd.f32 0.0, %v1785
  %v1787 = vpop.f32.mrb[0].mxu0
  %v1788 = vadd.f32 0.0, %v1787
  %v1789 = vpop.f32.mrb[0].mxu0
  %v1790 = vadd.f32 0.0, %v1789
  %1791 = vdwg.mxu0
  %1792 = vmatprep.subr.bf16.mxu0 %v1198
  %1793 = vmatpush1.bf16.msra.mxu0 %v1197
  %1794 = vmatprep.subr.bf16.mxu0 %v1206
  %1795 = vmatpush1.bf16.msra.mxu0 %v1205
  %1796 = vmatprep.subr.bf16.mxu0 %v1214
  %1797 = vmatpush1.bf16.msra.mxu0 %v1213
  %1798 = vmatprep.subr.bf16.mxu0 %v1222
  %1799 = vmatpush1.bf16.msra.mxu0 %v1221
  %1800 = vmatprep.subr.bf16.mxu0 %v1230
  %1801 = vmatpush1.bf16.msra.mxu0 %v1229
  %1802 = vmatprep.subr.bf16.mxu0 %v1238
  %1803 = vmatpush1.bf16.msra.mxu0 %v1237
  %1804 = vmatprep.subr.bf16.mxu0 %v1246
  %1805 = vmatpush1.bf16.msra.mxu0 %v1245
  %1806 = vmatprep.subr.bf16.mxu0 %v1254
  %1807 = vmatpush1.bf16.msra.mxu0 %v1253
  %1808 = vmatprep.subr.bf16.mxu0 %v1262
  %1809 = vmatpush1.bf16.msra.mxu0 %v1261
  %1810 = vmatprep.subr.bf16.mxu0 %v1270
  %1811 = vmatpush1.bf16.msra.mxu0 %v1269
  %1812 = vmatprep.subr.bf16.mxu0 %v1278
  %1813 = vmatpush1.bf16.msra.mxu0 %v1277
  %1814 = vmatprep.subr.bf16.mxu0 %v1286
  %1815 = vmatpush1.bf16.msra.mxu0 %v1285
  %1816 = vmatprep.subr.bf16.mxu0 %v1294
  %1817 = vmatpush1.bf16.msra.mxu0 %v1293
  %1818 = vmatprep.subr.bf16.mxu0 %v1302
  %1819 = vmatpush1.bf16.msra.mxu0 %v1301
  %1820 = vmatprep.subr.bf16.mxu0 %v1310
  %1821 = vmatpush1.bf16.msra.mxu0 %v1309
  %1822 = vmatprep.subr.bf16.mxu0 %v1318
  %1823 = vmatpush1.bf16.msra.mxu0 %v1317
  %1824 = vmatprep.mubr.bf16.mxu0 %v292
  %1825 = vmatmul.mubr.bf16.gmra.mrb[0].mxu0 %v291
  %v1826 = vpop.f32.mrb[0].mxu0
  %v1827 = vadd.f32 %v1784, %v1826
  %v1828 = vpop.f32.mrb[0].mxu0
  %v1829 = vadd.f32 %v1786, %v1828
  %v1830 = vpop.f32.mrb[0].mxu0
  %v1831 = vadd.f32 %v1788, %v1830
  %v1832 = vpop.f32.mrb[0].mxu0
  %v1833 = vadd.f32 %v1790, %v1832
  %1834 = vdwg.mxu0
  %1835 = vmatprep.subr.bf16.mxu0 %v1072
  %1836 = vmatpush1.bf16.msra.mxu0 %v1071
  %1837 = vmatprep.subr.bf16.mxu0 %v1080
  %1838 = vmatpush1.bf16.msra.mxu0 %v1079
  %1839 = vmatprep.subr.bf16.mxu0 %v1088
  %1840 = vmatpush1.bf16.msra.mxu0 %v1087
  %1841 = vmatprep.subr.bf16.mxu0 %v1096
  %1842 = vmatpush1.bf16.msra.mxu0 %v1095
  %1843 = vmatprep.subr.bf16.mxu0 %v1104
  %1844 = vmatpush1.bf16.msra.mxu0 %v1103
  %1845 = vmatprep.subr.bf16.mxu0 %v1112
  %1846 = vmatpush1.bf16.msra.mxu0 %v1111
  %1847 = vmatprep.subr.bf16.mxu0 %v1120
  %1848 = vmatpush1.bf16.msra.mxu0 %v1119
  %1849 = vmatprep.subr.bf16.mxu0 %v1128
  %1850 = vmatpush1.bf16.msra.mxu0 %v1127
  %1851 = vmatprep.subr.bf16.mxu0 %v1136
  %1852 = vmatpush1.bf16.msra.mxu0 %v1135
  %1853 = vmatprep.subr.bf16.mxu0 %v1144
  %1854 = vmatpush1.bf16.msra.mxu0 %v1143
  %1855 = vmatprep.subr.bf16.mxu0 %v1152
  %1856 = vmatpush1.bf16.msra.mxu0 %v1151
  %1857 = vmatprep.subr.bf16.mxu0 %v1160
  %1858 = vmatpush1.bf16.msra.mxu0 %v1159
  %1859 = vmatprep.subr.bf16.mxu0 %v1168
  %1860 = vmatpush1.bf16.msra.mxu0 %v1167
  %1861 = vmatprep.subr.bf16.mxu0 %v1176
  %1862 = vmatpush1.bf16.msra.mxu0 %v1175
  %1863 = vmatprep.subr.bf16.mxu0 %v1184
  %1864 = vmatpush1.bf16.msra.mxu0 %v1183
  %1865 = vmatprep.subr.bf16.mxu0 %v1192
  %1866 = vmatpush1.bf16.msra.mxu0 %v1191
  %1867 = vmatprep.mubr.bf16.mxu0 %v290
  %1868 = vmatmul.mubr.bf16.gmra.mrb[0].mxu0 %v289
  %v1869 = vpop.f32.mrb[0].mxu0
  %v1870 = vadd.f32 0.0, %v1869
  %v1871 = vpop.f32.mrb[0].mxu0
  %v1872 = vadd.f32 0.0, %v1871
  %v1873 = vpop.f32.mrb[0].mxu0
  %v1874 = vadd.f32 0.0, %v1873
  %v1875 = vpop.f32.mrb[0].mxu0
  %v1876 = vadd.f32 0.0, %v1875
  %1877 = vdwg.mxu0
  %1878 = vmatprep.subr.bf16.mxu0 %v1200
  %1879 = vmatpush1.bf16.msra.mxu0 %v1199
  %1880 = vmatprep.subr.bf16.mxu0 %v1208
  %1881 = vmatpush1.bf16.msra.mxu0 %v1207
  %1882 = vmatprep.subr.bf16.mxu0 %v1216
  %1883 = vmatpush1.bf16.msra.mxu0 %v1215
  %1884 = vmatprep.subr.bf16.mxu0 %v1224
  %1885 = vmatpush1.bf16.msra.mxu0 %v1223
  %1886 = vmatprep.subr.bf16.mxu0 %v1232
  %1887 = vmatpush1.bf16.msra.mxu0 %v1231
  %1888 = vmatprep.subr.bf16.mxu0 %v1240
  %1889 = vmatpush1.bf16.msra.mxu0 %v1239
  %1890 = vmatprep.subr.bf16.mxu0 %v1248
  %1891 = vmatpush1.bf16.msra.mxu0 %v1247
  %1892 = vmatprep.subr.bf16.mxu0 %v1256
  %1893 = vmatpush1.bf16.msra.mxu0 %v1255
  %1894 = vmatprep.subr.bf16.mxu0 %v1264
  %1895 = vmatpush1.bf16.msra.mxu0 %v1263
  %1896 = vmatprep.subr.bf16.mxu0 %v1272
  %1897 = vmatpush1.bf16.msra.mxu0 %v1271
  %1898 = vmatprep.subr.bf16.mxu0 %v1280
  %1899 = vmatpush1.bf16.msra.mxu0 %v1279
  %1900 = vmatprep.subr.bf16.mxu0 %v1288
  %1901 = vmatpush1.bf16.msra.mxu0 %v1287
  %1902 = vmatprep.subr.bf16.mxu0 %v1296
  %1903 = vmatpush1.bf16.msra.mxu0 %v1295
  %1904 = vmatprep.subr.bf16.mxu0 %v1304
  %1905 = vmatpush1.bf16.msra.mxu0 %v1303
  %1906 = vmatprep.subr.bf16.mxu0 %v1312
  %1907 = vmatpush1.bf16.msra.mxu0 %v1311
  %1908 = vmatprep.subr.bf16.mxu0 %v1320
  %1909 = vmatpush1.bf16.msra.mxu0 %v1319
  %1910 = vmatprep.mubr.bf16.mxu0 %v292
  %1911 = vmatmul.mubr.bf16.gmra.mrb[0].mxu0 %v291
  %v1912 = vpop.f32.mrb[0].mxu0
  %v1913 = vadd.f32 %v1870, %v1912
  %v1914 = vpop.f32.mrb[0].mxu0
  %v1915 = vadd.f32 %v1872, %v1914
  %v1916 = vpop.f32.mrb[0].mxu0
  %v1917 = vadd.f32 %v1874, %v1916
  %v1918 = vpop.f32.mrb[0].mxu0
  %v1919 = vadd.f32 %v1876, %v1918
  %1920 = vdwg.mxu0
  %v1921 = vadd.f32 %v1655, %v1657
  %v1922 = vadd.f32 %v1921, %v1741
  %v1923 = vadd.f32 %v1922, %v1743
  %v1924 = vadd.f32 %v1923, %v1827
  %v1925 = vadd.f32 %v1924, %v1829
  %v1926 = vadd.f32 %v1925, %v1913
  %v1927 = vadd.f32 %v1926, %v1915
  %1928 = vadd.xlane.f32.xlu0 %v1927
  %v1929 = vpop.xlane.xlu0 %1928
  %v1930 = vadd.f32 %v1659, %v1661
  %v1931 = vadd.f32 %v1930, %v1745
  %v1932 = vadd.f32 %v1931, %v1747
  %v1933 = vadd.f32 %v1932, %v1831
  %v1934 = vadd.f32 %v1933, %v1833
  %v1935 = vadd.f32 %v1934, %v1917
  %v1936 = vadd.f32 %v1935, %v1919
  %1937 = vadd.xlane.f32.xlu0 %v1936
  %v1938 = vpop.xlane.xlu0 %1937
  %v1939 = vmul.f32 %v1929, 0.0010330578
  %v1940 = vmul.f32 %v1938, 0.0010330578
  %v1941 = vmul.f32 %v1655, %v1655
  %v1942 = vmul.f32 %v1657, %v1657
  %v1943 = vmul.f32 %v1741, %v1741
  %v1944 = vmul.f32 %v1743, %v1743
  %v1945 = vmul.f32 %v1827, %v1827
  %v1946 = vmul.f32 %v1829, %v1829
  %v1947 = vmul.f32 %v1913, %v1913
  %v1948 = vmul.f32 %v1915, %v1915
  %v1949 = vmul.f32 %v1659, %v1659
  %v1950 = vmul.f32 %v1661, %v1661
  %v1951 = vmul.f32 %v1745, %v1745
  %v1952 = vmul.f32 %v1747, %v1747
  %v1953 = vmul.f32 %v1831, %v1831
  %v1954 = vmul.f32 %v1833, %v1833
  %v1955 = vmul.f32 %v1917, %v1917
  %v1956 = vmul.f32 %v1919, %v1919
  %v1957 = vadd.f32 %v1941, %v1942
  %v1958 = vadd.f32 %v1957, %v1943
  %v1959 = vadd.f32 %v1958, %v1944
  %v1960 = vadd.f32 %v1959, %v1945
  %v1961 = vadd.f32 %v1960, %v1946
  %v1962 = vadd.f32 %v1961, %v1947
  %v1963 = vadd.f32 %v1962, %v1948
  %1964 = vadd.xlane.f32.xlu0 %v1963
  %v1965 = vpop.xlane.xlu0 %1964
  %v1966 = vadd.f32 %v1949, %v1950
  %v1967 = vadd.f32 %v1966, %v1951
  %v1968 = vadd.f32 %v1967, %v1952
  %v1969 = vadd.f32 %v1968, %v1953
  %v1970 = vadd.f32 %v1969, %v1954
  %v1971 = vadd.f32 %v1970, %v1955
  %v1972 = vadd.f32 %v1971, %v1956
  %1973 = vadd.xlane.f32.xlu0 %v1972
  %v1974 = vpop.xlane.xlu0 %1973
  %v1975 = vmul.f32 %v1965, 0.0010330578
  %v1976 = vmul.f32 %v1974, 0.0010330578
  %v1977 = vmul.f32 %v1939, %v1939
  %v1978 = vmul.f32 %v1940, %v1940
  %v1979 = vsub.f32 %v1975, %v1977
  %v1980 = vsub.f32 %v1976, %v1978
  %v1981 = vmax.f32 %v1979, 0.0
  %v1982 = vmax.f32 %v1980, 0.0
  %v1983 = vadd.f32 %v1981, 1e-05
  %v1984 = vadd.f32 %v1982, 1e-05
  %v1985 = vrsqrt.pop %v1983
  %v1986 = vrsqrt.pop %v1984
  %v1987 = vld [vmem:[%s2] sm:$0xff]
  %v1988 = vld [vmem:[%s2 + $0x8] sm:$0xff]
  %v1989 = vmul.f32 %v1985, %v1987
  %v1990 = vmul.f32 %v1986, %v1988
  %v1991 = vsub.f32 %v1655, %v1939
  %v1992 = vsub.f32 %v1657, %v1939
  %v1993 = vsub.f32 %v1741, %v1939
  %v1994 = vsub.f32 %v1743, %v1939
  %v1995 = vsub.f32 %v1827, %v1939
  %v1996 = vsub.f32 %v1829, %v1939
  %v1997 = vsub.f32 %v1913, %v1939
  %v1998 = vsub.f32 %v1915, %v1939
  %v1999 = vsub.f32 %v1659, %v1940
  %v2000 = vsub.f32 %v1661, %v1940
  %v2001 = vsub.f32 %v1745, %v1940
  %v2002 = vsub.f32 %v1747, %v1940
  %v2003 = vsub.f32 %v1831, %v1940
  %v2004 = vsub.f32 %v1833, %v1940
  %v2005 = vsub.f32 %v1917, %v1940
  %v2006 = vsub.f32 %v1919, %v1940
  %2008 = vset.pattern.permute.xlu0 0
  %2009 = vperm.xlu0 %2008, %v1989
  %v2010 = vpop.permute.xlu0 %2009
  %2013 = vset.pattern.permute.xlu0 0
  %2014 = vperm.xlu0 %2013, %v1990
  %v2015 = vpop.permute.xlu0 %2014
  %v2017 = vmul.f32 %v1991, %v2010
  %v2018 = vmul.f32 %v1992, %v2010
  %v2019 = vmul.f32 %v1993, %v2010
  %v2020 = vmul.f32 %v1994, %v2010
  %v2021 = vmul.f32 %v1995, %v2010
  %v2022 = vmul.f32 %v1996, %v2010
  %v2023 = vmul.f32 %v1997, %v2010
  %v2024 = vmul.f32 %v1998, %v2010
  %v2025 = vmul.f32 %v1999, %v2015
  %v2026 = vmul.f32 %v2000, %v2015
  %v2027 = vmul.f32 %v2001, %v2015
  %v2028 = vmul.f32 %v2002, %v2015
  %v2029 = vmul.f32 %v2003, %v2015
  %v2030 = vmul.f32 %v2004, %v2015
  %v2031 = vmul.f32 %v2005, %v2015
  %v2032 = vmul.f32 %v2006, %v2015
  %v2033 = vld [vmem:[%s3] sm:$0xff]
  %v2034 = vld [vmem:[%s3 + $0x8] sm:$0xff]
  %2036 = vset.pattern.permute.xlu0 0
  %2037 = vperm.xlu0 %2036, %v2033
  %v2038 = vpop.permute.xlu0 %2037
  %2041 = vset.pattern.permute.xlu0 0
  %2042 = vperm.xlu0 %2041, %v2034
  %v2043 = vpop.permute.xlu0 %2042
  %v2045 = vadd.f32 %v2017, %v2038
  %v2046 = vadd.f32 %v2018, %v2038
  %v2047 = vadd.f32 %v2019, %v2038
  %v2048 = vadd.f32 %v2020, %v2038
  %v2049 = vadd.f32 %v2021, %v2038
  %v2050 = vadd.f32 %v2022, %v2038
  %v2051 = vadd.f32 %v2023, %v2038
  %v2052 = vadd.f32 %v2024, %v2038
  %v2053 = vadd.f32 %v2025, %v2043
  %v2054 = vadd.f32 %v2026, %v2043
  %v2055 = vadd.f32 %v2027, %v2043
  %v2056 = vadd.f32 %v2028, %v2043
  %v2057 = vadd.f32 %v2029, %v2043
  %v2058 = vadd.f32 %v2030, %v2043
  %v2059 = vadd.f32 %v2031, %v2043
  %v2060 = vadd.f32 %v2032, %v2043
  %v2061 = vmax.f32 %v2045, 0.0
  %v2062 = vmax.f32 %v2046, 0.0
  %v2063 = vmax.f32 %v2047, 0.0
  %v2064 = vmax.f32 %v2048, 0.0
  %v2065 = vmax.f32 %v2049, 0.0
  %v2066 = vmax.f32 %v2050, 0.0
  %v2067 = vmax.f32 %v2051, 0.0
  %v2068 = vmax.f32 %v2052, 0.0
  %v2069 = vmax.f32 %v2053, 0.0
  %v2070 = vmax.f32 %v2054, 0.0
  %v2071 = vmax.f32 %v2055, 0.0
  %v2072 = vmax.f32 %v2056, 0.0
  %v2073 = vmax.f32 %v2057, 0.0
  %v2074 = vmax.f32 %v2058, 0.0
  %v2075 = vmax.f32 %v2059, 0.0
  %v2076 = vmax.f32 %v2060, 0.0
  %v2077 = vpack.c.bf16 %v2069, %v2061
  %v2078 = vpack.c.bf16 %v2070, %v2062
  %v2079 = vpack.c.bf16 %v2071, %v2063
  %v2080 = vpack.c.bf16 %v2072, %v2064
  %v2081 = vpack.c.bf16 %v2073, %v2065
  %v2082 = vpack.c.bf16 %v2074, %v2066
  %v2083 = vpack.c.bf16 %v2075, %v2067
  %v2084 = vpack.c.bf16 %v2076, %v2068
  %v2093 = vunpack.c.l.b16 %v2077
  %v2094 = vunpack.c.l.b16 %v2078
  %v2095 = vunpack.c.l.b16 %v2079
  %v2096 = vunpack.c.l.b16 %v2080
  %v2097 = vunpack.c.l.b16 %v2081
  %v2098 = vunpack.c.l.b16 %v2082
  %v2099 = vunpack.c.l.b16 %v2083
  %v2100 = vunpack.c.l.b16 %v2084
  %v2101 = vunpack.c.h.b16 %v2077
  %v2102 = vunpack.c.h.b16 %v2078
  %v2103 = vunpack.c.h.b16 %v2079
  %v2104 = vunpack.c.h.b16 %v2080
  %v2105 = vunpack.c.h.b16 %v2081
  %v2106 = vunpack.c.h.b16 %v2082
  %v2107 = vunpack.c.h.b16 %v2083
  %v2108 = vunpack.c.h.b16 %v2084
  %v2109 = vpack.c.b16 %v2094, %v2093
  %v2110 = vpack.c.b16 %v2096, %v2095
  %v2111 = vpack.c.b16 %v2098, %v2097
  %v2112 = vpack.c.b16 %v2100, %v2099
  %v2113 = vpack.c.b16 %v2102, %v2101
  %v2114 = vpack.c.b16 %v2104, %v2103
  %v2115 = vpack.c.b16 %v2106, %v2105
  %v2116 = vpack.c.b16 %v2108, %v2107
  %2125 = vst [vmem:[%s4] sm:$0xff] %v2109
  %2126 = vst [vmem:[%s4 + $0x8] sm:$0xff] %v2110
  %2127 = vst [vmem:[%s4 + $0x10] sm:$0xff] %v2111
  %2128 = vst [vmem:[%s4 + $0x18] sm:$0xff] %v2112
  %2129 = vst [vmem:[%s4 + $0x20] sm:$0xff] %v2113
  %2130 = vst [vmem:[%s4 + $0x28] sm:$0xff] %v2114
  %2131 = vst [vmem:[%s4 + $0x30] sm:$0xff] %v2115
  %2132 = vst [vmem:[%s4 + $0x38] sm:$0xff] %v2116
  // Predicated region
  $region18: #{generator_forward.6} parent=0 // pred_check
    _
  $region19: #{generator_forward.6} parent=0 // pred_check_branch
    %2134 = sbr.rel (0) target = $region21
  $region20: #{generator_forward.6} parent=0 // pred_region
    _
  $region21: #{generator_forward.6} parent=0 // pred_fallthru
    _
  // Predicated region
  $region22: #{generator_forward.6} parent=0 // pred_check
    _
  $region23: #{generator_forward.6} parent=0 // pred_check_branch
    %2136 = sbr.rel (0) target = $region25
  $region24: #{generator_forward.6} parent=0 // pred_region
    _
  $region25: #{generator_forward.6} parent=0 // pred_fallthru
    _

// kernel: generator_forward.7
$region0: #{generator_forward.7}
  #allocation0 [shape = 'u32[]', space=smem, size = 0x4, offset = 0x4, fixed_abs, tag = 'smem constant byte address 0x4 - core index']
  #allocation1 [shape = 'u32[144,128]{1,0:T(1,128)}', space=vmem, size = 0x12000, scoped, tag = 'internal scratch']
  #allocation2 [shape = 'f32[1,1]{1,0:T(1,128)S(1)}', space=vmem, size = 0x200, scoped, tag = 'scoped memory for generator_forward.7']
  %s0 = inlined_call_operand.vmem [shape: bf16[8,256], index: 0, kind: input, shape index: {}]
  %s1 = inlined_call_operand.vmem [shape: bf16[256,1280], index: 1, kind: input, shape index: {}]
  %s2 = inlined_call_operand.<no memory space> [shape: f32[1,1], index: 2, kind: input, shape index: {}]
  %s3 = inlined_call_operand.vmem [shape: f32[1,1280], index: 3, kind: output, shape index: {}]
  %s4 = sld [smem:[#allocation0]]
  $region22: #{generator_forward.7} parent=0
    _
  %s6 = ssub.s32 1, %s4
  %s7 = scalar_select 0, %s6, %s4
  %v8 = vstv %s2
  %9 = vst [vmem:[#allocation2] sm:$0x1] %v8
  // Predicated region
  $region2: #{generator_forward.7} parent=0 // pred_check
    _
  $region3: #{generator_forward.7} parent=0 // pred_check_branch
    %11 = sbr.rel (0) target = $region5
  $region4: #{generator_forward.7} parent=0 // pred_region
    _
  $region5: #{generator_forward.7} parent=0 // pred_fallthru
    _
  // Predicated region
  $region6: #{generator_forward.7} parent=0 // pred_check
    _
  $region7: #{generator_forward.7} parent=0 // pred_check_branch
    %13 = sbr.rel (0) target = $region9
  $region8: #{generator_forward.7} parent=0 // pred_region
    _
  $region9: #{generator_forward.7} parent=0 // pred_fallthru
    _
  // Predicated region
  $region10: #{generator_forward.7} parent=0 // pred_check
    _
  $region11: #{generator_forward.7} parent=0 // pred_check_branch
    %15 = sbr.rel (0) target = $region13
  $region12: #{generator_forward.7} parent=0 // pred_region
    _
  $region13: #{generator_forward.7} parent=0 // pred_fallthru
    _
  %v16 = vld [vmem:[%s0] sm:$0xff]
  %v17 = vld [vmem:[%s1] sm:$0xff]
  %v18 = vld [vmem:[%s1 + $0x8] sm:$0xff]
  %v19 = vld [vmem:[%s1 + $0x10] sm:$0xff]
  %v20 = vld [vmem:[%s1 + $0x18] sm:$0xff]
  %v21 = vld [vmem:[%s1 + $0x20] sm:$0xff]
  %v22 = vld [vmem:[%s1 + $0x28] sm:$0xff]
  %v23 = vld [vmem:[%s1 + $0x30] sm:$0xff]
  %v24 = vld [vmem:[%s1 + $0x38] sm:$0xff]
  %v25 = vld [vmem:[%s1 + $0x40] sm:$0xff]
  %v26 = vld [vmem:[%s1 + $0x48] sm:$0xff]
  %v27 = vld [vmem:[%s1 + $0x50] sm:$0xff]
  %v28 = vld [vmem:[%s1 + $0x58] sm:$0xff]
  %v29 = vld [vmem:[%s1 + $0x60] sm:$0xff]
  %v30 = vld [vmem:[%s1 + $0x68] sm:$0xff]
  %v31 = vld [vmem:[%s1 + $0x70] sm:$0xff]
  %v32 = vld [vmem:[%s1 + $0x78] sm:$0xff]
  %v33 = vld [vmem:[%s1 + $0x80] sm:$0xff]
  %v34 = vld [vmem:[%s1 + $0x88] sm:$0xff]
  %v35 = vld [vmem:[%s1 + $0x90] sm:$0xff]
  %v36 = vld [vmem:[%s1 + $0x98] sm:$0xff]
  %v37 = vld [vmem:[%s1 + $0xa0] sm:$0xff]
  %v38 = vld [vmem:[%s1 + $0xa8] sm:$0xff]
  %v39 = vld [vmem:[%s1 + $0xb0] sm:$0xff]
  %v40 = vld [vmem:[%s1 + $0xb8] sm:$0xff]
  %v41 = vld [vmem:[%s1 + $0xc0] sm:$0xff]
  %v42 = vld [vmem:[%s1 + $0xc8] sm:$0xff]
  %v43 = vld [vmem:[%s1 + $0xd0] sm:$0xff]
  %v44 = vld [vmem:[%s1 + $0xd8] sm:$0xff]
  %v45 = vld [vmem:[%s1 + $0xe0] sm:$0xff]
  %v46 = vld [vmem:[%s1 + $0xe8] sm:$0xff]
  %v47 = vld [vmem:[%s1 + $0xf0] sm:$0xff]
  %v48 = vld [vmem:[%s1 + $0xf8] sm:$0xff]
  %v49 = vld [vmem:[%s1 + $0x100] sm:$0xff]
  %v50 = vld [vmem:[%s1 + $0x108] sm:$0xff]
  %v51 = vld [vmem:[%s1 + $0x110] sm:$0xff]
  %v52 = vld [vmem:[%s1 + $0x118] sm:$0xff]
  %v53 = vld [vmem:[%s1 + $0x120] sm:$0xff]
  %v54 = vld [vmem:[%s1 + $0x128] sm:$0xff]
  %v55 = vld [vmem:[%s1 + $0x130] sm:$0xff]
  %v56 = vld [vmem:[%s1 + $0x138] sm:$0xff]
  %v57 = vld [vmem:[%s1 + $0x140] sm:$0xff]
  %v58 = vld [vmem:[%s1 + $0x148] sm:$0xff]
  %v59 = vld [vmem:[%s1 + $0x150] sm:$0xff]
  %v60 = vld [vmem:[%s1 + $0x158] sm:$0xff]
  %v61 = vld [vmem:[%s1 + $0x160] sm:$0xff]
  %v62 = vld [vmem:[%s1 + $0x168] sm:$0xff]
  %v63 = vld [vmem:[%s1 + $0x170] sm:$0xff]
  %v64 = vld [vmem:[%s1 + $0x178] sm:$0xff]
  %v65 = vld [vmem:[%s1 + $0x180] sm:$0xff]
  %v66 = vld [vmem:[%s1 + $0x188] sm:$0xff]
  %v67 = vld [vmem:[%s1 + $0x190] sm:$0xff]
  %v68 = vld [vmem:[%s1 + $0x198] sm:$0xff]
  %v69 = vld [vmem:[%s1 + $0x1a0] sm:$0xff]
  %v70 = vld [vmem:[%s1 + $0x1a8] sm:$0xff]
  %v71 = vld [vmem:[%s1 + $0x1b0] sm:$0xff]
  %v72 = vld [vmem:[%s1 + $0x1b8] sm:$0xff]
  %v73 = vld [vmem:[%s1 + $0x1c0] sm:$0xff]
  %v74 = vld [vmem:[%s1 + $0x1c8] sm:$0xff]
  %v75 = vld [vmem:[%s1 + $0x1d0] sm:$0xff]
  %v76 = vld [vmem:[%s1 + $0x1d8] sm:$0xff]
  %v77 = vld [vmem:[%s1 + $0x1e0] sm:$0xff]
  %v78 = vld [vmem:[%s1 + $0x1e8] sm:$0xff]
  %v79 = vld [vmem:[%s1 + $0x1f0] sm:$0xff]
  %v80 = vld [vmem:[%s1 + $0x1f8] sm:$0xff]
  %v81 = vld [vmem:[%s1 + $0x200] sm:$0xff]
  %v82 = vld [vmem:[%s1 + $0x208] sm:$0xff]
  %v83 = vld [vmem:[%s1 + $0x210] sm:$0xff]
  %v84 = vld [vmem:[%s1 + $0x218] sm:$0xff]
  %v85 = vld [vmem:[%s1 + $0x220] sm:$0xff]
  %v86 = vld [vmem:[%s1 + $0x228] sm:$0xff]
  %v87 = vld [vmem:[%s1 + $0x230] sm:$0xff]
  %v88 = vld [vmem:[%s1 + $0x238] sm:$0xff]
  %v89 = vld [vmem:[%s1 + $0x240] sm:$0xff]
  %v90 = vld [vmem:[%s1 + $0x248] sm:$0xff]
  %v91 = vld [vmem:[%s1 + $0x250] sm:$0xff]
  %v92 = vld [vmem:[%s1 + $0x258] sm:$0xff]
  %v93 = vld [vmem:[%s1 + $0x260] sm:$0xff]
  %v94 = vld [vmem:[%s1 + $0x268] sm:$0xff]
  %v95 = vld [vmem:[%s1 + $0x270] sm:$0xff]
  %v96 = vld [vmem:[%s1 + $0x278] sm:$0xff]
  %v97 = vld [vmem:[%s1 + $0x280] sm:$0xff]
  %v98 = vld [vmem:[%s1 + $0x288] sm:$0xff]
  %v99 = vld [vmem:[%s1 + $0x290] sm:$0xff]
  %v100 = vld [vmem:[%s1 + $0x298] sm:$0xff]
  %v101 = vld [vmem:[%s1 + $0x2a0] sm:$0xff]
  %v102 = vld [vmem:[%s1 + $0x2a8] sm:$0xff]
  %v103 = vld [vmem:[%s1 + $0x2b0] sm:$0xff]
  %v104 = vld [vmem:[%s1 + $0x2b8] sm:$0xff]
  %v105 = vld [vmem:[%s1 + $0x2c0] sm:$0xff]
  %v106 = vld [vmem:[%s1 + $0x2c8] sm:$0xff]
  %v107 = vld [vmem:[%s1 + $0x2d0] sm:$0xff]
  %v108 = vld [vmem:[%s1 + $0x2d8] sm:$0xff]
  %v109 = vld [vmem:[%s1 + $0x2e0] sm:$0xff]
  %v110 = vld [vmem:[%s1 + $0x2e8] sm:$0xff]
  %v111 = vld [vmem:[%s1 + $0x2f0] sm:$0xff]
  %v112 = vld [vmem:[%s1 + $0x2f8] sm:$0xff]
  %v113 = vld [vmem:[%s1 + $0x300] sm:$0xff]
  %v114 = vld [vmem:[%s1 + $0x308] sm:$0xff]
  %v115 = vld [vmem:[%s1 + $0x310] sm:$0xff]
  %v116 = vld [vmem:[%s1 + $0x318] sm:$0xff]
  %v117 = vld [vmem:[%s1 + $0x320] sm:$0xff]
  %v118 = vld [vmem:[%s1 + $0x328] sm:$0xff]
  %v119 = vld [vmem:[%s1 + $0x330] sm:$0xff]
  %v120 = vld [vmem:[%s1 + $0x338] sm:$0xff]
  %v121 = vld [vmem:[%s1 + $0x340] sm:$0xff]
  %v122 = vld [vmem:[%s1 + $0x348] sm:$0xff]
  %v123 = vld [vmem:[%s1 + $0x350] sm:$0xff]
  %v124 = vld [vmem:[%s1 + $0x358] sm:$0xff]
  %v125 = vld [vmem:[%s1 + $0x360] sm:$0xff]
  %v126 = vld [vmem:[%s1 + $0x368] sm:$0xff]
  %v127 = vld [vmem:[%s1 + $0x370] sm:$0xff]
  %v128 = vld [vmem:[%s1 + $0x378] sm:$0xff]
  %v129 = vld [vmem:[%s1 + $0x380] sm:$0xff]
  %v130 = vld [vmem:[%s1 + $0x388] sm:$0xff]
  %v131 = vld [vmem:[%s1 + $0x390] sm:$0xff]
  %v132 = vld [vmem:[%s1 + $0x398] sm:$0xff]
  %v133 = vld [vmem:[%s1 + $0x3a0] sm:$0xff]
  %v134 = vld [vmem:[%s1 + $0x3a8] sm:$0xff]
  %v135 = vld [vmem:[%s1 + $0x3b0] sm:$0xff]
  %v136 = vld [vmem:[%s1 + $0x3b8] sm:$0xff]
  %v137 = vld [vmem:[%s1 + $0x3c0] sm:$0xff]
  %v138 = vld [vmem:[%s1 + $0x3c8] sm:$0xff]
  %v139 = vld [vmem:[%s1 + $0x3d0] sm:$0xff]
  %v140 = vld [vmem:[%s1 + $0x3d8] sm:$0xff]
  %v141 = vld [vmem:[%s1 + $0x3e0] sm:$0xff]
  %v142 = vld [vmem:[%s1 + $0x3e8] sm:$0xff]
  %v143 = vld [vmem:[%s1 + $0x3f0] sm:$0xff]
  %v144 = vld [vmem:[%s1 + $0x3f8] sm:$0xff]
  %v145 = vld [vmem:[%s1 + $0x400] sm:$0xff]
  %v146 = vld [vmem:[%s1 + $0x408] sm:$0xff]
  %v147 = vld [vmem:[%s1 + $0x410] sm:$0xff]
  %v148 = vld [vmem:[%s1 + $0x418] sm:$0xff]
  %v149 = vld [vmem:[%s1 + $0x420] sm:$0xff]
  %v150 = vld [vmem:[%s1 + $0x428] sm:$0xff]
  %v151 = vld [vmem:[%s1 + $0x430] sm:$0xff]
  %v152 = vld [vmem:[%s1 + $0x438] sm:$0xff]
  %v153 = vld [vmem:[%s1 + $0x440] sm:$0xff]
  %v154 = vld [vmem:[%s1 + $0x448] sm:$0xff]
  %v155 = vld [vmem:[%s1 + $0x450] sm:$0xff]
  %v156 = vld [vmem:[%s1 + $0x458] sm:$0xff]
  %v157 = vld [vmem:[%s1 + $0x460] sm:$0xff]
  %v158 = vld [vmem:[%s1 + $0x468] sm:$0xff]
  %v159 = vld [vmem:[%s1 + $0x470] sm:$0xff]
  %v160 = vld [vmem:[%s1 + $0x478] sm:$0xff]
  %v161 = vld [vmem:[%s1 + $0x480] sm:$0xff]
  %v162 = vld [vmem:[%s1 + $0x488] sm:$0xff]
  %v163 = vld [vmem:[%s1 + $0x490] sm:$0xff]
  %v164 = vld [vmem:[%s1 + $0x498] sm:$0xff]
  %v165 = vld [vmem:[%s1 + $0x4a0] sm:$0xff]
  %v166 = vld [vmem:[%s1 + $0x4a8] sm:$0xff]
  %v167 = vld [vmem:[%s1 + $0x4b0] sm:$0xff]
  %v168 = vld [vmem:[%s1 + $0x4b8] sm:$0xff]
  %v169 = vld [vmem:[%s1 + $0x4c0] sm:$0xff]
  %v170 = vld [vmem:[%s1 + $0x4c8] sm:$0xff]
  %v171 = vld [vmem:[%s1 + $0x4d0] sm:$0xff]
  %v172 = vld [vmem:[%s1 + $0x4d8] sm:$0xff]
  %v173 = vld [vmem:[%s1 + $0x4e0] sm:$0xff]
  %v174 = vld [vmem:[%s1 + $0x4e8] sm:$0xff]
  %v175 = vld [vmem:[%s1 + $0x4f0] sm:$0xff]
  %v176 = vld [vmem:[%s1 + $0x4f8] sm:$0xff]
  %v178 = vunpack.c.l.b16 %v16
  %v179 = vunpack.c.h.b16 %v16
  %v180 = vpack.c.b16 %v178, %v178
  %v181 = vpack.c.b16 %v179, %v179
  %v344 = vunpack.c.l.b16 %v17
  %v345 = vunpack.c.h.b16 %v17
  %v346 = vunpack.c.l.b16 %v18
  %v347 = vunpack.c.h.b16 %v18
  %v348 = vunpack.c.l.b16 %v19
  %v349 = vunpack.c.h.b16 %v19
  %v350 = vunpack.c.l.b16 %v20
  %v351 = vunpack.c.h.b16 %v20
  %v352 = vunpack.c.l.b16 %v21
  %v353 = vunpack.c.h.b16 %v21
  %v354 = vunpack.c.l.b16 %v22
  %v355 = vunpack.c.h.b16 %v22
  %v356 = vunpack.c.l.b16 %v23
  %v357 = vunpack.c.h.b16 %v23
  %v358 = vunpack.c.l.b16 %v24
  %v359 = vunpack.c.h.b16 %v24
  %v360 = vunpack.c.l.b16 %v25
  %v361 = vunpack.c.h.b16 %v25
  %v362 = vunpack.c.l.b16 %v26
  %v363 = vunpack.c.h.b16 %v26
  %v364 = vunpack.c.l.b16 %v27
  %v365 = vunpack.c.h.b16 %v27
  %v366 = vunpack.c.l.b16 %v28
  %v367 = vunpack.c.h.b16 %v28
  %v368 = vunpack.c.l.b16 %v29
  %v369 = vunpack.c.h.b16 %v29
  %v370 = vunpack.c.l.b16 %v30
  %v371 = vunpack.c.h.b16 %v30
  %v372 = vunpack.c.l.b16 %v31
  %v373 = vunpack.c.h.b16 %v31
  %v374 = vunpack.c.l.b16 %v32
  %v375 = vunpack.c.h.b16 %v32
  %v376 = vunpack.c.l.b16 %v33
  %v377 = vunpack.c.h.b16 %v33
  %v378 = vunpack.c.l.b16 %v34
  %v379 = vunpack.c.h.b16 %v34
  %v380 = vunpack.c.l.b16 %v35
  %v381 = vunpack.c.h.b16 %v35
  %v382 = vunpack.c.l.b16 %v36
  %v383 = vunpack.c.h.b16 %v36
  %v384 = vunpack.c.l.b16 %v37
  %v385 = vunpack.c.h.b16 %v37
  %v386 = vunpack.c.l.b16 %v38
  %v387 = vunpack.c.h.b16 %v38
  %v388 = vunpack.c.l.b16 %v39
  %v389 = vunpack.c.h.b16 %v39
  %v390 = vunpack.c.l.b16 %v40
  %v391 = vunpack.c.h.b16 %v40
  %v392 = vunpack.c.l.b16 %v41
  %v393 = vunpack.c.h.b16 %v41
  %v394 = vunpack.c.l.b16 %v42
  %v395 = vunpack.c.h.b16 %v42
  %v396 = vunpack.c.l.b16 %v43
  %v397 = vunpack.c.h.b16 %v43
  %v398 = vunpack.c.l.b16 %v44
  %v399 = vunpack.c.h.b16 %v44
  %v400 = vunpack.c.l.b16 %v45
  %v401 = vunpack.c.h.b16 %v45
  %v402 = vunpack.c.l.b16 %v46
  %v403 = vunpack.c.h.b16 %v46
  %v404 = vunpack.c.l.b16 %v47
  %v405 = vunpack.c.h.b16 %v47
  %v406 = vunpack.c.l.b16 %v48
  %v407 = vunpack.c.h.b16 %v48
  %v408 = vunpack.c.l.b16 %v49
  %v409 = vunpack.c.h.b16 %v49
  %v410 = vunpack.c.l.b16 %v50
  %v411 = vunpack.c.h.b16 %v50
  %v412 = vunpack.c.l.b16 %v51
  %v413 = vunpack.c.h.b16 %v51
  %v414 = vunpack.c.l.b16 %v52
  %v415 = vunpack.c.h.b16 %v52
  %v416 = vunpack.c.l.b16 %v53
  %v417 = vunpack.c.h.b16 %v53
  %v418 = vunpack.c.l.b16 %v54
  %v419 = vunpack.c.h.b16 %v54
  %v420 = vunpack.c.l.b16 %v55
  %v421 = vunpack.c.h.b16 %v55
  %v422 = vunpack.c.l.b16 %v56
  %v423 = vunpack.c.h.b16 %v56
  %v424 = vunpack.c.l.b16 %v57
  %v425 = vunpack.c.h.b16 %v57
  %v426 = vunpack.c.l.b16 %v58
  %v427 = vunpack.c.h.b16 %v58
  %v428 = vunpack.c.l.b16 %v59
  %v429 = vunpack.c.h.b16 %v59
  %v430 = vunpack.c.l.b16 %v60
  %v431 = vunpack.c.h.b16 %v60
  %v432 = vunpack.c.l.b16 %v61
  %v433 = vunpack.c.h.b16 %v61
  %v434 = vunpack.c.l.b16 %v62
  %v435 = vunpack.c.h.b16 %v62
  %v436 = vunpack.c.l.b16 %v63
  %v437 = vunpack.c.h.b16 %v63
  %v438 = vunpack.c.l.b16 %v64
  %v439 = vunpack.c.h.b16 %v64
  %v440 = vunpack.c.l.b16 %v65
  %v441 = vunpack.c.h.b16 %v65
  %v442 = vunpack.c.l.b16 %v66
  %v443 = vunpack.c.h.b16 %v66
  %v444 = vunpack.c.l.b16 %v67
  %v445 = vunpack.c.h.b16 %v67
  %v446 = vunpack.c.l.b16 %v68
  %v447 = vunpack.c.h.b16 %v68
  %v448 = vunpack.c.l.b16 %v69
  %v449 = vunpack.c.h.b16 %v69
  %v450 = vunpack.c.l.b16 %v70
  %v451 = vunpack.c.h.b16 %v70
  %v452 = vunpack.c.l.b16 %v71
  %v453 = vunpack.c.h.b16 %v71
  %v454 = vunpack.c.l.b16 %v72
  %v455 = vunpack.c.h.b16 %v72
  %v456 = vunpack.c.l.b16 %v73
  %v457 = vunpack.c.h.b16 %v73
  %v458 = vunpack.c.l.b16 %v74
  %v459 = vunpack.c.h.b16 %v74
  %v460 = vunpack.c.l.b16 %v75
  %v461 = vunpack.c.h.b16 %v75
  %v462 = vunpack.c.l.b16 %v76
  %v463 = vunpack.c.h.b16 %v76
  %v464 = vunpack.c.l.b16 %v77
  %v465 = vunpack.c.h.b16 %v77
  %v466 = vunpack.c.l.b16 %v78
  %v467 = vunpack.c.h.b16 %v78
  %v468 = vunpack.c.l.b16 %v79
  %v469 = vunpack.c.h.b16 %v79
  %v470 = vunpack.c.l.b16 %v80
  %v471 = vunpack.c.h.b16 %v80
  %v472 = vunpack.c.l.b16 %v81
  %v473 = vunpack.c.h.b16 %v81
  %v474 = vunpack.c.l.b16 %v82
  %v475 = vunpack.c.h.b16 %v82
  %v476 = vunpack.c.l.b16 %v83
  %v477 = vunpack.c.h.b16 %v83
  %v478 = vunpack.c.l.b16 %v84
  %v479 = vunpack.c.h.b16 %v84
  %v480 = vunpack.c.l.b16 %v85
  %v481 = vunpack.c.h.b16 %v85
  %v482 = vunpack.c.l.b16 %v86
  %v483 = vunpack.c.h.b16 %v86
  %v484 = vunpack.c.l.b16 %v87
  %v485 = vunpack.c.h.b16 %v87
  %v486 = vunpack.c.l.b16 %v88
  %v487 = vunpack.c.h.b16 %v88
  %v488 = vunpack.c.l.b16 %v89
  %v489 = vunpack.c.h.b16 %v89
  %v490 = vunpack.c.l.b16 %v90
  %v491 = vunpack.c.h.b16 %v90
  %v492 = vunpack.c.l.b16 %v91
  %v493 = vunpack.c.h.b16 %v91
  %v494 = vunpack.c.l.b16 %v92
  %v495 = vunpack.c.h.b16 %v92
  %v496 = vunpack.c.l.b16 %v93
  %v497 = vunpack.c.h.b16 %v93
  %v498 = vunpack.c.l.b16 %v94
  %v499 = vunpack.c.h.b16 %v94
  %v500 = vunpack.c.l.b16 %v95
  %v501 = vunpack.c.h.b16 %v95
  %v502 = vunpack.c.l.b16 %v96
  %v503 = vunpack.c.h.b16 %v96
  %v504 = vunpack.c.l.b16 %v97
  %v505 = vunpack.c.h.b16 %v97
  %v506 = vunpack.c.l.b16 %v98
  %v507 = vunpack.c.h.b16 %v98
  %v508 = vunpack.c.l.b16 %v99
  %v509 = vunpack.c.h.b16 %v99
  %v510 = vunpack.c.l.b16 %v100
  %v511 = vunpack.c.h.b16 %v100
  %v512 = vunpack.c.l.b16 %v101
  %v513 = vunpack.c.h.b16 %v101
  %v514 = vunpack.c.l.b16 %v102
  %v515 = vunpack.c.h.b16 %v102
  %v516 = vunpack.c.l.b16 %v103
  %v517 = vunpack.c.h.b16 %v103
  %v518 = vunpack.c.l.b16 %v104
  %v519 = vunpack.c.h.b16 %v104
  %v520 = vunpack.c.l.b16 %v105
  %v521 = vunpack.c.h.b16 %v105
  %v522 = vunpack.c.l.b16 %v106
  %v523 = vunpack.c.h.b16 %v106
  %v524 = vunpack.c.l.b16 %v107
  %v525 = vunpack.c.h.b16 %v107
  %v526 = vunpack.c.l.b16 %v108
  %v527 = vunpack.c.h.b16 %v108
  %v528 = vunpack.c.l.b16 %v109
  %v529 = vunpack.c.h.b16 %v109
  %v530 = vunpack.c.l.b16 %v110
  %v531 = vunpack.c.h.b16 %v110
  %v532 = vunpack.c.l.b16 %v111
  %v533 = vunpack.c.h.b16 %v111
  %v534 = vunpack.c.l.b16 %v112
  %v535 = vunpack.c.h.b16 %v112
  %v536 = vunpack.c.l.b16 %v113
  %v537 = vunpack.c.h.b16 %v113
  %v538 = vunpack.c.l.b16 %v114
  %v539 = vunpack.c.h.b16 %v114
  %v540 = vunpack.c.l.b16 %v115
  %v541 = vunpack.c.h.b16 %v115
  %v542 = vunpack.c.l.b16 %v116
  %v543 = vunpack.c.h.b16 %v116
  %v544 = vunpack.c.l.b16 %v117
  %v545 = vunpack.c.h.b16 %v117
  %v546 = vunpack.c.l.b16 %v118
  %v547 = vunpack.c.h.b16 %v118
  %v548 = vunpack.c.l.b16 %v119
  %v549 = vunpack.c.h.b16 %v119
  %v550 = vunpack.c.l.b16 %v120
  %v551 = vunpack.c.h.b16 %v120
  %v552 = vunpack.c.l.b16 %v121
  %v553 = vunpack.c.h.b16 %v121
  %v554 = vunpack.c.l.b16 %v122
  %v555 = vunpack.c.h.b16 %v122
  %v556 = vunpack.c.l.b16 %v123
  %v557 = vunpack.c.h.b16 %v123
  %v558 = vunpack.c.l.b16 %v124
  %v559 = vunpack.c.h.b16 %v124
  %v560 = vunpack.c.l.b16 %v125
  %v561 = vunpack.c.h.b16 %v125
  %v562 = vunpack.c.l.b16 %v126
  %v563 = vunpack.c.h.b16 %v126
  %v564 = vunpack.c.l.b16 %v127
  %v565 = vunpack.c.h.b16 %v127
  %v566 = vunpack.c.l.b16 %v128
  %v567 = vunpack.c.h.b16 %v128
  %v568 = vunpack.c.l.b16 %v129
  %v569 = vunpack.c.h.b16 %v129
  %v570 = vunpack.c.l.b16 %v130
  %v571 = vunpack.c.h.b16 %v130
  %v572 = vunpack.c.l.b16 %v131
  %v573 = vunpack.c.h.b16 %v131
  %v574 = vunpack.c.l.b16 %v132
  %v575 = vunpack.c.h.b16 %v132
  %v576 = vunpack.c.l.b16 %v133
  %v577 = vunpack.c.h.b16 %v133
  %v578 = vunpack.c.l.b16 %v134
  %v579 = vunpack.c.h.b16 %v134
  %v580 = vunpack.c.l.b16 %v135
  %v581 = vunpack.c.h.b16 %v135
  %v582 = vunpack.c.l.b16 %v136
  %v583 = vunpack.c.h.b16 %v136
  %v584 = vunpack.c.l.b16 %v137
  %v585 = vunpack.c.h.b16 %v137
  %v586 = vunpack.c.l.b16 %v138
  %v587 = vunpack.c.h.b16 %v138
  %v588 = vunpack.c.l.b16 %v139
  %v589 = vunpack.c.h.b16 %v139
  %v590 = vunpack.c.l.b16 %v140
  %v591 = vunpack.c.h.b16 %v140
  %v592 = vunpack.c.l.b16 %v141
  %v593 = vunpack.c.h.b16 %v141
  %v594 = vunpack.c.l.b16 %v142
  %v595 = vunpack.c.h.b16 %v142
  %v596 = vunpack.c.l.b16 %v143
  %v597 = vunpack.c.h.b16 %v143
  %v598 = vunpack.c.l.b16 %v144
  %v599 = vunpack.c.h.b16 %v144
  %v600 = vunpack.c.l.b16 %v145
  %v601 = vunpack.c.h.b16 %v145
  %v602 = vunpack.c.l.b16 %v146
  %v603 = vunpack.c.h.b16 %v146
  %v604 = vunpack.c.l.b16 %v147
  %v605 = vunpack.c.h.b16 %v147
  %v606 = vunpack.c.l.b16 %v148
  %v607 = vunpack.c.h.b16 %v148
  %v608 = vunpack.c.l.b16 %v149
  %v609 = vunpack.c.h.b16 %v149
  %v610 = vunpack.c.l.b16 %v150
  %v611 = vunpack.c.h.b16 %v150
  %v612 = vunpack.c.l.b16 %v151
  %v613 = vunpack.c.h.b16 %v151
  %v614 = vunpack.c.l.b16 %v152
  %v615 = vunpack.c.h.b16 %v152
  %v616 = vunpack.c.l.b16 %v153
  %v617 = vunpack.c.h.b16 %v153
  %v618 = vunpack.c.l.b16 %v154
  %v619 = vunpack.c.h.b16 %v154
  %v620 = vunpack.c.l.b16 %v155
  %v621 = vunpack.c.h.b16 %v155
  %v622 = vunpack.c.l.b16 %v156
  %v623 = vunpack.c.h.b16 %v156
  %v624 = vunpack.c.l.b16 %v157
  %v625 = vunpack.c.h.b16 %v157
  %v626 = vunpack.c.l.b16 %v158
  %v627 = vunpack.c.h.b16 %v158
  %v628 = vunpack.c.l.b16 %v159
  %v629 = vunpack.c.h.b16 %v159
  %v630 = vunpack.c.l.b16 %v160
  %v631 = vunpack.c.h.b16 %v160
  %v632 = vunpack.c.l.b16 %v161
  %v633 = vunpack.c.h.b16 %v161
  %v634 = vunpack.c.l.b16 %v162
  %v635 = vunpack.c.h.b16 %v162
  %v636 = vunpack.c.l.b16 %v163
  %v637 = vunpack.c.h.b16 %v163
  %v638 = vunpack.c.l.b16 %v164
  %v639 = vunpack.c.h.b16 %v164
  %v640 = vunpack.c.l.b16 %v165
  %v641 = vunpack.c.h.b16 %v165
  %v642 = vunpack.c.l.b16 %v166
  %v643 = vunpack.c.h.b16 %v166
  %v644 = vunpack.c.l.b16 %v167
  %v645 = vunpack.c.h.b16 %v167
  %v646 = vunpack.c.l.b16 %v168
  %v647 = vunpack.c.h.b16 %v168
  %v648 = vunpack.c.l.b16 %v169
  %v649 = vunpack.c.h.b16 %v169
  %v650 = vunpack.c.l.b16 %v170
  %v651 = vunpack.c.h.b16 %v170
  %v652 = vunpack.c.l.b16 %v171
  %v653 = vunpack.c.h.b16 %v171
  %v654 = vunpack.c.l.b16 %v172
  %v655 = vunpack.c.h.b16 %v172
  %v656 = vunpack.c.l.b16 %v173
  %v657 = vunpack.c.h.b16 %v173
  %v658 = vunpack.c.l.b16 %v174
  %v659 = vunpack.c.h.b16 %v174
  %v660 = vunpack.c.l.b16 %v175
  %v661 = vunpack.c.h.b16 %v175
  %v662 = vunpack.c.l.b16 %v176
  %v663 = vunpack.c.h.b16 %v176
  %v664 = vpack.c.b16 %v354, %v344
  %v665 = vpack.c.b16 %v355, %v345
  %v666 = vpack.c.b16 %v356, %v346
  %v667 = vpack.c.b16 %v357, %v347
  %v668 = vpack.c.b16 %v358, %v348
  %v669 = vpack.c.b16 %v359, %v349
  %v670 = vpack.c.b16 %v360, %v350
  %v671 = vpack.c.b16 %v361, %v351
  %v672 = vpack.c.b16 %v362, %v352
  %v673 = vpack.c.b16 %v363, %v353
  %v674 = vpack.c.b16 %v374, %v364
  %v675 = vpack.c.b16 %v375, %v365
  %v676 = vpack.c.b16 %v376, %v366
  %v677 = vpack.c.b16 %v377, %v367
  %v678 = vpack.c.b16 %v378, %v368
  %v679 = vpack.c.b16 %v379, %v369
  %v680 = vpack.c.b16 %v380, %v370
  %v681 = vpack.c.b16 %v381, %v371
  %v682 = vpack.c.b16 %v382, %v372
  %v683 = vpack.c.b16 %v383, %v373
  %v684 = vpack.c.b16 %v394, %v384
  %v685 = vpack.c.b16 %v395, %v385
  %v686 = vpack.c.b16 %v396, %v386
  %v687 = vpack.c.b16 %v397, %v387
  %v688 = vpack.c.b16 %v398, %v388
  %v689 = vpack.c.b16 %v399, %v389
  %v690 = vpack.c.b16 %v400, %v390
  %v691 = vpack.c.b16 %v401, %v391
  %v692 = vpack.c.b16 %v402, %v392
  %v693 = vpack.c.b16 %v403, %v393
  %v694 = vpack.c.b16 %v414, %v404
  %v695 = vpack.c.b16 %v415, %v405
  %v696 = vpack.c.b16 %v416, %v406
  %v697 = vpack.c.b16 %v417, %v407
  %v698 = vpack.c.b16 %v418, %v408
  %v699 = vpack.c.b16 %v419, %v409
  %v700 = vpack.c.b16 %v420, %v410
  %v701 = vpack.c.b16 %v421, %v411
  %v702 = vpack.c.b16 %v422, %v412
  %v703 = vpack.c.b16 %v423, %v413
  %v704 = vpack.c.b16 %v434, %v424
  %v705 = vpack.c.b16 %v435, %v425
  %v706 = vpack.c.b16 %v436, %v426
  %v707 = vpack.c.b16 %v437, %v427
  %v708 = vpack.c.b16 %v438, %v428
  %v709 = vpack.c.b16 %v439, %v429
  %v710 = vpack.c.b16 %v440, %v430
  %v711 = vpack.c.b16 %v441, %v431
  %v712 = vpack.c.b16 %v442, %v432
  %v713 = vpack.c.b16 %v443, %v433
  %v714 = vpack.c.b16 %v454, %v444
  %v715 = vpack.c.b16 %v455, %v445
  %v716 = vpack.c.b16 %v456, %v446
  %v717 = vpack.c.b16 %v457, %v447
  %v718 = vpack.c.b16 %v458, %v448
  %v719 = vpack.c.b16 %v459, %v449
  %v720 = vpack.c.b16 %v460, %v450
  %v721 = vpack.c.b16 %v461, %v451
  %v722 = vpack.c.b16 %v462, %v452
  %v723 = vpack.c.b16 %v463, %v453
  %v724 = vpack.c.b16 %v474, %v464
  %v725 = vpack.c.b16 %v475, %v465
  %v726 = vpack.c.b16 %v476, %v466
  %v727 = vpack.c.b16 %v477, %v467
  %v728 = vpack.c.b16 %v478, %v468
  %v729 = vpack.c.b16 %v479, %v469
  %v730 = vpack.c.b16 %v480, %v470
  %v731 = vpack.c.b16 %v481, %v471
  %v732 = vpack.c.b16 %v482, %v472
  %v733 = vpack.c.b16 %v483, %v473
  %v734 = vpack.c.b16 %v494, %v484
  %v735 = vpack.c.b16 %v495, %v485
  %v736 = vpack.c.b16 %v496, %v486
  %v737 = vpack.c.b16 %v497, %v487
  %v738 = vpack.c.b16 %v498, %v488
  %v739 = vpack.c.b16 %v499, %v489
  %v740 = vpack.c.b16 %v500, %v490
  %v741 = vpack.c.b16 %v501, %v491
  %v742 = vpack.c.b16 %v502, %v492
  %v743 = vpack.c.b16 %v503, %v493
  %v744 = vpack.c.b16 %v514, %v504
  %v745 = vpack.c.b16 %v515, %v505
  %v746 = vpack.c.b16 %v516, %v506
  %v747 = vpack.c.b16 %v517, %v507
  %v748 = vpack.c.b16 %v518, %v508
  %v749 = vpack.c.b16 %v519, %v509
  %v750 = vpack.c.b16 %v520, %v510
  %v751 = vpack.c.b16 %v521, %v511
  %v752 = vpack.c.b16 %v522, %v512
  %v753 = vpack.c.b16 %v523, %v513
  %v754 = vpack.c.b16 %v534, %v524
  %v755 = vpack.c.b16 %v535, %v525
  %v756 = vpack.c.b16 %v536, %v526
  %v757 = vpack.c.b16 %v537, %v527
  %v758 = vpack.c.b16 %v538, %v528
  %v759 = vpack.c.b16 %v539, %v529
  %v760 = vpack.c.b16 %v540, %v530
  %v761 = vpack.c.b16 %v541, %v531
  %v762 = vpack.c.b16 %v542, %v532
  %v763 = vpack.c.b16 %v543, %v533
  %v764 = vpack.c.b16 %v554, %v544
  %v765 = vpack.c.b16 %v555, %v545
  %v766 = vpack.c.b16 %v556, %v546
  %v767 = vpack.c.b16 %v557, %v547
  %v768 = vpack.c.b16 %v558, %v548
  %v769 = vpack.c.b16 %v559, %v549
  %v770 = vpack.c.b16 %v560, %v550
  %v771 = vpack.c.b16 %v561, %v551
  %v772 = vpack.c.b16 %v562, %v552
  %v773 = vpack.c.b16 %v563, %v553
  %v774 = vpack.c.b16 %v574, %v564
  %v775 = vpack.c.b16 %v575, %v565
  %v776 = vpack.c.b16 %v576, %v566
  %v777 = vpack.c.b16 %v577, %v567
  %v778 = vpack.c.b16 %v578, %v568
  %v779 = vpack.c.b16 %v579, %v569
  %v780 = vpack.c.b16 %v580, %v570
  %v781 = vpack.c.b16 %v581, %v571
  %v782 = vpack.c.b16 %v582, %v572
  %v783 = vpack.c.b16 %v583, %v573
  %v784 = vpack.c.b16 %v594, %v584
  %v785 = vpack.c.b16 %v595, %v585
  %v786 = vpack.c.b16 %v596, %v586
  %v787 = vpack.c.b16 %v597, %v587
  %v788 = vpack.c.b16 %v598, %v588
  %v789 = vpack.c.b16 %v599, %v589
  %v790 = vpack.c.b16 %v600, %v590
  %v791 = vpack.c.b16 %v601, %v591
  %v792 = vpack.c.b16 %v602, %v592
  %v793 = vpack.c.b16 %v603, %v593
  %v794 = vpack.c.b16 %v614, %v604
  %v795 = vpack.c.b16 %v615, %v605
  %v796 = vpack.c.b16 %v616, %v606
  %v797 = vpack.c.b16 %v617, %v607
  %v798 = vpack.c.b16 %v618, %v608
  %v799 = vpack.c.b16 %v619, %v609
  %v800 = vpack.c.b16 %v620, %v610
  %v801 = vpack.c.b16 %v621, %v611
  %v802 = vpack.c.b16 %v622, %v612
  %v803 = vpack.c.b16 %v623, %v613
  %v804 = vpack.c.b16 %v634, %v624
  %v805 = vpack.c.b16 %v635, %v625
  %v806 = vpack.c.b16 %v636, %v626
  %v807 = vpack.c.b16 %v637, %v627
  %v808 = vpack.c.b16 %v638, %v628
  %v809 = vpack.c.b16 %v639, %v629
  %v810 = vpack.c.b16 %v640, %v630
  %v811 = vpack.c.b16 %v641, %v631
  %v812 = vpack.c.b16 %v642, %v632
  %v813 = vpack.c.b16 %v643, %v633
  %v814 = vpack.c.b16 %v654, %v644
  %v815 = vpack.c.b16 %v655, %v645
  %v816 = vpack.c.b16 %v656, %v646
  %v817 = vpack.c.b16 %v657, %v647
  %v818 = vpack.c.b16 %v658, %v648
  %v819 = vpack.c.b16 %v659, %v649
  %v820 = vpack.c.b16 %v660, %v650
  %v821 = vpack.c.b16 %v661, %v651
  %v822 = vpack.c.b16 %v662, %v652
  %v823 = vpack.c.b16 %v663, %v653
  %984 = vmatprep.subr.bf16.mxu0 %v665
  %985 = vmatpush1.bf16.msra.mxu0 %v664
  %986 = vmatprep.subr.bf16.mxu0 %v675
  %987 = vmatpush1.bf16.msra.mxu0 %v674
  %988 = vmatprep.subr.bf16.mxu0 %v685
  %989 = vmatpush1.bf16.msra.mxu0 %v684
  %990 = vmatprep.subr.bf16.mxu0 %v695
  %991 = vmatpush1.bf16.msra.mxu0 %v694
  %992 = vmatprep.subr.bf16.mxu0 %v705
  %993 = vmatpush1.bf16.msra.mxu0 %v704
  %994 = vmatprep.subr.bf16.mxu0 %v715
  %995 = vmatpush1.bf16.msra.mxu0 %v714
  %996 = vmatprep.subr.bf16.mxu0 %v725
  %997 = vmatpush1.bf16.msra.mxu0 %v724
  %998 = vmatprep.subr.bf16.mxu0 %v735
  %999 = vmatpush1.bf16.msra.mxu0 %v734
  %1000 = vmatprep.subr.bf16.mxu0 %v745
  %1001 = vmatpush1.bf16.msra.mxu0 %v744
  %1002 = vmatprep.subr.bf16.mxu0 %v755
  %1003 = vmatpush1.bf16.msra.mxu0 %v754
  %1004 = vmatprep.subr.bf16.mxu0 %v765
  %1005 = vmatpush1.bf16.msra.mxu0 %v764
  %1006 = vmatprep.subr.bf16.mxu0 %v775
  %1007 = vmatpush1.bf16.msra.mxu0 %v774
  %1008 = vmatprep.subr.bf16.mxu0 %v785
  %1009 = vmatpush1.bf16.msra.mxu0 %v784
  %1010 = vmatprep.subr.bf16.mxu0 %v795
  %1011 = vmatpush1.bf16.msra.mxu0 %v794
  %1012 = vmatprep.subr.bf16.mxu0 %v805
  %1013 = vmatpush1.bf16.msra.mxu0 %v804
  %1014 = vmatprep.subr.bf16.mxu0 %v815
  %1015 = vmatpush1.bf16.msra.mxu0 %v814
  %1016 = vmatprep.mubr.bf16.mxu0 %v181
  %1017 = vmatmul.mubr.bf16.gmra.mrb[0].mxu0 %v180
  %v1018 = vpop.f32.mrb[0].mxu0
  %v1019 = vadd.f32 0.0, %v1018
  %v1020 = vpop.f32.mrb[0].mxu0
  %v1021 = vadd.f32 0.0, %v1020
  %v1022 = vpop.f32.mrb[0].mxu0
  %v1023 = vpop.f32.mrb[0].mxu0
  %1024 = vdwg.mxu0
  %1025 = vmatprep.subr.bf16.mxu0 %v667
  %1026 = vmatpush1.bf16.msra.mxu0 %v666
  %1027 = vmatprep.subr.bf16.mxu0 %v677
  %1028 = vmatpush1.bf16.msra.mxu0 %v676
  %1029 = vmatprep.subr.bf16.mxu0 %v687
  %1030 = vmatpush1.bf16.msra.mxu0 %v686
  %1031 = vmatprep.subr.bf16.mxu0 %v697
  %1032 = vmatpush1.bf16.msra.mxu0 %v696
  %1033 = vmatprep.subr.bf16.mxu0 %v707
  %1034 = vmatpush1.bf16.msra.mxu0 %v706
  %1035 = vmatprep.subr.bf16.mxu0 %v717
  %1036 = vmatpush1.bf16.msra.mxu0 %v716
  %1037 = vmatprep.subr.bf16.mxu0 %v727
  %1038 = vmatpush1.bf16.msra.mxu0 %v726
  %1039 = vmatprep.subr.bf16.mxu0 %v737
  %1040 = vmatpush1.bf16.msra.mxu0 %v736
  %1041 = vmatprep.subr.bf16.mxu0 %v747
  %1042 = vmatpush1.bf16.msra.mxu0 %v746
  %1043 = vmatprep.subr.bf16.mxu0 %v757
  %1044 = vmatpush1.bf16.msra.mxu0 %v756
  %1045 = vmatprep.subr.bf16.mxu0 %v767
  %1046 = vmatpush1.bf16.msra.mxu0 %v766
  %1047 = vmatprep.subr.bf16.mxu0 %v777
  %1048 = vmatpush1.bf16.msra.mxu0 %v776
  %1049 = vmatprep.subr.bf16.mxu0 %v787
  %1050 = vmatpush1.bf16.msra.mxu0 %v786
  %1051 = vmatprep.subr.bf16.mxu0 %v797
  %1052 = vmatpush1.bf16.msra.mxu0 %v796
  %1053 = vmatprep.subr.bf16.mxu0 %v807
  %1054 = vmatpush1.bf16.msra.mxu0 %v806
  %1055 = vmatprep.subr.bf16.mxu0 %v817
  %1056 = vmatpush1.bf16.msra.mxu0 %v816
  %1057 = vmatprep.mubr.bf16.mxu0 %v181
  %1058 = vmatmul.mubr.bf16.gmra.mrb[0].mxu0 %v180
  %v1059 = vpop.f32.mrb[0].mxu0
  %v1060 = vadd.f32 0.0, %v1059
  %v1061 = vpop.f32.mrb[0].mxu0
  %v1062 = vadd.f32 0.0, %v1061
  %v1063 = vpop.f32.mrb[0].mxu0
  %v1064 = vpop.f32.mrb[0].mxu0
  %1065 = vdwg.mxu0
  %1066 = vmatprep.subr.bf16.mxu0 %v669
  %1067 = vmatpush1.bf16.msra.mxu0 %v668
  %1068 = vmatprep.subr.bf16.mxu0 %v679
  %1069 = vmatpush1.bf16.msra.mxu0 %v678
  %1070 = vmatprep.subr.bf16.mxu0 %v689
  %1071 = vmatpush1.bf16.msra.mxu0 %v688
  %1072 = vmatprep.subr.bf16.mxu0 %v699
  %1073 = vmatpush1.bf16.msra.mxu0 %v698
  %1074 = vmatprep.subr.bf16.mxu0 %v709
  %1075 = vmatpush1.bf16.msra.mxu0 %v708
  %1076 = vmatprep.subr.bf16.mxu0 %v719
  %1077 = vmatpush1.bf16.msra.mxu0 %v718
  %1078 = vmatprep.subr.bf16.mxu0 %v729
  %1079 = vmatpush1.bf16.msra.mxu0 %v728
  %1080 = vmatprep.subr.bf16.mxu0 %v739
  %1081 = vmatpush1.bf16.msra.mxu0 %v738
  %1082 = vmatprep.subr.bf16.mxu0 %v749
  %1083 = vmatpush1.bf16.msra.mxu0 %v748
  %1084 = vmatprep.subr.bf16.mxu0 %v759
  %1085 = vmatpush1.bf16.msra.mxu0 %v758
  %1086 = vmatprep.subr.bf16.mxu0 %v769
  %1087 = vmatpush1.bf16.msra.mxu0 %v768
  %1088 = vmatprep.subr.bf16.mxu0 %v779
  %1089 = vmatpush1.bf16.msra.mxu0 %v778
  %1090 = vmatprep.subr.bf16.mxu0 %v789
  %1091 = vmatpush1.bf16.msra.mxu0 %v788
  %1092 = vmatprep.subr.bf16.mxu0 %v799
  %1093 = vmatpush1.bf16.msra.mxu0 %v798
  %1094 = vmatprep.subr.bf16.mxu0 %v809
  %1095 = vmatpush1.bf16.msra.mxu0 %v808
  %1096 = vmatprep.subr.bf16.mxu0 %v819
  %1097 = vmatpush1.bf16.msra.mxu0 %v818
  %1098 = vmatprep.mubr.bf16.mxu0 %v181
  %1099 = vmatmul.mubr.bf16.gmra.mrb[0].mxu0 %v180
  %v1100 = vpop.f32.mrb[0].mxu0
  %v1101 = vadd.f32 0.0, %v1100
  %v1102 = vpop.f32.mrb[0].mxu0
  %v1103 = vadd.f32 0.0, %v1102
  %v1104 = vpop.f32.mrb[0].mxu0
  %v1105 = vpop.f32.mrb[0].mxu0
  %1106 = vdwg.mxu0
  %1107 = vmatprep.subr.bf16.mxu0 %v671
  %1108 = vmatpush1.bf16.msra.mxu0 %v670
  %1109 = vmatprep.subr.bf16.mxu0 %v681
  %1110 = vmatpush1.bf16.msra.mxu0 %v680
  %1111 = vmatprep.subr.bf16.mxu0 %v691
  %1112 = vmatpush1.bf16.msra.mxu0 %v690
  %1113 = vmatprep.subr.bf16.mxu0 %v701
  %1114 = vmatpush1.bf16.msra.mxu0 %v700
  %1115 = vmatprep.subr.bf16.mxu0 %v711
  %1116 = vmatpush1.bf16.msra.mxu0 %v710
  %1117 = vmatprep.subr.bf16.mxu0 %v721
  %1118 = vmatpush1.bf16.msra.mxu0 %v720
  %1119 = vmatprep.subr.bf16.mxu0 %v731
  %1120 = vmatpush1.bf16.msra.mxu0 %v730
  %1121 = vmatprep.subr.bf16.mxu0 %v741
  %1122 = vmatpush1.bf16.msra.mxu0 %v740
  %1123 = vmatprep.subr.bf16.mxu0 %v751
  %1124 = vmatpush1.bf16.msra.mxu0 %v750
  %1125 = vmatprep.subr.bf16.mxu0 %v761
  %1126 = vmatpush1.bf16.msra.mxu0 %v760
  %1127 = vmatprep.subr.bf16.mxu0 %v771
  %1128 = vmatpush1.bf16.msra.mxu0 %v770
  %1129 = vmatprep.subr.bf16.mxu0 %v781
  %1130 = vmatpush1.bf16.msra.mxu0 %v780
  %1131 = vmatprep.subr.bf16.mxu0 %v791
  %1132 = vmatpush1.bf16.msra.mxu0 %v790
  %1133 = vmatprep.subr.bf16.mxu0 %v801
  %1134 = vmatpush1.bf16.msra.mxu0 %v800
  %1135 = vmatprep.subr.bf16.mxu0 %v811
  %1136 = vmatpush1.bf16.msra.mxu0 %v810
  %1137 = vmatprep.subr.bf16.mxu0 %v821
  %1138 = vmatpush1.bf16.msra.mxu0 %v820
  %1139 = vmatprep.mubr.bf16.mxu0 %v181
  %1140 = vmatmul.mubr.bf16.gmra.mrb[0].mxu0 %v180
  %v1141 = vpop.f32.mrb[0].mxu0
  %v1142 = vadd.f32 0.0, %v1141
  %v1143 = vpop.f32.mrb[0].mxu0
  %v1144 = vadd.f32 0.0, %v1143
  %v1145 = vpop.f32.mrb[0].mxu0
  %v1146 = vpop.f32.mrb[0].mxu0
  %1147 = vdwg.mxu0
  %1148 = vmatprep.subr.bf16.mxu0 %v673
  %1149 = vmatpush1.bf16.msra.mxu0 %v672
  %1150 = vmatprep.subr.bf16.mxu0 %v683
  %1151 = vmatpush1.bf16.msra.mxu0 %v682
  %1152 = vmatprep.subr.bf16.mxu0 %v693
  %1153 = vmatpush1.bf16.msra.mxu0 %v692
  %1154 = vmatprep.subr.bf16.mxu0 %v703
  %1155 = vmatpush1.bf16.msra.mxu0 %v702
  %1156 = vmatprep.subr.bf16.mxu0 %v713
  %1157 = vmatpush1.bf16.msra.mxu0 %v712
  %1158 = vmatprep.subr.bf16.mxu0 %v723
  %1159 = vmatpush1.bf16.msra.mxu0 %v722
  %1160 = vmatprep.subr.bf16.mxu0 %v733
  %1161 = vmatpush1.bf16.msra.mxu0 %v732
  %1162 = vmatprep.subr.bf16.mxu0 %v743
  %1163 = vmatpush1.bf16.msra.mxu0 %v742
  %1164 = vmatprep.subr.bf16.mxu0 %v753
  %1165 = vmatpush1.bf16.msra.mxu0 %v752
  %1166 = vmatprep.subr.bf16.mxu0 %v763
  %1167 = vmatpush1.bf16.msra.mxu0 %v762
  %1168 = vmatprep.subr.bf16.mxu0 %v773
  %1169 = vmatpush1.bf16.msra.mxu0 %v772
  %1170 = vmatprep.subr.bf16.mxu0 %v783
  %1171 = vmatpush1.bf16.msra.mxu0 %v782
  %1172 = vmatprep.subr.bf16.mxu0 %v793
  %1173 = vmatpush1.bf16.msra.mxu0 %v792
  %1174 = vmatprep.subr.bf16.mxu0 %v803
  %1175 = vmatpush1.bf16.msra.mxu0 %v802
  %1176 = vmatprep.subr.bf16.mxu0 %v813
  %1177 = vmatpush1.bf16.msra.mxu0 %v812
  %1178 = vmatprep.subr.bf16.mxu0 %v823
  %1179 = vmatpush1.bf16.msra.mxu0 %v822
  %1180 = vmatprep.mubr.bf16.mxu0 %v181
  %1181 = vmatmul.mubr.bf16.gmra.mrb[0].mxu0 %v180
  %v1182 = vpop.f32.mrb[0].mxu0
  %v1183 = vadd.f32 0.0, %v1182
  %v1184 = vpop.f32.mrb[0].mxu0
  %v1185 = vadd.f32 0.0, %v1184
  %v1186 = vpop.f32.mrb[0].mxu0
  %v1187 = vpop.f32.mrb[0].mxu0
  %1188 = vdwg.mxu0
  %v1189 = vld [vmem:[#allocation2] sm:$0x1]
  %1191 = vset.pattern.permute.xlu0 0
  %1192 = vperm.xlu0 %1191, %v1189
  %v1193 = vpop.permute.xlu0 %1192
  %v1195 = vlaneseq
  %v1196 = vshrl.u32 %v1195, 7
  %v1197 = vsub.s32 0, %v1196
  %v1198 = vrot.slane %v1193, %v1197
  %v1199 = vadd.f32 %v1019, %v1198
  %v1200 = vadd.f32 %v1021, %v1198
  %v1201 = vadd.f32 %v1060, %v1198
  %v1202 = vadd.f32 %v1062, %v1198
  %v1203 = vadd.f32 %v1101, %v1198
  %v1204 = vadd.f32 %v1103, %v1198
  %v1205 = vadd.f32 %v1142, %v1198
  %v1206 = vadd.f32 %v1144, %v1198
  %v1207 = vadd.f32 %v1183, %v1198
  %v1208 = vadd.f32 %v1185, %v1198
  %v1209 = vtanh.pop %v1199
  %v1210 = vtanh.pop %v1200
  %v1211 = vtanh.pop %v1201
  %v1212 = vtanh.pop %v1202
  %v1213 = vtanh.pop %v1203
  %v1214 = vtanh.pop %v1204
  %v1215 = vtanh.pop %v1205
  %v1216 = vtanh.pop %v1206
  %v1217 = vtanh.pop %v1207
  %v1218 = vtanh.pop %v1208
  %v1229 = vcombine.low %v1209, %v1210
  %v1230 = vcombine.low %v1211, %v1212
  %v1231 = vcombine.low %v1213, %v1214
  %v1232 = vcombine.low %v1215, %v1216
  %v1234 = vunpack.c.l.s4 1966171168
  %v1235 = vunpack.c.0.s8 %v1234
  %v1236 = vlaneseq
  %v1237 = vshrl.u32 %v1236, 7
  %v1238 = vsub.s32 %v1235, %v1237
  %v1239 = vrot.slane %v1229, %v1238
  %v1241 = vunpack.c.l.s4 1966171168
  %v1242 = vunpack.c.0.s8 %v1241
  %v1243 = vlaneseq
  %v1244 = vshrl.u32 %v1243, 7
  %v1245 = vsub.s32 %v1242, %v1244
  %v1246 = vrot.slane %v1230, %v1245
  %v1248 = vunpack.c.l.s4 1966171168
  %v1249 = vunpack.c.0.s8 %v1248
  %v1250 = vlaneseq
  %v1251 = vshrl.u32 %v1250, 7
  %v1252 = vsub.s32 %v1249, %v1251
  %v1253 = vrot.slane %v1231, %v1252
  %v1255 = vunpack.c.l.s4 1966171168
  %v1256 = vunpack.c.0.s8 %v1255
  %v1257 = vlaneseq
  %v1258 = vshrl.u32 %v1257, 7
  %v1259 = vsub.s32 %v1256, %v1258
  %v1260 = vrot.slane %v1232, %v1259
  %v1261 = vcombine.low %v1239, %v1246
  %v1262 = vcombine.low %v1253, %v1260
  %v1264 = vunpack.c.l.s4 1966171168
  %v1265 = vunpack.c.0.s8 %v1264
  %v1266 = vlaneseq
  %v1267 = vshrl.u32 %v1266, 7
  %v1268 = vsub.s32 %v1265, %v1267
  %v1269 = vrot.slane %v1261, %v1268
  %v1271 = vunpack.c.l.s4 1966171168
  %v1272 = vunpack.c.0.s8 %v1271
  %v1273 = vlaneseq
  %v1274 = vshrl.u32 %v1273, 7
  %v1275 = vsub.s32 %v1272, %v1274
  %v1276 = vrot.slane %v1262, %v1275
  %v1277 = vcombine.low %v1269, %v1276
  %v1278 = vcombine.low %v1217, %v1218
  %v1280 = vunpack.c.l.s4 1966171168
  %v1281 = vunpack.c.0.s8 %v1280
  %v1282 = vlaneseq
  %v1283 = vshrl.u32 %v1282, 7
  %v1284 = vsub.s32 %v1281, %v1283
  %v1285 = vrot.slane %v1278, %v1284
  %v1287 = vunpack.c.l.s4 1966171168
  %v1288 = vunpack.c.0.s8 %v1287
  %v1289 = vlaneseq
  %v1290 = vshrl.u32 %v1289, 7
  %v1291 = vsub.s32 %v1288, %v1290
  %v1292 = vrot.slane %v1285, %v1291
  %1295 = vst [vmem:[%s3] sm:$0xff] %v1277
  %v1296 = vlaneseq
  %vm1297 = vcmp.ge.s32.totalorder %v1296, 0
  %vm1298 = vcmp.lt.s32.totalorder %v1296, 256
  %vm1299 = vmand %vm1297, %vm1298
  %1300 = vst.msk [vmem:[%s3 + $0x8] sm:$0x3] %vm1299, %v1292
  // Predicated region
  $region14: #{generator_forward.7} parent=0 // pred_check
    _
  $region15: #{generator_forward.7} parent=0 // pred_check_branch
    %1302 = sbr.rel (0) target = $region17
  $region16: #{generator_forward.7} parent=0 // pred_region
    _
  $region17: #{generator_forward.7} parent=0 // pred_fallthru
    _
  // Predicated region
  $region18: #{generator_forward.7} parent=0 // pred_check
    _
  $region19: #{generator_forward.7} parent=0 // pred_check_branch
    %1304 = sbr.rel (0) target = $region21
  $region20: #{generator_forward.7} parent=0 // pred_region
    _
  $region21: #{generator_forward.7} parent=0 // pred_fallthru
    _

</llo_original>
